<compile_context>
chip_gen: v6e
topology: v6e:2x2x1
jax: 0.10.0
libtpu: 0.0.40
codegen_flags: <defaults>
</compile_context>

<pallas_src>
import functools

import jax
import jax.numpy as jnp
from jax import lax
from jax.experimental import pallas as pl
from jax.experimental.pallas import tpu as pltpu


def rnn_ar_kernel(tok_ref, emb_proj_ref, whh_ref, bias1_ref, bias0_ref,
                  wout_ref, bout_ref, out_ref, xi_ref, hbf_ref,
                  *, seq_len, batch_tile, start_token):
    """Full RNN_AR forward for one 8-row batch tile (time-major output).

    tok_ref:      (L*Bt, 1)    int32  tokens, row = t*Bt + b_local
    emb_proj_ref: (Vt, H)      bf16   embedding @ W_ih_emb (fused table)
    whh_ref:      (H, H)       bf16   W_hh^T
    bias1_ref:    (1, H)       f32    phase_emb[1] @ W_ih_phase + b_ih + b_hh
    bias0_ref:    (1, H)       f32    phase_emb[0] @ W_ih_phase + b_ih + b_hh
    wout_ref:     (H, Vo)      bf16   W_out^T (padded logit columns zero)
    bout_ref:     (1, Vo)      f32    b_out  (padded logit columns -1e30)
    out_ref:      (2*L*Bt, Vo) f32    time-major logits, row = step*Bt + b_local
    xi_ref:       (L*Bt, H)    f32    scratch: phase-1 input projections
    hbf_ref:      (L*Bt, H)    bf16   scratch: phase-1 hidden states
    """
    L, Bt = seq_len, batch_tile
    Vt, H = emb_proj_ref.shape
    Vo = out_ref.shape[-1]

    # Held live across both loops (small): W_hh^T + per-phase bias rows.
    whh = whh_ref[...]
    bias1 = bias1_ref[...]
    bias0 = bias0_ref[...]
    bout = bout_ref[...]

    # ---- phase 1: teacher forced -------------------------------------------
    # xi = onehot(tok) @ emb_proj + bias1 for all L steps at once.
    tok = tok_ref[...]                                              # (L*Bt, 1)
    iota_v = lax.broadcasted_iota(jnp.int32, (L * Bt, Vt), 1)
    onehot1 = (tok == iota_v).astype(jnp.bfloat16)                  # (L*Bt, Vt)
    xi_ref[...] = (jnp.dot(onehot1, emb_proj_ref[...],
                           preferred_element_type=jnp.float32) + bias1)

    # Serial tanh recurrence; bf16 hidden states land in hbf_ref for the
    # batched W_out projection below (xi stays f32, h storage is bf16).
    h_bf = jnp.zeros((Bt, H), jnp.bfloat16)
    for t in range(L):
        xi_t = xi_ref[pl.ds(t * Bt, Bt), :]
        h = jnp.tanh(xi_t + jnp.dot(h_bf, whh,
                                    preferred_element_type=jnp.float32))
        h_bf = h.astype(jnp.bfloat16)
        hbf_ref[pl.ds(t * Bt, Bt), :] = h_bf

    # One batched output projection + one dense slab store for all L steps.
    logits1 = (jnp.dot(hbf_ref[...], wout_ref[...],
                       preferred_element_type=jnp.float32) + bout)
    out_ref[pl.ds(0, L * Bt), :] = logits1

    # ---- phase 0: autoregressive greedy decode ------------------------------
    iota_v_b = lax.broadcasted_iota(jnp.int32, (Bt, Vt), 1)            # hoisted
    lane_f = lax.broadcasted_iota(jnp.int32, (Bt, Vo), 1).astype(jnp.float32)
    tok_t = jnp.full((Bt, 1), start_token, dtype=jnp.int32)            # pad row
    for t in range(L):
        # TODO(synk): replace onehot @ emb_proj with an SMEM-indexed row gather
        # for realistic vocab sizes (this matmul sits on the serial argmax
        # feedback critical path).
        onehot = (tok_t == iota_v_b).astype(jnp.bfloat16)
        x_proj = jnp.dot(onehot, emb_proj_ref[...],
                         preferred_element_type=jnp.float32)
        h = jnp.tanh(x_proj + bias0
                     + jnp.dot(h_bf, whh, preferred_element_type=jnp.float32))
        h_bf = h.astype(jnp.bfloat16)
        logits = (jnp.dot(h_bf, wout_ref[...],
                          preferred_element_type=jnp.float32) + bout)
        out_ref[pl.ds((L + t) * Bt, Bt), :] = logits        # dense (8,128) tile
        if t + 1 < L:
            # Greedy argmax with first-max tie-breaking (== torch.argmax),
            # built from max / where / min reductions only.
            m = jnp.max(logits, axis=-1, keepdims=True)
            tok_t = jnp.min(jnp.where(logits == m, lane_f, float(Vo)),
                            axis=-1, keepdims=True).astype(jnp.int32)


def init_params(key, vocab_size, hidden_size):
    """Deterministic synthetic parameters matching RNN_AR.__init__ shapes."""
    V, H = vocab_size, hidden_size
    E = H                                   # embed_size defaults to hidden_size
    keys = jax.random.split(key, 8)
    s = 1.0 / jnp.sqrt(jnp.float32(H))

    emb = 0.5 * jax.random.normal(keys[0], (V + 1, E), jnp.float32)
    emb = emb.at[V].set(0.0)                # padding_idx = vocab_size
    phase = 0.5 * jax.random.normal(keys[1], (2, E), jnp.float32)
    w_ih = jax.random.uniform(keys[2], (2 * E, H), jnp.float32, -s, s)  # W_ih^T
    w_hh = jax.random.uniform(keys[3], (H, H), jnp.float32, -s, s)      # W_hh^T
    b_ih = jax.random.uniform(keys[4], (H,), jnp.float32, -s, s)
    b_hh = jax.random.uniform(keys[5], (H,), jnp.float32, -s, s)
    w_out = jax.random.uniform(keys[6], (H, V), jnp.float32, -s, s)     # W_out^T
    b_out = jax.random.uniform(keys[7], (V,), jnp.float32, -s, s)

    return dict(
        emb=emb,
        phase=phase,
        wih=w_ih,
        whh=w_hh,
        b=(b_ih + b_hh).reshape(1, H),
        wout=w_out,
        bout=b_out.reshape(1, V),
    )


def _round_up(x, m):
    return (x + m - 1) // m * m


@jax.jit
def rnn_ar_forward(tokens, params):
    """tokens: (B, L) int32 token ids. Returns logits (B, 2*L, vocab_size)."""
    B, L = tokens.shape
    emb = params["emb"]                                   # (V+1, E) f32
    Vp, E = emb.shape
    V = Vp - 1
    whh = params["whh"]                                   # (H, H)   W_hh^T
    H = whh.shape[0]
    wih_e, wih_p = params["wih"][:E], params["wih"][E:]   # (E, H) each
    b = params["b"]                                       # (1, H)  b_ih + b_hh
    phase = params["phase"]                               # (2, E)

    # One-time algebraic prework: fuse embedding with W_ih_e; fold the constant
    # phase contribution + both biases into per-phase (1, H) vectors.
    emb_proj = jnp.dot(emb, wih_e)                        # (V+1, H) f32
    bias1 = jnp.dot(phase[1:2], wih_p) + b                # (1, H)
    bias0 = jnp.dot(phase[0:1], wih_p) + b                # (1, H)

    # Pad to hardware tiles: batch -> 8-row tiles, H / V -> 128 lanes.
    Bt = 8
    B_pad = _round_up(B, Bt)
    B_tiles = B_pad // Bt
    H_pad = _round_up(H, 128)
    Vt = _round_up(V + 1, 128)       # one-hot / embedding-table width
    Vo = _round_up(V, 128)           # logits width

    emb_proj_p = jnp.zeros((Vt, H_pad), jnp.bfloat16)
    emb_proj_p = emb_proj_p.at[:V + 1, :H].set(emb_proj.astype(jnp.bfloat16))
    whh_p = jnp.zeros((H_pad, H_pad), jnp.bfloat16)
    whh_p = whh_p.at[:H, :H].set(whh.astype(jnp.bfloat16))
    wout_p = jnp.zeros((H_pad, Vo), jnp.bfloat16)
    wout_p = wout_p.at[:H, :V].set(params["wout"].astype(jnp.bfloat16))
    bias1_p = jnp.zeros((1, H_pad), jnp.float32).at[:, :H].set(bias1)
    bias0_p = jnp.zeros((1, H_pad), jnp.float32).at[:, :H].set(bias0)
    # Padded logit columns get a huge negative bias so greedy argmax can never
    # pick them (any valid finite logit wins).
    bout_p = jnp.full((1, Vo), -1e30, jnp.float32).at[:, :V].set(params["bout"])

    # Time-major tokens grouped per 8-row batch tile; padded batch rows use the
    # padding token (= V, zero embedding). Row order inside a tile: t*Bt + b.
    tok_tm = jnp.full((L, B_pad), V, jnp.int32)
    tok_tm = tok_tm.at[:, :B].set(tokens.T.astype(jnp.int32))
    tok_col = (tok_tm.reshape(L, B_tiles, Bt).transpose(1, 0, 2)
               .reshape(B_tiles, L * Bt, 1))

    kernel = functools.partial(rnn_ar_kernel, seq_len=L, batch_tile=Bt,
                               start_token=V)

    out = pl.pallas_call(
        kernel,
        out_shape=jax.ShapeDtypeStruct((B_tiles, 2 * L * Bt, Vo), jnp.float32),
        grid=(B_tiles,),
        in_specs=[
            pl.BlockSpec((None, L * Bt, 1), lambda i: (i, 0, 0)),   # tokens
            pl.BlockSpec((Vt, H_pad), lambda i: (0, 0)),            # emb_proj
            pl.BlockSpec((H_pad, H_pad), lambda i: (0, 0)),         # W_hh^T
            pl.BlockSpec((1, H_pad), lambda i: (0, 0)),             # bias1
            pl.BlockSpec((1, H_pad), lambda i: (0, 0)),             # bias0
            pl.BlockSpec((H_pad, Vo), lambda i: (0, 0)),            # W_out^T
            pl.BlockSpec((1, Vo), lambda i: (0, 0)),                # b_out
        ],
        out_specs=pl.BlockSpec((None, 2 * L * Bt, Vo), lambda i: (i, 0, 0)),
        scratch_shapes=[pltpu.VMEM((L * Bt, H_pad), jnp.float32),
                        pltpu.VMEM((L * Bt, H_pad), jnp.bfloat16)],
        compiler_params=pltpu.CompilerParams(
            dimension_semantics=("parallel",),
            vmem_limit_bytes=32 * 1024 * 1024),
    )(tok_col, emb_proj_p, whh_p, bias1_p, bias0_p, wout_p, bout_p)

    # Time-major tile rows -> batch-first logits; strip batch / logit padding.
    out = out.reshape(B_tiles, 2 * L, Bt, Vo).transpose(0, 2, 1, 3)
    out = out.reshape(B_pad, 2 * L, Vo)
    return out[:B, :, :V]


if __name__ == "__main__":
    vocab_size, hidden_size = 16, 32
    batch, length = 2, 8

    key = jax.random.PRNGKey(0)
    pkey, tkey = jax.random.split(key)
    params = init_params(pkey, vocab_size, hidden_size)
    tokens = jax.random.randint(tkey, (batch, length), 0, vocab_size,
                                dtype=jnp.int32)

    out = rnn_ar_forward(tokens, params)
    out = jax.block_until_ready(out)
    assert out.shape == (batch, 2 * length, vocab_size), out.shape
    assert bool(jnp.all(jnp.isfinite(out)))
    print("KERNEL_OK")
</pallas_src>

<mosaic_0001>
module attributes {stable_mosaic.version = 11 : i64} {
  func.func @rnn_ar_kernel(%arg0: i32, %arg1: memref<1x64x1xi32, #tpu.memory_space<vmem>>, %arg2: memref<128x128xbf16, #tpu.memory_space<vmem>>, %arg3: memref<128x128xbf16, #tpu.memory_space<vmem>>, %arg4: memref<1x128xf32, #tpu.memory_space<vmem>>, %arg5: memref<1x128xf32, #tpu.memory_space<vmem>>, %arg6: memref<128x128xbf16, #tpu.memory_space<vmem>>, %arg7: memref<1x128xf32, #tpu.memory_space<vmem>>, %arg8: memref<1x128x128xf32, #tpu.memory_space<vmem>>, %arg9: memref<64x128xf32, #tpu.memory_space<vmem>>, %arg10: memref<64x128xbf16, #tpu.memory_space<vmem>>) attributes {dimension_semantics = [#tpu.dimension_semantics<parallel>], iteration_bounds = array<i64: 1>, scalar_prefetch = 0 : i64, scratch_operands = 2 : i64, tpu.core_type = #tpu.core_type<tc>, window_params = [{transform_indices = @transform_0, window_bounds = array<i64: 1, 64, 1>}, {pipeline_mode = #tpu.pipeline_mode<synchronous>, transform_indices = @transform_1, window_bounds = array<i64: 128, 128>}, {pipeline_mode = #tpu.pipeline_mode<synchronous>, transform_indices = @transform_2, window_bounds = array<i64: 128, 128>}, {pipeline_mode = #tpu.pipeline_mode<synchronous>, transform_indices = @transform_3, window_bounds = array<i64: 1, 128>}, {pipeline_mode = #tpu.pipeline_mode<synchronous>, transform_indices = @transform_4, window_bounds = array<i64: 1, 128>}, {pipeline_mode = #tpu.pipeline_mode<synchronous>, transform_indices = @transform_5, window_bounds = array<i64: 128, 128>}, {pipeline_mode = #tpu.pipeline_mode<synchronous>, transform_indices = @transform_6, window_bounds = array<i64: 1, 128>}, {transform_indices = @transform_7, window_bounds = array<i64: 1, 128, 128>}]} {
    %c0 = arith.constant 0 : index
    %c0_0 = arith.constant 0 : index
    %0 = vector.load %arg3[%c0, %c0_0] : memref<128x128xbf16, #tpu.memory_space<vmem>>, vector<128x128xbf16>
    %c0_1 = arith.constant 0 : index
    %c0_2 = arith.constant 0 : index
    %1 = vector.load %arg4[%c0_1, %c0_2] : memref<1x128xf32, #tpu.memory_space<vmem>>, vector<1x128xf32>
    %c0_3 = arith.constant 0 : index
    %c0_4 = arith.constant 0 : index
    %2 = vector.load %arg5[%c0_3, %c0_4] : memref<1x128xf32, #tpu.memory_space<vmem>>, vector<1x128xf32>
    %c0_5 = arith.constant 0 : index
    %c0_6 = arith.constant 0 : index
    %3 = vector.load %arg7[%c0_5, %c0_6] : memref<1x128xf32, #tpu.memory_space<vmem>>, vector<1x128xf32>
    %c0_7 = arith.constant 0 : index
    %c0_8 = arith.constant 0 : index
    %c0_9 = arith.constant 0 : index
    %4 = vector.load %arg1[%c0_7, %c0_8, %c0_9] : memref<1x64x1xi32, #tpu.memory_space<vmem>>, vector<1x64x1xi32>
    %5 = vector.shape_cast %4 : vector<1x64x1xi32> to vector<64x1xi32>
    %6 = tpu.iota {dimensions = array<i32: 1>} : vector<64x128xi32>
    %7 = vector.broadcast %5 : vector<64x1xi32> to vector<64x128xi32>
    %8 = arith.cmpi eq, %7, %6 : vector<64x128xi32>
    %9 = arith.extui %8 : vector<64x128xi1> to vector<64x128xi32>
    %10 = arith.sitofp %9 : vector<64x128xi32> to vector<64x128xf32>
    %11 = arith.truncf %10 : vector<64x128xf32> to vector<64x128xbf16>
    %c0_10 = arith.constant 0 : index
    %c0_11 = arith.constant 0 : index
    %12 = vector.load %arg2[%c0_10, %c0_11] : memref<128x128xbf16, #tpu.memory_space<vmem>>, vector<128x128xbf16>
    %cst = arith.constant dense<0.000000e+00> : vector<64x128xf32>
    %13 = tpu.matmul %11, %12, %cst {dimension_numbers = #tpu.dot_dimension_numbers<[1], [0], [0], [1], [0, 0, 1, 1], [], []>} : vector<64x128xbf16>, vector<128x128xbf16>, vector<64x128xf32> -> vector<64x128xf32>
    %14 = vector.broadcast %1 : vector<1x128xf32> to vector<64x128xf32>
    %15 = arith.addf %13, %14 : vector<64x128xf32>
    %c0_12 = arith.constant 0 : index
    %c0_13 = arith.constant 0 : index
    %16 = vector.load %arg9[%c0_12, %c0_13] : memref<64x128xf32, #tpu.memory_space<vmem>>, vector<64x128xf32>
    tpu.vector_store %arg9[%c0_12, %c0_13], %15 {strides = array<i32>} : memref<64x128xf32, #tpu.memory_space<vmem>>, vector<64x128xf32>,
    %cst_14 = arith.constant 0.000000e+00 : bf16
    %17 = vector.broadcast %cst_14 : bf16 to vector<8x128xbf16>
    %c0_15 = arith.constant 0 : index
    %c0_16 = arith.constant 0 : index
    %18 = vector.load %arg9[%c0_15, %c0_16] : memref<64x128xf32, #tpu.memory_space<vmem>>, vector<8x128xf32>
    %cst_17 = arith.constant dense<0.000000e+00> : vector<8x128xf32>
    %19 = tpu.matmul %17, %0, %cst_17 {dimension_numbers = #tpu.dot_dimension_numbers<[1], [0], [0], [1], [0, 0, 1, 1], [], []>} : vector<8x128xbf16>, vector<128x128xbf16>, vector<8x128xf32> -> vector<8x128xf32>
    %20 = arith.addf %18, %19 : vector<8x128xf32>
    %21 = math.tanh %20 : vector<8x128xf32>
    %22 = arith.truncf %21 : vector<8x128xf32> to vector<8x128xbf16>
    %c0_18 = arith.constant 0 : index
    %c0_19 = arith.constant 0 : index
    %23 = vector.load %arg10[%c0_18, %c0_19] : memref<64x128xbf16, #tpu.memory_space<vmem>>, vector<8x128xbf16>
    tpu.vector_store %arg10[%c0_18, %c0_19], %22 {strides = array<i32>} : memref<64x128xbf16, #tpu.memory_space<vmem>>, vector<8x128xbf16>,
    %c8 = arith.constant 8 : index
    %c0_20 = arith.constant 0 : index
    %24 = vector.load %arg9[%c8, %c0_20] : memref<64x128xf32, #tpu.memory_space<vmem>>, vector<8x128xf32>
    %cst_21 = arith.constant dense<0.000000e+00> : vector<8x128xf32>
    %25 = tpu.matmul %22, %0, %cst_21 {dimension_numbers = #tpu.dot_dimension_numbers<[1], [0], [0], [1], [0, 0, 1, 1], [], []>} : vector<8x128xbf16>, vector<128x128xbf16>, vector<8x128xf32> -> vector<8x128xf32>
    %26 = arith.addf %24, %25 : vector<8x128xf32>
    %27 = math.tanh %26 : vector<8x128xf32>
    %28 = arith.truncf %27 : vector<8x128xf32> to vector<8x128xbf16>
    %c8_22 = arith.constant 8 : index
    %c0_23 = arith.constant 0 : index
    %29 = vector.load %arg10[%c8_22, %c0_23] : memref<64x128xbf16, #tpu.memory_space<vmem>>, vector<8x128xbf16>
    tpu.vector_store %arg10[%c8_22, %c0_23], %28 {strides = array<i32>} : memref<64x128xbf16, #tpu.memory_space<vmem>>, vector<8x128xbf16>,
    %c16 = arith.constant 16 : index
    %c0_24 = arith.constant 0 : index
    %30 = vector.load %arg9[%c16, %c0_24] : memref<64x128xf32, #tpu.memory_space<vmem>>, vector<8x128xf32>
    %cst_25 = arith.constant dense<0.000000e+00> : vector<8x128xf32>
    %31 = tpu.matmul %28, %0, %cst_25 {dimension_numbers = #tpu.dot_dimension_numbers<[1], [0], [0], [1], [0, 0, 1, 1], [], []>} : vector<8x128xbf16>, vector<128x128xbf16>, vector<8x128xf32> -> vector<8x128xf32>
    %32 = arith.addf %30, %31 : vector<8x128xf32>
    %33 = math.tanh %32 : vector<8x128xf32>
    %34 = arith.truncf %33 : vector<8x128xf32> to vector<8x128xbf16>
    %c16_26 = arith.constant 16 : index
    %c0_27 = arith.constant 0 : index
    %35 = vector.load %arg10[%c16_26, %c0_27] : memref<64x128xbf16, #tpu.memory_space<vmem>>, vector<8x128xbf16>
    tpu.vector_store %arg10[%c16_26, %c0_27], %34 {strides = array<i32>} : memref<64x128xbf16, #tpu.memory_space<vmem>>, vector<8x128xbf16>,
    %c24 = arith.constant 24 : index
    %c0_28 = arith.constant 0 : index
    %36 = vector.load %arg9[%c24, %c0_28] : memref<64x128xf32, #tpu.memory_space<vmem>>, vector<8x128xf32>
    %cst_29 = arith.constant dense<0.000000e+00> : vector<8x128xf32>
    %37 = tpu.matmul %34, %0, %cst_29 {dimension_numbers = #tpu.dot_dimension_numbers<[1], [0], [0], [1], [0, 0, 1, 1], [], []>} : vector<8x128xbf16>, vector<128x128xbf16>, vector<8x128xf32> -> vector<8x128xf32>
    %38 = arith.addf %36, %37 : vector<8x128xf32>
    %39 = math.tanh %38 : vector<8x128xf32>
    %40 = arith.truncf %39 : vector<8x128xf32> to vector<8x128xbf16>
    %c24_30 = arith.constant 24 : index
    %c0_31 = arith.constant 0 : index
    %41 = vector.load %arg10[%c24_30, %c0_31] : memref<64x128xbf16, #tpu.memory_space<vmem>>, vector<8x128xbf16>
    tpu.vector_store %arg10[%c24_30, %c0_31], %40 {strides = array<i32>} : memref<64x128xbf16, #tpu.memory_space<vmem>>, vector<8x128xbf16>,
    %c32 = arith.constant 32 : index
    %c0_32 = arith.constant 0 : index
    %42 = vector.load %arg9[%c32, %c0_32] : memref<64x128xf32, #tpu.memory_space<vmem>>, vector<8x128xf32>
    %cst_33 = arith.constant dense<0.000000e+00> : vector<8x128xf32>
    %43 = tpu.matmul %40, %0, %cst_33 {dimension_numbers = #tpu.dot_dimension_numbers<[1], [0], [0], [1], [0, 0, 1, 1], [], []>} : vector<8x128xbf16>, vector<128x128xbf16>, vector<8x128xf32> -> vector<8x128xf32>
    %44 = arith.addf %42, %43 : vector<8x128xf32>
    %45 = math.tanh %44 : vector<8x128xf32>
    %46 = arith.truncf %45 : vector<8x128xf32> to vector<8x128xbf16>
    %c32_34 = arith.constant 32 : index
    %c0_35 = arith.constant 0 : index
    %47 = vector.load %arg10[%c32_34, %c0_35] : memref<64x128xbf16, #tpu.memory_space<vmem>>, vector<8x128xbf16>
    tpu.vector_store %arg10[%c32_34, %c0_35], %46 {strides = array<i32>} : memref<64x128xbf16, #tpu.memory_space<vmem>>, vector<8x128xbf16>,
    %c40 = arith.constant 40 : index
    %c0_36 = arith.constant 0 : index
    %48 = vector.load %arg9[%c40, %c0_36] : memref<64x128xf32, #tpu.memory_space<vmem>>, vector<8x128xf32>
    %cst_37 = arith.constant dense<0.000000e+00> : vector<8x128xf32>
    %49 = tpu.matmul %46, %0, %cst_37 {dimension_numbers = #tpu.dot_dimension_numbers<[1], [0], [0], [1], [0, 0, 1, 1], [], []>} : vector<8x128xbf16>, vector<128x128xbf16>, vector<8x128xf32> -> vector<8x128xf32>
    %50 = arith.addf %48, %49 : vector<8x128xf32>
    %51 = math.tanh %50 : vector<8x128xf32>
    %52 = arith.truncf %51 : vector<8x128xf32> to vector<8x128xbf16>
    %c40_38 = arith.constant 40 : index
    %c0_39 = arith.constant 0 : index
    %53 = vector.load %arg10[%c40_38, %c0_39] : memref<64x128xbf16, #tpu.memory_space<vmem>>, vector<8x128xbf16>
    tpu.vector_store %arg10[%c40_38, %c0_39], %52 {strides = array<i32>} : memref<64x128xbf16, #tpu.memory_space<vmem>>, vector<8x128xbf16>,
    %c48 = arith.constant 48 : index
    %c0_40 = arith.constant 0 : index
    %54 = vector.load %arg9[%c48, %c0_40] : memref<64x128xf32, #tpu.memory_space<vmem>>, vector<8x128xf32>
    %cst_41 = arith.constant dense<0.000000e+00> : vector<8x128xf32>
    %55 = tpu.matmul %52, %0, %cst_41 {dimension_numbers = #tpu.dot_dimension_numbers<[1], [0], [0], [1], [0, 0, 1, 1], [], []>} : vector<8x128xbf16>, vector<128x128xbf16>, vector<8x128xf32> -> vector<8x128xf32>
    %56 = arith.addf %54, %55 : vector<8x128xf32>
    %57 = math.tanh %56 : vector<8x128xf32>
    %58 = arith.truncf %57 : vector<8x128xf32> to vector<8x128xbf16>
    %c48_42 = arith.constant 48 : index
    %c0_43 = arith.constant 0 : index
    %59 = vector.load %arg10[%c48_42, %c0_43] : memref<64x128xbf16, #tpu.memory_space<vmem>>, vector<8x128xbf16>
    tpu.vector_store %arg10[%c48_42, %c0_43], %58 {strides = array<i32>} : memref<64x128xbf16, #tpu.memory_space<vmem>>, vector<8x128xbf16>,
    %c56 = arith.constant 56 : index
    %c0_44 = arith.constant 0 : index
    %60 = vector.load %arg9[%c56, %c0_44] : memref<64x128xf32, #tpu.memory_space<vmem>>, vector<8x128xf32>
    %cst_45 = arith.constant dense<0.000000e+00> : vector<8x128xf32>
    %61 = tpu.matmul %58, %0, %cst_45 {dimension_numbers = #tpu.dot_dimension_numbers<[1], [0], [0], [1], [0, 0, 1, 1], [], []>} : vector<8x128xbf16>, vector<128x128xbf16>, vector<8x128xf32> -> vector<8x128xf32>
    %62 = arith.addf %60, %61 : vector<8x128xf32>
    %63 = math.tanh %62 : vector<8x128xf32>
    %64 = arith.truncf %63 : vector<8x128xf32> to vector<8x128xbf16>
    %c56_46 = arith.constant 56 : index
    %c0_47 = arith.constant 0 : index
    %65 = vector.load %arg10[%c56_46, %c0_47] : memref<64x128xbf16, #tpu.memory_space<vmem>>, vector<8x128xbf16>
    tpu.vector_store %arg10[%c56_46, %c0_47], %64 {strides = array<i32>} : memref<64x128xbf16, #tpu.memory_space<vmem>>, vector<8x128xbf16>,
    %c0_48 = arith.constant 0 : index
    %c0_49 = arith.constant 0 : index
    %66 = vector.load %arg10[%c0_48, %c0_49] : memref<64x128xbf16, #tpu.memory_space<vmem>>, vector<64x128xbf16>
    %c0_50 = arith.constant 0 : index
    %c0_51 = arith.constant 0 : index
    %67 = vector.load %arg6[%c0_50, %c0_51] : memref<128x128xbf16, #tpu.memory_space<vmem>>, vector<128x128xbf16>
    %cst_52 = arith.constant dense<0.000000e+00> : vector<64x128xf32>
    %68 = tpu.matmul %66, %67, %cst_52 {dimension_numbers = #tpu.dot_dimension_numbers<[1], [0], [0], [1], [0, 0, 1, 1], [], []>} : vector<64x128xbf16>, vector<128x128xbf16>, vector<64x128xf32> -> vector<64x128xf32>
    %69 = vector.broadcast %3 : vector<1x128xf32> to vector<64x128xf32>
    %70 = arith.addf %68, %69 : vector<64x128xf32>
    %c0_53 = arith.constant 0 : index
    %c0_54 = arith.constant 0 : index
    %c0_55 = arith.constant 0 : index
    %71 = vector.load %arg8[%c0_53, %c0_54, %c0_55] : memref<1x128x128xf32, #tpu.memory_space<vmem>>, vector<1x64x128xf32>
    %72 = vector.shape_cast %71 : vector<1x64x128xf32> to vector<64x128xf32>
    %73 = vector.shape_cast %70 : vector<64x128xf32> to vector<1x64x128xf32>
    tpu.vector_store %arg8[%c0_53, %c0_54, %c0_55], %73 {strides = array<i32>} : memref<1x128x128xf32, #tpu.memory_space<vmem>>, vector<1x64x128xf32>,
    %74 = tpu.iota {dimensions = array<i32: 1>} : vector<8x128xi32>
    %75 = tpu.iota {dimensions = array<i32: 1>} : vector<8x128xi32>
    %76 = arith.sitofp %75 : vector<8x128xi32> to vector<8x128xf32>
    %c16_i32 = arith.constant 16 : i32
    %77 = vector.broadcast %c16_i32 : i32 to vector<8x1xi32>
    %78 = vector.broadcast %77 : vector<8x1xi32> to vector<8x128xi32>
    %79 = arith.cmpi eq, %78, %74 : vector<8x128xi32>
    %80 = arith.extui %79 : vector<8x128xi1> to vector<8x128xi32>
    %81 = arith.sitofp %80 : vector<8x128xi32> to vector<8x128xf32>
    %82 = arith.truncf %81 : vector<8x128xf32> to vector<8x128xbf16>
    %c0_56 = arith.constant 0 : index
    %c0_57 = arith.constant 0 : index
    %83 = vector.load %arg2[%c0_56, %c0_57] : memref<128x128xbf16, #tpu.memory_space<vmem>>, vector<128x128xbf16>
    %cst_58 = arith.constant dense<0.000000e+00> : vector<8x128xf32>
    %84 = tpu.matmul %82, %83, %cst_58 {dimension_numbers = #tpu.dot_dimension_numbers<[1], [0], [0], [1], [0, 0, 1, 1], [], []>} : vector<8x128xbf16>, vector<128x128xbf16>, vector<8x128xf32> -> vector<8x128xf32>
    %85 = vector.broadcast %2 : vector<1x128xf32> to vector<8x128xf32>
    %86 = arith.addf %84, %85 : vector<8x128xf32>
    %cst_59 = arith.constant dense<0.000000e+00> : vector<8x128xf32>
    %87 = tpu.matmul %64, %0, %cst_59 {dimension_numbers = #tpu.dot_dimension_numbers<[1], [0], [0], [1], [0, 0, 1, 1], [], []>} : vector<8x128xbf16>, vector<128x128xbf16>, vector<8x128xf32> -> vector<8x128xf32>
    %88 = arith.addf %86, %87 : vector<8x128xf32>
    %89 = math.tanh %88 : vector<8x128xf32>
    %90 = arith.truncf %89 : vector<8x128xf32> to vector<8x128xbf16>
    %c0_60 = arith.constant 0 : index
    %c0_61 = arith.constant 0 : index
    %91 = vector.load %arg6[%c0_60, %c0_61] : memref<128x128xbf16, #tpu.memory_space<vmem>>, vector<128x128xbf16>
    %cst_62 = arith.constant dense<0.000000e+00> : vector<8x128xf32>
    %92 = tpu.matmul %90, %91, %cst_62 {dimension_numbers = #tpu.dot_dimension_numbers<[1], [0], [0], [1], [0, 0, 1, 1], [], []>} : vector<8x128xbf16>, vector<128x128xbf16>, vector<8x128xf32> -> vector<8x128xf32>
    %93 = vector.broadcast %3 : vector<1x128xf32> to vector<8x128xf32>
    %94 = arith.addf %92, %93 : vector<8x128xf32>
    %c0_63 = arith.constant 0 : index
    %c64 = arith.constant 64 : index
    %c0_64 = arith.constant 0 : index
    %95 = vector.load %arg8[%c0_63, %c64, %c0_64] : memref<1x128x128xf32, #tpu.memory_space<vmem>>, vector<1x8x128xf32>
    %96 = vector.shape_cast %95 : vector<1x8x128xf32> to vector<8x128xf32>
    %97 = vector.shape_cast %94 : vector<8x128xf32> to vector<1x8x128xf32>
    tpu.vector_store %arg8[%c0_63, %c64, %c0_64], %97 {strides = array<i32>} : memref<1x128x128xf32, #tpu.memory_space<vmem>>, vector<1x8x128xf32>,
    %cst_65 = arith.constant dense<0xFF800000> : vector<8xf32>
    %98 = vector.multi_reduction <maximumf>, %94, %cst_65 [1] : vector<8x128xf32> to vector<8xf32>
    %99 = vector.shape_cast %98 : vector<8xf32> to vector<8x1xf32>
    %100 = vector.broadcast %99 : vector<8x1xf32> to vector<8x128xf32>
    %101 = arith.cmpf oeq, %94, %100 : vector<8x128xf32>
    %cst_66 = arith.constant 1.280000e+02 : f32
    %102 = vector.broadcast %cst_66 : f32 to vector<8x128xf32>
    %103 = arith.select %101, %76, %102 : vector<8x128xi1>, vector<8x128xf32>
    %cst_67 = arith.constant dense<0x7F800000> : vector<8xf32>
    %104 = vector.multi_reduction <minimumf>, %103, %cst_67 [1] : vector<8x128xf32> to vector<8xf32>
    %105 = vector.shape_cast %104 : vector<8xf32> to vector<8x1xf32>
    %106 = arith.fptosi %105 : vector<8x1xf32> to vector<8x1xi32>
    %107 = vector.broadcast %106 : vector<8x1xi32> to vector<8x128xi32>
    %108 = arith.cmpi eq, %107, %74 : vector<8x128xi32>
    %109 = arith.extui %108 : vector<8x128xi1> to vector<8x128xi32>
    %110 = arith.sitofp %109 : vector<8x128xi32> to vector<8x128xf32>
    %111 = arith.truncf %110 : vector<8x128xf32> to vector<8x128xbf16>
    %c0_68 = arith.constant 0 : index
    %c0_69 = arith.constant 0 : index
    %112 = vector.load %arg2[%c0_68, %c0_69] : memref<128x128xbf16, #tpu.memory_space<vmem>>, vector<128x128xbf16>
    %cst_70 = arith.constant dense<0.000000e+00> : vector<8x128xf32>
    %113 = tpu.matmul %111, %112, %cst_70 {dimension_numbers = #tpu.dot_dimension_numbers<[1], [0], [0], [1], [0, 0, 1, 1], [], []>} : vector<8x128xbf16>, vector<128x128xbf16>, vector<8x128xf32> -> vector<8x128xf32>
    %114 = vector.broadcast %2 : vector<1x128xf32> to vector<8x128xf32>
    %115 = arith.addf %113, %114 : vector<8x128xf32>
    %cst_71 = arith.constant dense<0.000000e+00> : vector<8x128xf32>
    %116 = tpu.matmul %90, %0, %cst_71 {dimension_numbers = #tpu.dot_dimension_numbers<[1], [0], [0], [1], [0, 0, 1, 1], [], []>} : vector<8x128xbf16>, vector<128x128xbf16>, vector<8x128xf32> -> vector<8x128xf32>
    %117 = arith.addf %115, %116 : vector<8x128xf32>
    %118 = math.tanh %117 : vector<8x128xf32>
    %119 = arith.truncf %118 : vector<8x128xf32> to vector<8x128xbf16>
    %c0_72 = arith.constant 0 : index
    %c0_73 = arith.constant 0 : index
    %120 = vector.load %arg6[%c0_72, %c0_73] : memref<128x128xbf16, #tpu.memory_space<vmem>>, vector<128x128xbf16>
    %cst_74 = arith.constant dense<0.000000e+00> : vector<8x128xf32>
    %121 = tpu.matmul %119, %120, %cst_74 {dimension_numbers = #tpu.dot_dimension_numbers<[1], [0], [0], [1], [0, 0, 1, 1], [], []>} : vector<8x128xbf16>, vector<128x128xbf16>, vector<8x128xf32> -> vector<8x128xf32>
    %122 = vector.broadcast %3 : vector<1x128xf32> to vector<8x128xf32>
    %123 = arith.addf %121, %122 : vector<8x128xf32>
    %c0_75 = arith.constant 0 : index
    %c72 = arith.constant 72 : index
    %c0_76 = arith.constant 0 : index
    %124 = vector.load %arg8[%c0_75, %c72, %c0_76] : memref<1x128x128xf32, #tpu.memory_space<vmem>>, vector<1x8x128xf32>
    %125 = vector.shape_cast %124 : vector<1x8x128xf32> to vector<8x128xf32>
    %126 = vector.shape_cast %123 : vector<8x128xf32> to vector<1x8x128xf32>
    tpu.vector_store %arg8[%c0_75, %c72, %c0_76], %126 {strides = array<i32>} : memref<1x128x128xf32, #tpu.memory_space<vmem>>, vector<1x8x128xf32>,
    %cst_77 = arith.constant dense<0xFF800000> : vector<8xf32>
    %127 = vector.multi_reduction <maximumf>, %123, %cst_77 [1] : vector<8x128xf32> to vector<8xf32>
    %128 = vector.shape_cast %127 : vector<8xf32> to vector<8x1xf32>
    %129 = vector.broadcast %128 : vector<8x1xf32> to vector<8x128xf32>
    %130 = arith.cmpf oeq, %123, %129 : vector<8x128xf32>
    %cst_78 = arith.constant 1.280000e+02 : f32
    %131 = vector.broadcast %cst_78 : f32 to vector<8x128xf32>
    %132 = arith.select %130, %76, %131 : vector<8x128xi1>, vector<8x128xf32>
    %cst_79 = arith.constant dense<0x7F800000> : vector<8xf32>
    %133 = vector.multi_reduction <minimumf>, %132, %cst_79 [1] : vector<8x128xf32> to vector<8xf32>
    %134 = vector.shape_cast %133 : vector<8xf32> to vector<8x1xf32>
    %135 = arith.fptosi %134 : vector<8x1xf32> to vector<8x1xi32>
    %136 = vector.broadcast %135 : vector<8x1xi32> to vector<8x128xi32>
    %137 = arith.cmpi eq, %136, %74 : vector<8x128xi32>
    %138 = arith.extui %137 : vector<8x128xi1> to vector<8x128xi32>
    %139 = arith.sitofp %138 : vector<8x128xi32> to vector<8x128xf32>
    %140 = arith.truncf %139 : vector<8x128xf32> to vector<8x128xbf16>
    %c0_80 = arith.constant 0 : index
    %c0_81 = arith.constant 0 : index
    %141 = vector.load %arg2[%c0_80, %c0_81] : memref<128x128xbf16, #tpu.memory_space<vmem>>, vector<128x128xbf16>
    %cst_82 = arith.constant dense<0.000000e+00> : vector<8x128xf32>
    %142 = tpu.matmul %140, %141, %cst_82 {dimension_numbers = #tpu.dot_dimension_numbers<[1], [0], [0], [1], [0, 0, 1, 1], [], []>} : vector<8x128xbf16>, vector<128x128xbf16>, vector<8x128xf32> -> vector<8x128xf32>
    %143 = vector.broadcast %2 : vector<1x128xf32> to vector<8x128xf32>
    %144 = arith.addf %142, %143 : vector<8x128xf32>
    %cst_83 = arith.constant dense<0.000000e+00> : vector<8x128xf32>
    %145 = tpu.matmul %119, %0, %cst_83 {dimension_numbers = #tpu.dot_dimension_numbers<[1], [0], [0], [1], [0, 0, 1, 1], [], []>} : vector<8x128xbf16>, vector<128x128xbf16>, vector<8x128xf32> -> vector<8x128xf32>
    %146 = arith.addf %144, %145 : vector<8x128xf32>
    %147 = math.tanh %146 : vector<8x128xf32>
    %148 = arith.truncf %147 : vector<8x128xf32> to vector<8x128xbf16>
    %c0_84 = arith.constant 0 : index
    %c0_85 = arith.constant 0 : index
    %149 = vector.load %arg6[%c0_84, %c0_85] : memref<128x128xbf16, #tpu.memory_space<vmem>>, vector<128x128xbf16>
    %cst_86 = arith.constant dense<0.000000e+00> : vector<8x128xf32>
    %150 = tpu.matmul %148, %149, %cst_86 {dimension_numbers = #tpu.dot_dimension_numbers<[1], [0], [0], [1], [0, 0, 1, 1], [], []>} : vector<8x128xbf16>, vector<128x128xbf16>, vector<8x128xf32> -> vector<8x128xf32>
    %151 = vector.broadcast %3 : vector<1x128xf32> to vector<8x128xf32>
    %152 = arith.addf %150, %151 : vector<8x128xf32>
    %c0_87 = arith.constant 0 : index
    %c80 = arith.constant 80 : index
    %c0_88 = arith.constant 0 : index
    %153 = vector.load %arg8[%c0_87, %c80, %c0_88] : memref<1x128x128xf32, #tpu.memory_space<vmem>>, vector<1x8x128xf32>
    %154 = vector.shape_cast %153 : vector<1x8x128xf32> to vector<8x128xf32>
    %155 = vector.shape_cast %152 : vector<8x128xf32> to vector<1x8x128xf32>
    tpu.vector_store %arg8[%c0_87, %c80, %c0_88], %155 {strides = array<i32>} : memref<1x128x128xf32, #tpu.memory_space<vmem>>, vector<1x8x128xf32>,
    %cst_89 = arith.constant dense<0xFF800000> : vector<8xf32>
    %156 = vector.multi_reduction <maximumf>, %152, %cst_89 [1] : vector<8x128xf32> to vector<8xf32>
    %157 = vector.shape_cast %156 : vector<8xf32> to vector<8x1xf32>
    %158 = vector.broadcast %157 : vector<8x1xf32> to vector<8x128xf32>
    %159 = arith.cmpf oeq, %152, %158 : vector<8x128xf32>
    %cst_90 = arith.constant 1.280000e+02 : f32
    %160 = vector.broadcast %cst_90 : f32 to vector<8x128xf32>
    %161 = arith.select %159, %76, %160 : vector<8x128xi1>, vector<8x128xf32>
    %cst_91 = arith.constant dense<0x7F800000> : vector<8xf32>
    %162 = vector.multi_reduction <minimumf>, %161, %cst_91 [1] : vector<8x128xf32> to vector<8xf32>
    %163 = vector.shape_cast %162 : vector<8xf32> to vector<8x1xf32>
    %164 = arith.fptosi %163 : vector<8x1xf32> to vector<8x1xi32>
    %165 = vector.broadcast %164 : vector<8x1xi32> to vector<8x128xi32>
    %166 = arith.cmpi eq, %165, %74 : vector<8x128xi32>
    %167 = arith.extui %166 : vector<8x128xi1> to vector<8x128xi32>
    %168 = arith.sitofp %167 : vector<8x128xi32> to vector<8x128xf32>
    %169 = arith.truncf %168 : vector<8x128xf32> to vector<8x128xbf16>
    %c0_92 = arith.constant 0 : index
    %c0_93 = arith.constant 0 : index
    %170 = vector.load %arg2[%c0_92, %c0_93] : memref<128x128xbf16, #tpu.memory_space<vmem>>, vector<128x128xbf16>
    %cst_94 = arith.constant dense<0.000000e+00> : vector<8x128xf32>
    %171 = tpu.matmul %169, %170, %cst_94 {dimension_numbers = #tpu.dot_dimension_numbers<[1], [0], [0], [1], [0, 0, 1, 1], [], []>} : vector<8x128xbf16>, vector<128x128xbf16>, vector<8x128xf32> -> vector<8x128xf32>
    %172 = vector.broadcast %2 : vector<1x128xf32> to vector<8x128xf32>
    %173 = arith.addf %171, %172 : vector<8x128xf32>
    %cst_95 = arith.constant dense<0.000000e+00> : vector<8x128xf32>
    %174 = tpu.matmul %148, %0, %cst_95 {dimension_numbers = #tpu.dot_dimension_numbers<[1], [0], [0], [1], [0, 0, 1, 1], [], []>} : vector<8x128xbf16>, vector<128x128xbf16>, vector<8x128xf32> -> vector<8x128xf32>
    %175 = arith.addf %173, %174 : vector<8x128xf32>
    %176 = math.tanh %175 : vector<8x128xf32>
    %177 = arith.truncf %176 : vector<8x128xf32> to vector<8x128xbf16>
    %c0_96 = arith.constant 0 : index
    %c0_97 = arith.constant 0 : index
    %178 = vector.load %arg6[%c0_96, %c0_97] : memref<128x128xbf16, #tpu.memory_space<vmem>>, vector<128x128xbf16>
    %cst_98 = arith.constant dense<0.000000e+00> : vector<8x128xf32>
    %179 = tpu.matmul %177, %178, %cst_98 {dimension_numbers = #tpu.dot_dimension_numbers<[1], [0], [0], [1], [0, 0, 1, 1], [], []>} : vector<8x128xbf16>, vector<128x128xbf16>, vector<8x128xf32> -> vector<8x128xf32>
    %180 = vector.broadcast %3 : vector<1x128xf32> to vector<8x128xf32>
    %181 = arith.addf %179, %180 : vector<8x128xf32>
    %c0_99 = arith.constant 0 : index
    %c88 = arith.constant 88 : index
    %c0_100 = arith.constant 0 : index
    %182 = vector.load %arg8[%c0_99, %c88, %c0_100] : memref<1x128x128xf32, #tpu.memory_space<vmem>>, vector<1x8x128xf32>
    %183 = vector.shape_cast %182 : vector<1x8x128xf32> to vector<8x128xf32>
    %184 = vector.shape_cast %181 : vector<8x128xf32> to vector<1x8x128xf32>
    tpu.vector_store %arg8[%c0_99, %c88, %c0_100], %184 {strides = array<i32>} : memref<1x128x128xf32, #tpu.memory_space<vmem>>, vector<1x8x128xf32>,
    %cst_101 = arith.constant dense<0xFF800000> : vector<8xf32>
    %185 = vector.multi_reduction <maximumf>, %181, %cst_101 [1] : vector<8x128xf32> to vector<8xf32>
    %186 = vector.shape_cast %185 : vector<8xf32> to vector<8x1xf32>
    %187 = vector.broadcast %186 : vector<8x1xf32> to vector<8x128xf32>
    %188 = arith.cmpf oeq, %181, %187 : vector<8x128xf32>
    %cst_102 = arith.constant 1.280000e+02 : f32
    %189 = vector.broadcast %cst_102 : f32 to vector<8x128xf32>
    %190 = arith.select %188, %76, %189 : vector<8x128xi1>, vector<8x128xf32>
    %cst_103 = arith.constant dense<0x7F800000> : vector<8xf32>
    %191 = vector.multi_reduction <minimumf>, %190, %cst_103 [1] : vector<8x128xf32> to vector<8xf32>
    %192 = vector.shape_cast %191 : vector<8xf32> to vector<8x1xf32>
    %193 = arith.fptosi %192 : vector<8x1xf32> to vector<8x1xi32>
    %194 = vector.broadcast %193 : vector<8x1xi32> to vector<8x128xi32>
    %195 = arith.cmpi eq, %194, %74 : vector<8x128xi32>
    %196 = arith.extui %195 : vector<8x128xi1> to vector<8x128xi32>
    %197 = arith.sitofp %196 : vector<8x128xi32> to vector<8x128xf32>
    %198 = arith.truncf %197 : vector<8x128xf32> to vector<8x128xbf16>
    %c0_104 = arith.constant 0 : index
    %c0_105 = arith.constant 0 : index
    %199 = vector.load %arg2[%c0_104, %c0_105] : memref<128x128xbf16, #tpu.memory_space<vmem>>, vector<128x128xbf16>
    %cst_106 = arith.constant dense<0.000000e+00> : vector<8x128xf32>
    %200 = tpu.matmul %198, %199, %cst_106 {dimension_numbers = #tpu.dot_dimension_numbers<[1], [0], [0], [1], [0, 0, 1, 1], [], []>} : vector<8x128xbf16>, vector<128x128xbf16>, vector<8x128xf32> -> vector<8x128xf32>
    %201 = vector.broadcast %2 : vector<1x128xf32> to vector<8x128xf32>
    %202 = arith.addf %200, %201 : vector<8x128xf32>
    %cst_107 = arith.constant dense<0.000000e+00> : vector<8x128xf32>
    %203 = tpu.matmul %177, %0, %cst_107 {dimension_numbers = #tpu.dot_dimension_numbers<[1], [0], [0], [1], [0, 0, 1, 1], [], []>} : vector<8x128xbf16>, vector<128x128xbf16>, vector<8x128xf32> -> vector<8x128xf32>
    %204 = arith.addf %202, %203 : vector<8x128xf32>
    %205 = math.tanh %204 : vector<8x128xf32>
    %206 = arith.truncf %205 : vector<8x128xf32> to vector<8x128xbf16>
    %c0_108 = arith.constant 0 : index
    %c0_109 = arith.constant 0 : index
    %207 = vector.load %arg6[%c0_108, %c0_109] : memref<128x128xbf16, #tpu.memory_space<vmem>>, vector<128x128xbf16>
    %cst_110 = arith.constant dense<0.000000e+00> : vector<8x128xf32>
    %208 = tpu.matmul %206, %207, %cst_110 {dimension_numbers = #tpu.dot_dimension_numbers<[1], [0], [0], [1], [0, 0, 1, 1], [], []>} : vector<8x128xbf16>, vector<128x128xbf16>, vector<8x128xf32> -> vector<8x128xf32>
    %209 = vector.broadcast %3 : vector<1x128xf32> to vector<8x128xf32>
    %210 = arith.addf %208, %209 : vector<8x128xf32>
    %c0_111 = arith.constant 0 : index
    %c96 = arith.constant 96 : index
    %c0_112 = arith.constant 0 : index
    %211 = vector.load %arg8[%c0_111, %c96, %c0_112] : memref<1x128x128xf32, #tpu.memory_space<vmem>>, vector<1x8x128xf32>
    %212 = vector.shape_cast %211 : vector<1x8x128xf32> to vector<8x128xf32>
    %213 = vector.shape_cast %210 : vector<8x128xf32> to vector<1x8x128xf32>
    tpu.vector_store %arg8[%c0_111, %c96, %c0_112], %213 {strides = array<i32>} : memref<1x128x128xf32, #tpu.memory_space<vmem>>, vector<1x8x128xf32>,
    %cst_113 = arith.constant dense<0xFF800000> : vector<8xf32>
    %214 = vector.multi_reduction <maximumf>, %210, %cst_113 [1] : vector<8x128xf32> to vector<8xf32>
    %215 = vector.shape_cast %214 : vector<8xf32> to vector<8x1xf32>
    %216 = vector.broadcast %215 : vector<8x1xf32> to vector<8x128xf32>
    %217 = arith.cmpf oeq, %210, %216 : vector<8x128xf32>
    %cst_114 = arith.constant 1.280000e+02 : f32
    %218 = vector.broadcast %cst_114 : f32 to vector<8x128xf32>
    %219 = arith.select %217, %76, %218 : vector<8x128xi1>, vector<8x128xf32>
    %cst_115 = arith.constant dense<0x7F800000> : vector<8xf32>
    %220 = vector.multi_reduction <minimumf>, %219, %cst_115 [1] : vector<8x128xf32> to vector<8xf32>
    %221 = vector.shape_cast %220 : vector<8xf32> to vector<8x1xf32>
    %222 = arith.fptosi %221 : vector<8x1xf32> to vector<8x1xi32>
    %223 = vector.broadcast %222 : vector<8x1xi32> to vector<8x128xi32>
    %224 = arith.cmpi eq, %223, %74 : vector<8x128xi32>
    %225 = arith.extui %224 : vector<8x128xi1> to vector<8x128xi32>
    %226 = arith.sitofp %225 : vector<8x128xi32> to vector<8x128xf32>
    %227 = arith.truncf %226 : vector<8x128xf32> to vector<8x128xbf16>
    %c0_116 = arith.constant 0 : index
    %c0_117 = arith.constant 0 : index
    %228 = vector.load %arg2[%c0_116, %c0_117] : memref<128x128xbf16, #tpu.memory_space<vmem>>, vector<128x128xbf16>
    %cst_118 = arith.constant dense<0.000000e+00> : vector<8x128xf32>
    %229 = tpu.matmul %227, %228, %cst_118 {dimension_numbers = #tpu.dot_dimension_numbers<[1], [0], [0], [1], [0, 0, 1, 1], [], []>} : vector<8x128xbf16>, vector<128x128xbf16>, vector<8x128xf32> -> vector<8x128xf32>
    %230 = vector.broadcast %2 : vector<1x128xf32> to vector<8x128xf32>
    %231 = arith.addf %229, %230 : vector<8x128xf32>
    %cst_119 = arith.constant dense<0.000000e+00> : vector<8x128xf32>
    %232 = tpu.matmul %206, %0, %cst_119 {dimension_numbers = #tpu.dot_dimension_numbers<[1], [0], [0], [1], [0, 0, 1, 1], [], []>} : vector<8x128xbf16>, vector<128x128xbf16>, vector<8x128xf32> -> vector<8x128xf32>
    %233 = arith.addf %231, %232 : vector<8x128xf32>
    %234 = math.tanh %233 : vector<8x128xf32>
    %235 = arith.truncf %234 : vector<8x128xf32> to vector<8x128xbf16>
    %c0_120 = arith.constant 0 : index
    %c0_121 = arith.constant 0 : index
    %236 = vector.load %arg6[%c0_120, %c0_121] : memref<128x128xbf16, #tpu.memory_space<vmem>>, vector<128x128xbf16>
    %cst_122 = arith.constant dense<0.000000e+00> : vector<8x128xf32>
    %237 = tpu.matmul %235, %236, %cst_122 {dimension_numbers = #tpu.dot_dimension_numbers<[1], [0], [0], [1], [0, 0, 1, 1], [], []>} : vector<8x128xbf16>, vector<128x128xbf16>, vector<8x128xf32> -> vector<8x128xf32>
    %238 = vector.broadcast %3 : vector<1x128xf32> to vector<8x128xf32>
    %239 = arith.addf %237, %238 : vector<8x128xf32>
    %c0_123 = arith.constant 0 : index
    %c104 = arith.constant 104 : index
    %c0_124 = arith.constant 0 : index
    %240 = vector.load %arg8[%c0_123, %c104, %c0_124] : memref<1x128x128xf32, #tpu.memory_space<vmem>>, vector<1x8x128xf32>
    %241 = vector.shape_cast %240 : vector<1x8x128xf32> to vector<8x128xf32>
    %242 = vector.shape_cast %239 : vector<8x128xf32> to vector<1x8x128xf32>
    tpu.vector_store %arg8[%c0_123, %c104, %c0_124], %242 {strides = array<i32>} : memref<1x128x128xf32, #tpu.memory_space<vmem>>, vector<1x8x128xf32>,
    %cst_125 = arith.constant dense<0xFF800000> : vector<8xf32>
    %243 = vector.multi_reduction <maximumf>, %239, %cst_125 [1] : vector<8x128xf32> to vector<8xf32>
    %244 = vector.shape_cast %243 : vector<8xf32> to vector<8x1xf32>
    %245 = vector.broadcast %244 : vector<8x1xf32> to vector<8x128xf32>
    %246 = arith.cmpf oeq, %239, %245 : vector<8x128xf32>
    %cst_126 = arith.constant 1.280000e+02 : f32
    %247 = vector.broadcast %cst_126 : f32 to vector<8x128xf32>
    %248 = arith.select %246, %76, %247 : vector<8x128xi1>, vector<8x128xf32>
    %cst_127 = arith.constant dense<0x7F800000> : vector<8xf32>
    %249 = vector.multi_reduction <minimumf>, %248, %cst_127 [1] : vector<8x128xf32> to vector<8xf32>
    %250 = vector.shape_cast %249 : vector<8xf32> to vector<8x1xf32>
    %251 = arith.fptosi %250 : vector<8x1xf32> to vector<8x1xi32>
    %252 = vector.broadcast %251 : vector<8x1xi32> to vector<8x128xi32>
    %253 = arith.cmpi eq, %252, %74 : vector<8x128xi32>
    %254 = arith.extui %253 : vector<8x128xi1> to vector<8x128xi32>
    %255 = arith.sitofp %254 : vector<8x128xi32> to vector<8x128xf32>
    %256 = arith.truncf %255 : vector<8x128xf32> to vector<8x128xbf16>
    %c0_128 = arith.constant 0 : index
    %c0_129 = arith.constant 0 : index
    %257 = vector.load %arg2[%c0_128, %c0_129] : memref<128x128xbf16, #tpu.memory_space<vmem>>, vector<128x128xbf16>
    %cst_130 = arith.constant dense<0.000000e+00> : vector<8x128xf32>
    %258 = tpu.matmul %256, %257, %cst_130 {dimension_numbers = #tpu.dot_dimension_numbers<[1], [0], [0], [1], [0, 0, 1, 1], [], []>} : vector<8x128xbf16>, vector<128x128xbf16>, vector<8x128xf32> -> vector<8x128xf32>
    %259 = vector.broadcast %2 : vector<1x128xf32> to vector<8x128xf32>
    %260 = arith.addf %258, %259 : vector<8x128xf32>
    %cst_131 = arith.constant dense<0.000000e+00> : vector<8x128xf32>
    %261 = tpu.matmul %235, %0, %cst_131 {dimension_numbers = #tpu.dot_dimension_numbers<[1], [0], [0], [1], [0, 0, 1, 1], [], []>} : vector<8x128xbf16>, vector<128x128xbf16>, vector<8x128xf32> -> vector<8x128xf32>
    %262 = arith.addf %260, %261 : vector<8x128xf32>
    %263 = math.tanh %262 : vector<8x128xf32>
    %264 = arith.truncf %263 : vector<8x128xf32> to vector<8x128xbf16>
    %c0_132 = arith.constant 0 : index
    %c0_133 = arith.constant 0 : index
    %265 = vector.load %arg6[%c0_132, %c0_133] : memref<128x128xbf16, #tpu.memory_space<vmem>>, vector<128x128xbf16>
    %cst_134 = arith.constant dense<0.000000e+00> : vector<8x128xf32>
    %266 = tpu.matmul %264, %265, %cst_134 {dimension_numbers = #tpu.dot_dimension_numbers<[1], [0], [0], [1], [0, 0, 1, 1], [], []>} : vector<8x128xbf16>, vector<128x128xbf16>, vector<8x128xf32> -> vector<8x128xf32>
    %267 = vector.broadcast %3 : vector<1x128xf32> to vector<8x128xf32>
    %268 = arith.addf %266, %267 : vector<8x128xf32>
    %c0_135 = arith.constant 0 : index
    %c112 = arith.constant 112 : index
    %c0_136 = arith.constant 0 : index
    %269 = vector.load %arg8[%c0_135, %c112, %c0_136] : memref<1x128x128xf32, #tpu.memory_space<vmem>>, vector<1x8x128xf32>
    %270 = vector.shape_cast %269 : vector<1x8x128xf32> to vector<8x128xf32>
    %271 = vector.shape_cast %268 : vector<8x128xf32> to vector<1x8x128xf32>
    tpu.vector_store %arg8[%c0_135, %c112, %c0_136], %271 {strides = array<i32>} : memref<1x128x128xf32, #tpu.memory_space<vmem>>, vector<1x8x128xf32>,
    %cst_137 = arith.constant dense<0xFF800000> : vector<8xf32>
    %272 = vector.multi_reduction <maximumf>, %268, %cst_137 [1] : vector<8x128xf32> to vector<8xf32>
    %273 = vector.shape_cast %272 : vector<8xf32> to vector<8x1xf32>
    %274 = vector.broadcast %273 : vector<8x1xf32> to vector<8x128xf32>
    %275 = arith.cmpf oeq, %268, %274 : vector<8x128xf32>
    %cst_138 = arith.constant 1.280000e+02 : f32
    %276 = vector.broadcast %cst_138 : f32 to vector<8x128xf32>
    %277 = arith.select %275, %76, %276 : vector<8x128xi1>, vector<8x128xf32>
    %cst_139 = arith.constant dense<0x7F800000> : vector<8xf32>
    %278 = vector.multi_reduction <minimumf>, %277, %cst_139 [1] : vector<8x128xf32> to vector<8xf32>
    %279 = vector.shape_cast %278 : vector<8xf32> to vector<8x1xf32>
    %280 = arith.fptosi %279 : vector<8x1xf32> to vector<8x1xi32>
    %281 = vector.broadcast %280 : vector<8x1xi32> to vector<8x128xi32>
    %282 = arith.cmpi eq, %281, %74 : vector<8x128xi32>
    %283 = arith.extui %282 : vector<8x128xi1> to vector<8x128xi32>
    %284 = arith.sitofp %283 : vector<8x128xi32> to vector<8x128xf32>
    %285 = arith.truncf %284 : vector<8x128xf32> to vector<8x128xbf16>
    %c0_140 = arith.constant 0 : index
    %c0_141 = arith.constant 0 : index
    %286 = vector.load %arg2[%c0_140, %c0_141] : memref<128x128xbf16, #tpu.memory_space<vmem>>, vector<128x128xbf16>
    %cst_142 = arith.constant dense<0.000000e+00> : vector<8x128xf32>
    %287 = tpu.matmul %285, %286, %cst_142 {dimension_numbers = #tpu.dot_dimension_numbers<[1], [0], [0], [1], [0, 0, 1, 1], [], []>} : vector<8x128xbf16>, vector<128x128xbf16>, vector<8x128xf32> -> vector<8x128xf32>
    %288 = vector.broadcast %2 : vector<1x128xf32> to vector<8x128xf32>
    %289 = arith.addf %287, %288 : vector<8x128xf32>
    %cst_143 = arith.constant dense<0.000000e+00> : vector<8x128xf32>
    %290 = tpu.matmul %264, %0, %cst_143 {dimension_numbers = #tpu.dot_dimension_numbers<[1], [0], [0], [1], [0, 0, 1, 1], [], []>} : vector<8x128xbf16>, vector<128x128xbf16>, vector<8x128xf32> -> vector<8x128xf32>
    %291 = arith.addf %289, %290 : vector<8x128xf32>
    %292 = math.tanh %291 : vector<8x128xf32>
    %293 = arith.truncf %292 : vector<8x128xf32> to vector<8x128xbf16>
    %c0_144 = arith.constant 0 : index
    %c0_145 = arith.constant 0 : index
    %294 = vector.load %arg6[%c0_144, %c0_145] : memref<128x128xbf16, #tpu.memory_space<vmem>>, vector<128x128xbf16>
    %cst_146 = arith.constant dense<0.000000e+00> : vector<8x128xf32>
    %295 = tpu.matmul %293, %294, %cst_146 {dimension_numbers = #tpu.dot_dimension_numbers<[1], [0], [0], [1], [0, 0, 1, 1], [], []>} : vector<8x128xbf16>, vector<128x128xbf16>, vector<8x128xf32> -> vector<8x128xf32>
    %296 = vector.broadcast %3 : vector<1x128xf32> to vector<8x128xf32>
    %297 = arith.addf %295, %296 : vector<8x128xf32>
    %c0_147 = arith.constant 0 : index
    %c120 = arith.constant 120 : index
    %c0_148 = arith.constant 0 : index
    %298 = vector.load %arg8[%c0_147, %c120, %c0_148] : memref<1x128x128xf32, #tpu.memory_space<vmem>>, vector<1x8x128xf32>
    %299 = vector.shape_cast %298 : vector<1x8x128xf32> to vector<8x128xf32>
    %300 = vector.shape_cast %297 : vector<8x128xf32> to vector<1x8x128xf32>
    tpu.vector_store %arg8[%c0_147, %c120, %c0_148], %300 {strides = array<i32>} : memref<1x128x128xf32, #tpu.memory_space<vmem>>, vector<1x8x128xf32>,
    return
  }
  func.func @transform_0(%arg0: i32) -> (i32, i32, i32) {
    %c0_i32 = arith.constant 0 : i32
    %c0_i32_0 = arith.constant 0 : i32
    %c0_i32_1 = arith.constant 0 : i32
    return %arg0, %c0_i32, %c0_i32_0 : i32, i32, i32
  }
  func.func @transform_1(%arg0: i32) -> (i32, i32) {
    %c0_i32 = arith.constant 0 : i32
    %c0_i32_0 = arith.constant 0 : i32
    %c0_i32_1 = arith.constant 0 : i32
    return %c0_i32, %c0_i32_0 : i32, i32
  }
  func.func @transform_2(%arg0: i32) -> (i32, i32) {
    %c0_i32 = arith.constant 0 : i32
    %c0_i32_0 = arith.constant 0 : i32
    %c0_i32_1 = arith.constant 0 : i32
    return %c0_i32, %c0_i32_0 : i32, i32
  }
  func.func @transform_3(%arg0: i32) -> (i32, i32) {
    %c0_i32 = arith.constant 0 : i32
    %c0_i32_0 = arith.constant 0 : i32
    %c0_i32_1 = arith.constant 0 : i32
    return %c0_i32, %c0_i32_0 : i32, i32
  }
  func.func @transform_4(%arg0: i32) -> (i32, i32) {
    %c0_i32 = arith.constant 0 : i32
    %c0_i32_0 = arith.constant 0 : i32
    %c0_i32_1 = arith.constant 0 : i32
    return %c0_i32, %c0_i32_0 : i32, i32
  }
  func.func @transform_5(%arg0: i32) -> (i32, i32) {
    %c0_i32 = arith.constant 0 : i32
    %c0_i32_0 = arith.constant 0 : i32
    %c0_i32_1 = arith.constant 0 : i32
    return %c0_i32, %c0_i32_0 : i32, i32
  }
  func.func @transform_6(%arg0: i32) -> (i32, i32) {
    %c0_i32 = arith.constant 0 : i32
    %c0_i32_0 = arith.constant 0 : i32
    %c0_i32_1 = arith.constant 0 : i32
    return %c0_i32, %c0_i32_0 : i32, i32
  }
  func.func @transform_7(%arg0: i32) -> (i32, i32, i32) {
    %c0_i32 = arith.constant 0 : i32
    %c0_i32_0 = arith.constant 0 : i32
    %c0_i32_1 = arith.constant 0 : i32
    return %arg0, %c0_i32, %c0_i32_0 : i32, i32, i32
  }
}

</mosaic_0001>

<llo_original>
// kernel: rnn_ar_forward.1
$region0: #{rnn_ar_forward.1}
  #allocation0 [shape = 'u32[]', space=smem, size = 0x4, offset = 0x4, fixed_abs, tag = 'smem constant byte address 0x4 - core index']
  #allocation1 [shape = 'u32[144,128]{1,0:T(1,128)}', space=vmem, size = 0x12000, scoped, tag = 'internal scratch']
  #allocation2 [shape = 'f32[64,128]{1,0:T(8,128)}', space=vmem, size = 0x8000, scoped, tag = 'scratch operand']
  #allocation3 [shape = 'bf16[64,128]{1,0:T(8,128)(2,1)}', space=vmem, size = 0x4000, scoped, tag = 'scratch operand']
  %s0 = inlined_call_operand.vmem [shape: s32[1,64,1], index: 0, kind: input, shape index: {}]
  %s1 = inlined_call_operand.vmem [shape: bf16[128,128], index: 1, kind: input, shape index: {}]
  %s2 = inlined_call_operand.vmem [shape: bf16[128,128], index: 2, kind: input, shape index: {}]
  %s3 = inlined_call_operand.vmem [shape: f32[1,128], index: 3, kind: input, shape index: {}]
  %s4 = inlined_call_operand.vmem [shape: f32[1,128], index: 4, kind: input, shape index: {}]
  %s5 = inlined_call_operand.vmem [shape: bf16[128,128], index: 5, kind: input, shape index: {}]
  %s6 = inlined_call_operand.vmem [shape: f32[1,128], index: 6, kind: input, shape index: {}]
  %s7 = inlined_call_operand.vmem [shape: f32[1,128,128], index: 7, kind: output, shape index: {}]
  %s8 = sld [smem:[#allocation0]]
  $region38: #{rnn_ar_forward.1} parent=0
    _
  %s10 = ssub.s32 1, %s8
  %s11 = scalar_select 0, %s10, %s8
  // Predicated region
  $region2: #{rnn_ar_forward.1} parent=0 // pred_check
    _
  $region3: #{rnn_ar_forward.1} parent=0 // pred_check_branch
    %13 = sbr.rel (0) target = $region5
  $region4: #{rnn_ar_forward.1} parent=0 // pred_region
    _
  $region5: #{rnn_ar_forward.1} parent=0 // pred_fallthru
    _
  // Predicated region
  $region6: #{rnn_ar_forward.1} parent=0 // pred_check
    _
  $region7: #{rnn_ar_forward.1} parent=0 // pred_check_branch
    %15 = sbr.rel (0) target = $region9
  $region8: #{rnn_ar_forward.1} parent=0 // pred_region
    _
  $region9: #{rnn_ar_forward.1} parent=0 // pred_fallthru
    _
  // Predicated region
  $region10: #{rnn_ar_forward.1} parent=0 // pred_check
    _
  $region11: #{rnn_ar_forward.1} parent=0 // pred_check_branch
    %17 = sbr.rel (0) target = $region13
  $region12: #{rnn_ar_forward.1} parent=0 // pred_region
    _
  $region13: #{rnn_ar_forward.1} parent=0 // pred_fallthru
    _
  // Predicated region
  $region14: #{rnn_ar_forward.1} parent=0 // pred_check
    _
  $region15: #{rnn_ar_forward.1} parent=0 // pred_check_branch
    %19 = sbr.rel (0) target = $region17
  $region16: #{rnn_ar_forward.1} parent=0 // pred_region
    _
  $region17: #{rnn_ar_forward.1} parent=0 // pred_fallthru
    _
  // Predicated region
  $region18: #{rnn_ar_forward.1} parent=0 // pred_check
    _
  $region19: #{rnn_ar_forward.1} parent=0 // pred_check_branch
    %21 = sbr.rel (0) target = $region21
  $region20: #{rnn_ar_forward.1} parent=0 // pred_region
    _
  $region21: #{rnn_ar_forward.1} parent=0 // pred_fallthru
    _
  // Predicated region
  $region22: #{rnn_ar_forward.1} parent=0 // pred_check
    _
  $region23: #{rnn_ar_forward.1} parent=0 // pred_check_branch
    %23 = sbr.rel (0) target = $region25
  $region24: #{rnn_ar_forward.1} parent=0 // pred_region
    _
  $region25: #{rnn_ar_forward.1} parent=0 // pred_fallthru
    _
  // Predicated region
  $region26: #{rnn_ar_forward.1} parent=0 // pred_check
    _
  $region27: #{rnn_ar_forward.1} parent=0 // pred_check_branch
    %25 = sbr.rel (0) target = $region29
  $region28: #{rnn_ar_forward.1} parent=0 // pred_region
    _
  $region29: #{rnn_ar_forward.1} parent=0 // pred_fallthru
    _
  %v27 = vld [vmem:[%s2] sm:$0xf]
  %v28 = vld [vmem:[%s2 + $0x4] sm:$0xf]
  %v29 = vld [vmem:[%s2 + $0x8] sm:$0xf]
  %v30 = vld [vmem:[%s2 + $0xc] sm:$0xf]
  %v31 = vld [vmem:[%s2 + $0x10] sm:$0xf]
  %v32 = vld [vmem:[%s2 + $0x14] sm:$0xf]
  %v33 = vld [vmem:[%s2 + $0x18] sm:$0xf]
  %v34 = vld [vmem:[%s2 + $0x1c] sm:$0xf]
  %v35 = vld [vmem:[%s2 + $0x20] sm:$0xf]
  %v36 = vld [vmem:[%s2 + $0x24] sm:$0xf]
  %v37 = vld [vmem:[%s2 + $0x28] sm:$0xf]
  %v38 = vld [vmem:[%s2 + $0x2c] sm:$0xf]
  %v39 = vld [vmem:[%s2 + $0x30] sm:$0xf]
  %v40 = vld [vmem:[%s2 + $0x34] sm:$0xf]
  %v41 = vld [vmem:[%s2 + $0x38] sm:$0xf]
  %v42 = vld [vmem:[%s2 + $0x3c] sm:$0xf]
  %v43 = vld [vmem:[%s3] sm:$0x1]
  %v44 = vld [vmem:[%s4] sm:$0x1]
  %v45 = vld [vmem:[%s6] sm:$0x1]
  %v46 = vld [vmem:[%s0] sm:$0xff]
  %v47 = vld [vmem:[%s0 + $0x8] sm:$0xff]
  %v48 = vld [vmem:[%s0 + $0x10] sm:$0xff]
  %v49 = vld [vmem:[%s0 + $0x18] sm:$0xff]
  %v50 = vld [vmem:[%s0 + $0x20] sm:$0xff]
  %v51 = vld [vmem:[%s0 + $0x28] sm:$0xff]
  %v52 = vld [vmem:[%s0 + $0x30] sm:$0xff]
  %v53 = vld [vmem:[%s0 + $0x38] sm:$0xff]
  %v54 = vlaneseq
  %v55 = vand.u32 %v54, 127
  %56 = vset.pattern.permute.xlu0 0
  %57 = vperm.xlu0 %56, %v46
  %v58 = vpop.permute.xlu0 %57
  %59 = vset.pattern.permute.xlu0 0
  %60 = vperm.xlu0 %59, %v47
  %v61 = vpop.permute.xlu0 %60
  %62 = vset.pattern.permute.xlu0 0
  %63 = vperm.xlu0 %62, %v48
  %v64 = vpop.permute.xlu0 %63
  %65 = vset.pattern.permute.xlu0 0
  %66 = vperm.xlu0 %65, %v49
  %v67 = vpop.permute.xlu0 %66
  %68 = vset.pattern.permute.xlu0 0
  %69 = vperm.xlu0 %68, %v50
  %v70 = vpop.permute.xlu0 %69
  %71 = vset.pattern.permute.xlu0 0
  %72 = vperm.xlu0 %71, %v51
  %v73 = vpop.permute.xlu0 %72
  %74 = vset.pattern.permute.xlu0 0
  %75 = vperm.xlu0 %74, %v52
  %v76 = vpop.permute.xlu0 %75
  %77 = vset.pattern.permute.xlu0 0
  %78 = vperm.xlu0 %77, %v53
  %v79 = vpop.permute.xlu0 %78
  %vm80 = vcmp.eq.s32.totalorder %v58, %v55
  %vm81 = vcmp.eq.s32.totalorder %v61, %v55
  %vm82 = vcmp.eq.s32.totalorder %v64, %v55
  %vm83 = vcmp.eq.s32.totalorder %v67, %v55
  %vm84 = vcmp.eq.s32.totalorder %v70, %v55
  %vm85 = vcmp.eq.s32.totalorder %v73, %v55
  %vm86 = vcmp.eq.s32.totalorder %v76, %v55
  %vm87 = vcmp.eq.s32.totalorder %v79, %v55
  %v88 = vsel %vm80, 1, 0
  %v89 = vsel %vm81, 1, 0
  %v90 = vsel %vm82, 1, 0
  %v91 = vsel %vm83, 1, 0
  %v92 = vsel %vm84, 1, 0
  %v93 = vsel %vm85, 1, 0
  %v94 = vsel %vm86, 1, 0
  %v95 = vsel %vm87, 1, 0
  %v96 = vcvt.s32.f32 %v88
  %v97 = vcvt.s32.f32 %v89
  %v98 = vcvt.s32.f32 %v90
  %v99 = vcvt.s32.f32 %v91
  %v100 = vcvt.s32.f32 %v92
  %v101 = vcvt.s32.f32 %v93
  %v102 = vcvt.s32.f32 %v94
  %v103 = vcvt.s32.f32 %v95
  %v104 = vpack.c.bf16 %v97, %v96
  %v105 = vpack.c.bf16 %v99, %v98
  %v106 = vpack.c.bf16 %v101, %v100
  %v107 = vpack.c.bf16 %v103, %v102
  %v108 = vld [vmem:[%s1] sm:$0xf]
  %v109 = vld [vmem:[%s1 + $0x4] sm:$0xf]
  %v110 = vld [vmem:[%s1 + $0x8] sm:$0xf]
  %v111 = vld [vmem:[%s1 + $0xc] sm:$0xf]
  %v112 = vld [vmem:[%s1 + $0x10] sm:$0xf]
  %v113 = vld [vmem:[%s1 + $0x14] sm:$0xf]
  %v114 = vld [vmem:[%s1 + $0x18] sm:$0xf]
  %v115 = vld [vmem:[%s1 + $0x1c] sm:$0xf]
  %v116 = vld [vmem:[%s1 + $0x20] sm:$0xf]
  %v117 = vld [vmem:[%s1 + $0x24] sm:$0xf]
  %v118 = vld [vmem:[%s1 + $0x28] sm:$0xf]
  %v119 = vld [vmem:[%s1 + $0x2c] sm:$0xf]
  %v120 = vld [vmem:[%s1 + $0x30] sm:$0xf]
  %v121 = vld [vmem:[%s1 + $0x34] sm:$0xf]
  %v122 = vld [vmem:[%s1 + $0x38] sm:$0xf]
  %v123 = vld [vmem:[%s1 + $0x3c] sm:$0xf]
  %v125 = vlaneseq
  %v126 = vshrl.u32 %v125, 7
  %v127 = vsub.s32 0, %v126
  %v128 = vrot.slane %v43, %v127
  %v146 = vunpack.c.l.b16 %v108
  %v147 = vunpack.c.l.b16 %v109
  %v148 = vunpack.c.l.b16 %v110
  %v149 = vunpack.c.l.b16 %v111
  %v150 = vunpack.c.l.b16 %v112
  %v151 = vunpack.c.l.b16 %v113
  %v152 = vunpack.c.l.b16 %v114
  %v153 = vunpack.c.l.b16 %v115
  %v154 = vunpack.c.l.b16 %v116
  %v155 = vunpack.c.l.b16 %v117
  %v156 = vunpack.c.l.b16 %v118
  %v157 = vunpack.c.l.b16 %v119
  %v158 = vunpack.c.l.b16 %v120
  %v159 = vunpack.c.l.b16 %v121
  %v160 = vunpack.c.l.b16 %v122
  %v161 = vunpack.c.l.b16 %v123
  %v162 = vpack.c.b16 %v147, %v146
  %v163 = vpack.c.b16 %v149, %v148
  %v164 = vpack.c.b16 %v151, %v150
  %v165 = vpack.c.b16 %v153, %v152
  %v166 = vpack.c.b16 %v155, %v154
  %v167 = vpack.c.b16 %v157, %v156
  %v168 = vpack.c.b16 %v159, %v158
  %v169 = vpack.c.b16 %v161, %v160
  %178 = vmatprep.subr.bf16.mxu0 0
  %179 = vmatpush1.bf16.msra.mxu0 %v169
  %180 = vmatprep.subr.bf16.mxu0 0
  %181 = vmatpush1.bf16.msra.mxu0 %v168
  %182 = vmatprep.subr.bf16.mxu0 0
  %183 = vmatpush1.bf16.msra.mxu0 %v167
  %184 = vmatprep.subr.bf16.mxu0 0
  %185 = vmatpush1.bf16.msra.mxu0 %v166
  %186 = vmatprep.subr.bf16.mxu0 0
  %187 = vmatpush1.bf16.msra.mxu0 %v165
  %188 = vmatprep.subr.bf16.mxu0 0
  %189 = vmatpush1.bf16.msra.mxu0 %v164
  %190 = vmatprep.subr.bf16.mxu0 0
  %191 = vmatpush1.bf16.msra.mxu0 %v163
  %192 = vmatprep.subr.bf16.mxu0 0
  %193 = vmatpush1.bf16.msra.mxu0 %v162
  %194 = vmatprep.subr.bf16.mxu0 0
  %195 = vmatpush2.bf16.msra.mxu0 0
  %196 = vmatprep.subr.bf16.mxu0 0
  %197 = vmatpush2.bf16.msra.mxu0 0
  %198 = vmatprep.subr.bf16.mxu0 0
  %199 = vmatpush2.bf16.msra.mxu0 0
  %200 = vmatprep.subr.bf16.mxu0 0
  %201 = vmatpush2.bf16.msra.mxu0 0
  %202 = vmatprep.subr.bf16.mxu0 0
  %203 = vmatpush2.bf16.msra.mxu0 0
  %204 = vmatprep.subr.bf16.mxu0 0
  %205 = vmatpush2.bf16.msra.mxu0 0
  %206 = vmatprep.subr.bf16.mxu0 0
  %207 = vmatpush2.bf16.msra.mxu0 0
  %208 = vmatprep.subr.bf16.mxu0 0
  %209 = vmatpush2.bf16.msra.mxu0 0
  %210 = vmatprep.mubr.bf16.mxu0 0
  %211 = vmatmul.mubr.bf16.gmra.mxu0 %v104
  %v212 = vpop.f32.mrf.mxu0
  %v213 = vadd.f32 %v128, %v212
  %v214 = vpop.f32.mrf.mxu0
  %v215 = vpop.f32.mrf.mxu0
  %v216 = vadd.f32 %v128, %v215
  %v217 = vpop.f32.mrf.mxu0
  %218 = vmatprep.mubr.bf16.mxu0 0
  %219 = vmatmul.mubr.bf16.gmra.mxu0 %v105
  %v220 = vpop.f32.mrf.mxu0
  %v221 = vadd.f32 %v128, %v220
  %v222 = vpop.f32.mrf.mxu0
  %v223 = vpop.f32.mrf.mxu0
  %v224 = vadd.f32 %v128, %v223
  %v225 = vpop.f32.mrf.mxu0
  %226 = vmatprep.mubr.bf16.mxu0 0
  %227 = vmatmul.mubr.bf16.gmra.mxu0 %v106
  %v228 = vpop.f32.mrf.mxu0
  %v229 = vadd.f32 %v128, %v228
  %v230 = vpop.f32.mrf.mxu0
  %v231 = vpop.f32.mrf.mxu0
  %v232 = vadd.f32 %v128, %v231
  %v233 = vpop.f32.mrf.mxu0
  %234 = vmatprep.mubr.bf16.mxu0 0
  %235 = vmatmul.mubr.bf16.gmra.mxu0 %v107
  %v236 = vpop.f32.mrf.mxu0
  %v237 = vadd.f32 %v128, %v236
  %v238 = vpop.f32.mrf.mxu0
  %v239 = vpop.f32.mrf.mxu0
  %v240 = vadd.f32 %v128, %v239
  %v241 = vpop.f32.mrf.mxu0
  %242 = vdwg.mxu0
  %243 = vst [vmem:[#allocation2] sm:$0xff] %v213
  %244 = vst [vmem:[#allocation2 + $0x8] sm:$0xff] %v216
  %245 = vst [vmem:[#allocation2 + $0x10] sm:$0xff] %v221
  %246 = vst [vmem:[#allocation2 + $0x18] sm:$0xff] %v224
  %247 = vst [vmem:[#allocation2 + $0x20] sm:$0xff] %v229
  %248 = vst [vmem:[#allocation2 + $0x28] sm:$0xff] %v232
  %249 = vst [vmem:[#allocation2 + $0x30] sm:$0xff] %v237
  %250 = vst [vmem:[#allocation2 + $0x38] sm:$0xff] %v240
  %v251 = vld [vmem:[#allocation2] sm:$0xff]
  %v268 = vunpack.c.l.b16 %v27
  %v269 = vunpack.c.l.b16 %v28
  %v270 = vunpack.c.l.b16 %v29
  %v271 = vunpack.c.l.b16 %v30
  %v272 = vunpack.c.l.b16 %v31
  %v273 = vunpack.c.l.b16 %v32
  %v274 = vunpack.c.l.b16 %v33
  %v275 = vunpack.c.l.b16 %v34
  %v276 = vunpack.c.l.b16 %v35
  %v277 = vunpack.c.l.b16 %v36
  %v278 = vunpack.c.l.b16 %v37
  %v279 = vunpack.c.l.b16 %v38
  %v280 = vunpack.c.l.b16 %v39
  %v281 = vunpack.c.l.b16 %v40
  %v282 = vunpack.c.l.b16 %v41
  %v283 = vunpack.c.l.b16 %v42
  %v284 = vpack.c.b16 %v269, %v268
  %v285 = vpack.c.b16 %v271, %v270
  %v286 = vpack.c.b16 %v273, %v272
  %v287 = vpack.c.b16 %v275, %v274
  %v288 = vpack.c.b16 %v277, %v276
  %v289 = vpack.c.b16 %v279, %v278
  %v290 = vpack.c.b16 %v281, %v280
  %v291 = vpack.c.b16 %v283, %v282
  %300 = vmatprep.subr.bf16.mxu0 0
  %301 = vmatpush1.bf16.msra.mxu0 %v291
  %302 = vmatprep.subr.bf16.mxu0 0
  %303 = vmatpush1.bf16.msra.mxu0 %v290
  %304 = vmatprep.subr.bf16.mxu0 0
  %305 = vmatpush1.bf16.msra.mxu0 %v289
  %306 = vmatprep.subr.bf16.mxu0 0
  %307 = vmatpush1.bf16.msra.mxu0 %v288
  %308 = vmatprep.subr.bf16.mxu0 0
  %309 = vmatpush1.bf16.msra.mxu0 %v287
  %310 = vmatprep.subr.bf16.mxu0 0
  %311 = vmatpush1.bf16.msra.mxu0 %v286
  %312 = vmatprep.subr.bf16.mxu0 0
  %313 = vmatpush1.bf16.msra.mxu0 %v285
  %314 = vmatprep.subr.bf16.mxu0 0
  %315 = vmatpush1.bf16.msra.mxu0 %v284
  %316 = vmatprep.subr.bf16.mxu0 0
  %317 = vmatpush2.bf16.msra.mxu0 0
  %318 = vmatprep.subr.bf16.mxu0 0
  %319 = vmatpush2.bf16.msra.mxu0 0
  %320 = vmatprep.subr.bf16.mxu0 0
  %321 = vmatpush2.bf16.msra.mxu0 0
  %322 = vmatprep.subr.bf16.mxu0 0
  %323 = vmatpush2.bf16.msra.mxu0 0
  %324 = vmatprep.subr.bf16.mxu0 0
  %325 = vmatpush2.bf16.msra.mxu0 0
  %326 = vmatprep.subr.bf16.mxu0 0
  %327 = vmatpush2.bf16.msra.mxu0 0
  %328 = vmatprep.subr.bf16.mxu0 0
  %329 = vmatpush2.bf16.msra.mxu0 0
  %330 = vmatprep.subr.bf16.mxu0 0
  %331 = vmatpush2.bf16.msra.mxu0 0
  %332 = vmatprep.mubr.bf16.mxu0 0
  %333 = vmatmul.mubr.bf16.gmra.mxu0 0
  %v334 = vpop.f32.mrf.mxu0
  %v335 = vadd.f32 0.0, %v334
  %v336 = vpop.f32.mrf.mxu0
  %v337 = vpop.f32.mrf.mxu0
  %v338 = vpop.f32.mrf.mxu0
  %339 = vdwg.mxu0
  %v340 = vadd.f32 %v251, %v335
  %v341 = vtanh.pop %v340
  %v342 = vpack.c.bf16 %v341, %v341
  %343 = vst [vmem:[#allocation3] sm:$0xf] %v342
  %v344 = vld [vmem:[#allocation2 + $0x8] sm:$0xff]
  %345 = vmatprep.subr.bf16.mxu0 0
  %346 = vmatpush1.bf16.msra.mxu0 %v291
  %347 = vmatprep.subr.bf16.mxu0 0
  %348 = vmatpush1.bf16.msra.mxu0 %v290
  %349 = vmatprep.subr.bf16.mxu0 0
  %350 = vmatpush1.bf16.msra.mxu0 %v289
  %351 = vmatprep.subr.bf16.mxu0 0
  %352 = vmatpush1.bf16.msra.mxu0 %v288
  %353 = vmatprep.subr.bf16.mxu0 0
  %354 = vmatpush1.bf16.msra.mxu0 %v287
  %355 = vmatprep.subr.bf16.mxu0 0
  %356 = vmatpush1.bf16.msra.mxu0 %v286
  %357 = vmatprep.subr.bf16.mxu0 0
  %358 = vmatpush1.bf16.msra.mxu0 %v285
  %359 = vmatprep.subr.bf16.mxu0 0
  %360 = vmatpush1.bf16.msra.mxu0 %v284
  %361 = vmatprep.subr.bf16.mxu0 0
  %362 = vmatpush2.bf16.msra.mxu0 0
  %363 = vmatprep.subr.bf16.mxu0 0
  %364 = vmatpush2.bf16.msra.mxu0 0
  %365 = vmatprep.subr.bf16.mxu0 0
  %366 = vmatpush2.bf16.msra.mxu0 0
  %367 = vmatprep.subr.bf16.mxu0 0
  %368 = vmatpush2.bf16.msra.mxu0 0
  %369 = vmatprep.subr.bf16.mxu0 0
  %370 = vmatpush2.bf16.msra.mxu0 0
  %371 = vmatprep.subr.bf16.mxu0 0
  %372 = vmatpush2.bf16.msra.mxu0 0
  %373 = vmatprep.subr.bf16.mxu0 0
  %374 = vmatpush2.bf16.msra.mxu0 0
  %375 = vmatprep.subr.bf16.mxu0 0
  %376 = vmatpush2.bf16.msra.mxu0 0
  %377 = vmatprep.mubr.bf16.mxu0 0
  %378 = vmatmul.mubr.bf16.gmra.mxu0 %v342
  %v379 = vpop.f32.mrf.mxu0
  %v380 = vadd.f32 0.0, %v379
  %v381 = vpop.f32.mrf.mxu0
  %v382 = vpop.f32.mrf.mxu0
  %v383 = vpop.f32.mrf.mxu0
  %384 = vdwg.mxu0
  %v385 = vadd.f32 %v344, %v380
  %v386 = vtanh.pop %v385
  %v387 = vpack.c.bf16 %v386, %v386
  %388 = vst [vmem:[#allocation3 + $0x4] sm:$0xf] %v387
  %v389 = vld [vmem:[#allocation2 + $0x10] sm:$0xff]
  %390 = vmatprep.subr.bf16.mxu0 0
  %391 = vmatpush1.bf16.msra.mxu0 %v291
  %392 = vmatprep.subr.bf16.mxu0 0
  %393 = vmatpush1.bf16.msra.mxu0 %v290
  %394 = vmatprep.subr.bf16.mxu0 0
  %395 = vmatpush1.bf16.msra.mxu0 %v289
  %396 = vmatprep.subr.bf16.mxu0 0
  %397 = vmatpush1.bf16.msra.mxu0 %v288
  %398 = vmatprep.subr.bf16.mxu0 0
  %399 = vmatpush1.bf16.msra.mxu0 %v287
  %400 = vmatprep.subr.bf16.mxu0 0
  %401 = vmatpush1.bf16.msra.mxu0 %v286
  %402 = vmatprep.subr.bf16.mxu0 0
  %403 = vmatpush1.bf16.msra.mxu0 %v285
  %404 = vmatprep.subr.bf16.mxu0 0
  %405 = vmatpush1.bf16.msra.mxu0 %v284
  %406 = vmatprep.subr.bf16.mxu0 0
  %407 = vmatpush2.bf16.msra.mxu0 0
  %408 = vmatprep.subr.bf16.mxu0 0
  %409 = vmatpush2.bf16.msra.mxu0 0
  %410 = vmatprep.subr.bf16.mxu0 0
  %411 = vmatpush2.bf16.msra.mxu0 0
  %412 = vmatprep.subr.bf16.mxu0 0
  %413 = vmatpush2.bf16.msra.mxu0 0
  %414 = vmatprep.subr.bf16.mxu0 0
  %415 = vmatpush2.bf16.msra.mxu0 0
  %416 = vmatprep.subr.bf16.mxu0 0
  %417 = vmatpush2.bf16.msra.mxu0 0
  %418 = vmatprep.subr.bf16.mxu0 0
  %419 = vmatpush2.bf16.msra.mxu0 0
  %420 = vmatprep.subr.bf16.mxu0 0
  %421 = vmatpush2.bf16.msra.mxu0 0
  %422 = vmatprep.mubr.bf16.mxu0 0
  %423 = vmatmul.mubr.bf16.gmra.mxu0 %v387
  %v424 = vpop.f32.mrf.mxu0
  %v425 = vadd.f32 0.0, %v424
  %v426 = vpop.f32.mrf.mxu0
  %v427 = vpop.f32.mrf.mxu0
  %v428 = vpop.f32.mrf.mxu0
  %429 = vdwg.mxu0
  %v430 = vadd.f32 %v389, %v425
  %v431 = vtanh.pop %v430
  %v432 = vpack.c.bf16 %v431, %v431
  %433 = vst [vmem:[#allocation3 + $0x8] sm:$0xf] %v432
  %v434 = vld [vmem:[#allocation2 + $0x18] sm:$0xff]
  %435 = vmatprep.subr.bf16.mxu0 0
  %436 = vmatpush1.bf16.msra.mxu0 %v291
  %437 = vmatprep.subr.bf16.mxu0 0
  %438 = vmatpush1.bf16.msra.mxu0 %v290
  %439 = vmatprep.subr.bf16.mxu0 0
  %440 = vmatpush1.bf16.msra.mxu0 %v289
  %441 = vmatprep.subr.bf16.mxu0 0
  %442 = vmatpush1.bf16.msra.mxu0 %v288
  %443 = vmatprep.subr.bf16.mxu0 0
  %444 = vmatpush1.bf16.msra.mxu0 %v287
  %445 = vmatprep.subr.bf16.mxu0 0
  %446 = vmatpush1.bf16.msra.mxu0 %v286
  %447 = vmatprep.subr.bf16.mxu0 0
  %448 = vmatpush1.bf16.msra.mxu0 %v285
  %449 = vmatprep.subr.bf16.mxu0 0
  %450 = vmatpush1.bf16.msra.mxu0 %v284
  %451 = vmatprep.subr.bf16.mxu0 0
  %452 = vmatpush2.bf16.msra.mxu0 0
  %453 = vmatprep.subr.bf16.mxu0 0
  %454 = vmatpush2.bf16.msra.mxu0 0
  %455 = vmatprep.subr.bf16.mxu0 0
  %456 = vmatpush2.bf16.msra.mxu0 0
  %457 = vmatprep.subr.bf16.mxu0 0
  %458 = vmatpush2.bf16.msra.mxu0 0
  %459 = vmatprep.subr.bf16.mxu0 0
  %460 = vmatpush2.bf16.msra.mxu0 0
  %461 = vmatprep.subr.bf16.mxu0 0
  %462 = vmatpush2.bf16.msra.mxu0 0
  %463 = vmatprep.subr.bf16.mxu0 0
  %464 = vmatpush2.bf16.msra.mxu0 0
  %465 = vmatprep.subr.bf16.mxu0 0
  %466 = vmatpush2.bf16.msra.mxu0 0
  %467 = vmatprep.mubr.bf16.mxu0 0
  %468 = vmatmul.mubr.bf16.gmra.mxu0 %v432
  %v469 = vpop.f32.mrf.mxu0
  %v470 = vadd.f32 0.0, %v469
  %v471 = vpop.f32.mrf.mxu0
  %v472 = vpop.f32.mrf.mxu0
  %v473 = vpop.f32.mrf.mxu0
  %474 = vdwg.mxu0
  %v475 = vadd.f32 %v434, %v470
  %v476 = vtanh.pop %v475
  %v477 = vpack.c.bf16 %v476, %v476
  %478 = vst [vmem:[#allocation3 + $0xc] sm:$0xf] %v477
  %v479 = vld [vmem:[#allocation2 + $0x20] sm:$0xff]
  %480 = vmatprep.subr.bf16.mxu0 0
  %481 = vmatpush1.bf16.msra.mxu0 %v291
  %482 = vmatprep.subr.bf16.mxu0 0
  %483 = vmatpush1.bf16.msra.mxu0 %v290
  %484 = vmatprep.subr.bf16.mxu0 0
  %485 = vmatpush1.bf16.msra.mxu0 %v289
  %486 = vmatprep.subr.bf16.mxu0 0
  %487 = vmatpush1.bf16.msra.mxu0 %v288
  %488 = vmatprep.subr.bf16.mxu0 0
  %489 = vmatpush1.bf16.msra.mxu0 %v287
  %490 = vmatprep.subr.bf16.mxu0 0
  %491 = vmatpush1.bf16.msra.mxu0 %v286
  %492 = vmatprep.subr.bf16.mxu0 0
  %493 = vmatpush1.bf16.msra.mxu0 %v285
  %494 = vmatprep.subr.bf16.mxu0 0
  %495 = vmatpush1.bf16.msra.mxu0 %v284
  %496 = vmatprep.subr.bf16.mxu0 0
  %497 = vmatpush2.bf16.msra.mxu0 0
  %498 = vmatprep.subr.bf16.mxu0 0
  %499 = vmatpush2.bf16.msra.mxu0 0
  %500 = vmatprep.subr.bf16.mxu0 0
  %501 = vmatpush2.bf16.msra.mxu0 0
  %502 = vmatprep.subr.bf16.mxu0 0
  %503 = vmatpush2.bf16.msra.mxu0 0
  %504 = vmatprep.subr.bf16.mxu0 0
  %505 = vmatpush2.bf16.msra.mxu0 0
  %506 = vmatprep.subr.bf16.mxu0 0
  %507 = vmatpush2.bf16.msra.mxu0 0
  %508 = vmatprep.subr.bf16.mxu0 0
  %509 = vmatpush2.bf16.msra.mxu0 0
  %510 = vmatprep.subr.bf16.mxu0 0
  %511 = vmatpush2.bf16.msra.mxu0 0
  %512 = vmatprep.mubr.bf16.mxu0 0
  %513 = vmatmul.mubr.bf16.gmra.mxu0 %v477
  %v514 = vpop.f32.mrf.mxu0
  %v515 = vadd.f32 0.0, %v514
  %v516 = vpop.f32.mrf.mxu0
  %v517 = vpop.f32.mrf.mxu0
  %v518 = vpop.f32.mrf.mxu0
  %519 = vdwg.mxu0
  %v520 = vadd.f32 %v479, %v515
  %v521 = vtanh.pop %v520
  %v522 = vpack.c.bf16 %v521, %v521
  %523 = vst [vmem:[#allocation3 + $0x10] sm:$0xf] %v522
  %v524 = vld [vmem:[#allocation2 + $0x28] sm:$0xff]
  %525 = vmatprep.subr.bf16.mxu0 0
  %526 = vmatpush1.bf16.msra.mxu0 %v291
  %527 = vmatprep.subr.bf16.mxu0 0
  %528 = vmatpush1.bf16.msra.mxu0 %v290
  %529 = vmatprep.subr.bf16.mxu0 0
  %530 = vmatpush1.bf16.msra.mxu0 %v289
  %531 = vmatprep.subr.bf16.mxu0 0
  %532 = vmatpush1.bf16.msra.mxu0 %v288
  %533 = vmatprep.subr.bf16.mxu0 0
  %534 = vmatpush1.bf16.msra.mxu0 %v287
  %535 = vmatprep.subr.bf16.mxu0 0
  %536 = vmatpush1.bf16.msra.mxu0 %v286
  %537 = vmatprep.subr.bf16.mxu0 0
  %538 = vmatpush1.bf16.msra.mxu0 %v285
  %539 = vmatprep.subr.bf16.mxu0 0
  %540 = vmatpush1.bf16.msra.mxu0 %v284
  %541 = vmatprep.subr.bf16.mxu0 0
  %542 = vmatpush2.bf16.msra.mxu0 0
  %543 = vmatprep.subr.bf16.mxu0 0
  %544 = vmatpush2.bf16.msra.mxu0 0
  %545 = vmatprep.subr.bf16.mxu0 0
  %546 = vmatpush2.bf16.msra.mxu0 0
  %547 = vmatprep.subr.bf16.mxu0 0
  %548 = vmatpush2.bf16.msra.mxu0 0
  %549 = vmatprep.subr.bf16.mxu0 0
  %550 = vmatpush2.bf16.msra.mxu0 0
  %551 = vmatprep.subr.bf16.mxu0 0
  %552 = vmatpush2.bf16.msra.mxu0 0
  %553 = vmatprep.subr.bf16.mxu0 0
  %554 = vmatpush2.bf16.msra.mxu0 0
  %555 = vmatprep.subr.bf16.mxu0 0
  %556 = vmatpush2.bf16.msra.mxu0 0
  %557 = vmatprep.mubr.bf16.mxu0 0
  %558 = vmatmul.mubr.bf16.gmra.mxu0 %v522
  %v559 = vpop.f32.mrf.mxu0
  %v560 = vadd.f32 0.0, %v559
  %v561 = vpop.f32.mrf.mxu0
  %v562 = vpop.f32.mrf.mxu0
  %v563 = vpop.f32.mrf.mxu0
  %564 = vdwg.mxu0
  %v565 = vadd.f32 %v524, %v560
  %v566 = vtanh.pop %v565
  %v567 = vpack.c.bf16 %v566, %v566
  %568 = vst [vmem:[#allocation3 + $0x14] sm:$0xf] %v567
  %v569 = vld [vmem:[#allocation2 + $0x30] sm:$0xff]
  %570 = vmatprep.subr.bf16.mxu0 0
  %571 = vmatpush1.bf16.msra.mxu0 %v291
  %572 = vmatprep.subr.bf16.mxu0 0
  %573 = vmatpush1.bf16.msra.mxu0 %v290
  %574 = vmatprep.subr.bf16.mxu0 0
  %575 = vmatpush1.bf16.msra.mxu0 %v289
  %576 = vmatprep.subr.bf16.mxu0 0
  %577 = vmatpush1.bf16.msra.mxu0 %v288
  %578 = vmatprep.subr.bf16.mxu0 0
  %579 = vmatpush1.bf16.msra.mxu0 %v287
  %580 = vmatprep.subr.bf16.mxu0 0
  %581 = vmatpush1.bf16.msra.mxu0 %v286
  %582 = vmatprep.subr.bf16.mxu0 0
  %583 = vmatpush1.bf16.msra.mxu0 %v285
  %584 = vmatprep.subr.bf16.mxu0 0
  %585 = vmatpush1.bf16.msra.mxu0 %v284
  %586 = vmatprep.subr.bf16.mxu0 0
  %587 = vmatpush2.bf16.msra.mxu0 0
  %588 = vmatprep.subr.bf16.mxu0 0
  %589 = vmatpush2.bf16.msra.mxu0 0
  %590 = vmatprep.subr.bf16.mxu0 0
  %591 = vmatpush2.bf16.msra.mxu0 0
  %592 = vmatprep.subr.bf16.mxu0 0
  %593 = vmatpush2.bf16.msra.mxu0 0
  %594 = vmatprep.subr.bf16.mxu0 0
  %595 = vmatpush2.bf16.msra.mxu0 0
  %596 = vmatprep.subr.bf16.mxu0 0
  %597 = vmatpush2.bf16.msra.mxu0 0
  %598 = vmatprep.subr.bf16.mxu0 0
  %599 = vmatpush2.bf16.msra.mxu0 0
  %600 = vmatprep.subr.bf16.mxu0 0
  %601 = vmatpush2.bf16.msra.mxu0 0
  %602 = vmatprep.mubr.bf16.mxu0 0
  %603 = vmatmul.mubr.bf16.gmra.mxu0 %v567
  %v604 = vpop.f32.mrf.mxu0
  %v605 = vadd.f32 0.0, %v604
  %v606 = vpop.f32.mrf.mxu0
  %v607 = vpop.f32.mrf.mxu0
  %v608 = vpop.f32.mrf.mxu0
  %609 = vdwg.mxu0
  %v610 = vadd.f32 %v569, %v605
  %v611 = vtanh.pop %v610
  %v612 = vpack.c.bf16 %v611, %v611
  %613 = vst [vmem:[#allocation3 + $0x18] sm:$0xf] %v612
  %v614 = vld [vmem:[#allocation2 + $0x38] sm:$0xff]
  %615 = vmatprep.subr.bf16.mxu0 0
  %616 = vmatpush1.bf16.msra.mxu0 %v291
  %617 = vmatprep.subr.bf16.mxu0 0
  %618 = vmatpush1.bf16.msra.mxu0 %v290
  %619 = vmatprep.subr.bf16.mxu0 0
  %620 = vmatpush1.bf16.msra.mxu0 %v289
  %621 = vmatprep.subr.bf16.mxu0 0
  %622 = vmatpush1.bf16.msra.mxu0 %v288
  %623 = vmatprep.subr.bf16.mxu0 0
  %624 = vmatpush1.bf16.msra.mxu0 %v287
  %625 = vmatprep.subr.bf16.mxu0 0
  %626 = vmatpush1.bf16.msra.mxu0 %v286
  %627 = vmatprep.subr.bf16.mxu0 0
  %628 = vmatpush1.bf16.msra.mxu0 %v285
  %629 = vmatprep.subr.bf16.mxu0 0
  %630 = vmatpush1.bf16.msra.mxu0 %v284
  %631 = vmatprep.subr.bf16.mxu0 0
  %632 = vmatpush2.bf16.msra.mxu0 0
  %633 = vmatprep.subr.bf16.mxu0 0
  %634 = vmatpush2.bf16.msra.mxu0 0
  %635 = vmatprep.subr.bf16.mxu0 0
  %636 = vmatpush2.bf16.msra.mxu0 0
  %637 = vmatprep.subr.bf16.mxu0 0
  %638 = vmatpush2.bf16.msra.mxu0 0
  %639 = vmatprep.subr.bf16.mxu0 0
  %640 = vmatpush2.bf16.msra.mxu0 0
  %641 = vmatprep.subr.bf16.mxu0 0
  %642 = vmatpush2.bf16.msra.mxu0 0
  %643 = vmatprep.subr.bf16.mxu0 0
  %644 = vmatpush2.bf16.msra.mxu0 0
  %645 = vmatprep.subr.bf16.mxu0 0
  %646 = vmatpush2.bf16.msra.mxu0 0
  %647 = vmatprep.mubr.bf16.mxu0 0
  %648 = vmatmul.mubr.bf16.gmra.mxu0 %v612
  %v649 = vpop.f32.mrf.mxu0
  %v650 = vadd.f32 0.0, %v649
  %v651 = vpop.f32.mrf.mxu0
  %v652 = vpop.f32.mrf.mxu0
  %v653 = vpop.f32.mrf.mxu0
  %654 = vdwg.mxu0
  %v655 = vadd.f32 %v614, %v650
  %v656 = vtanh.pop %v655
  %v657 = vpack.c.bf16 %v656, %v656
  %658 = vst [vmem:[#allocation3 + $0x1c] sm:$0xf] %v657
  %v659 = vld [vmem:[#allocation3] sm:$0xf]
  %v660 = vld [vmem:[#allocation3 + $0x4] sm:$0xf]
  %v661 = vld [vmem:[#allocation3 + $0x8] sm:$0xf]
  %v662 = vld [vmem:[#allocation3 + $0xc] sm:$0xf]
  %v663 = vld [vmem:[#allocation3 + $0x10] sm:$0xf]
  %v664 = vld [vmem:[#allocation3 + $0x14] sm:$0xf]
  %v665 = vld [vmem:[#allocation3 + $0x18] sm:$0xf]
  %v666 = vld [vmem:[#allocation3 + $0x1c] sm:$0xf]
  %v667 = vld [vmem:[%s5] sm:$0xf]
  %v668 = vld [vmem:[%s5 + $0x4] sm:$0xf]
  %v669 = vld [vmem:[%s5 + $0x8] sm:$0xf]
  %v670 = vld [vmem:[%s5 + $0xc] sm:$0xf]
  %v671 = vld [vmem:[%s5 + $0x10] sm:$0xf]
  %v672 = vld [vmem:[%s5 + $0x14] sm:$0xf]
  %v673 = vld [vmem:[%s5 + $0x18] sm:$0xf]
  %v674 = vld [vmem:[%s5 + $0x1c] sm:$0xf]
  %v675 = vld [vmem:[%s5 + $0x20] sm:$0xf]
  %v676 = vld [vmem:[%s5 + $0x24] sm:$0xf]
  %v677 = vld [vmem:[%s5 + $0x28] sm:$0xf]
  %v678 = vld [vmem:[%s5 + $0x2c] sm:$0xf]
  %v679 = vld [vmem:[%s5 + $0x30] sm:$0xf]
  %v680 = vld [vmem:[%s5 + $0x34] sm:$0xf]
  %v681 = vld [vmem:[%s5 + $0x38] sm:$0xf]
  %v682 = vld [vmem:[%s5 + $0x3c] sm:$0xf]
  %v684 = vlaneseq
  %v685 = vshrl.u32 %v684, 7
  %v686 = vsub.s32 0, %v685
  %v687 = vrot.slane %v45, %v686
  %v697 = vunpack.c.l.b16 %v659
  %v698 = vunpack.c.l.b16 %v660
  %v699 = vunpack.c.l.b16 %v661
  %v700 = vunpack.c.l.b16 %v662
  %v701 = vunpack.c.l.b16 %v663
  %v702 = vunpack.c.l.b16 %v664
  %v703 = vunpack.c.l.b16 %v665
  %v704 = vunpack.c.l.b16 %v666
  %v705 = vpack.c.b16 %v698, %v697
  %v706 = vpack.c.b16 %v700, %v699
  %v707 = vpack.c.b16 %v702, %v701
  %v708 = vpack.c.b16 %v704, %v703
  %v729 = vunpack.c.l.b16 %v667
  %v730 = vunpack.c.l.b16 %v668
  %v731 = vunpack.c.l.b16 %v669
  %v732 = vunpack.c.l.b16 %v670
  %v733 = vunpack.c.l.b16 %v671
  %v734 = vunpack.c.l.b16 %v672
  %v735 = vunpack.c.l.b16 %v673
  %v736 = vunpack.c.l.b16 %v674
  %v737 = vunpack.c.l.b16 %v675
  %v738 = vunpack.c.l.b16 %v676
  %v739 = vunpack.c.l.b16 %v677
  %v740 = vunpack.c.l.b16 %v678
  %v741 = vunpack.c.l.b16 %v679
  %v742 = vunpack.c.l.b16 %v680
  %v743 = vunpack.c.l.b16 %v681
  %v744 = vunpack.c.l.b16 %v682
  %v745 = vpack.c.b16 %v730, %v729
  %v746 = vpack.c.b16 %v732, %v731
  %v747 = vpack.c.b16 %v734, %v733
  %v748 = vpack.c.b16 %v736, %v735
  %v749 = vpack.c.b16 %v738, %v737
  %v750 = vpack.c.b16 %v740, %v739
  %v751 = vpack.c.b16 %v742, %v741
  %v752 = vpack.c.b16 %v744, %v743
  %761 = vmatprep.subr.bf16.mxu0 0
  %762 = vmatpush1.bf16.msra.mxu0 %v752
  %763 = vmatprep.subr.bf16.mxu0 0
  %764 = vmatpush1.bf16.msra.mxu0 %v751
  %765 = vmatprep.subr.bf16.mxu0 0
  %766 = vmatpush1.bf16.msra.mxu0 %v750
  %767 = vmatprep.subr.bf16.mxu0 0
  %768 = vmatpush1.bf16.msra.mxu0 %v749
  %769 = vmatprep.subr.bf16.mxu0 0
  %770 = vmatpush1.bf16.msra.mxu0 %v748
  %771 = vmatprep.subr.bf16.mxu0 0
  %772 = vmatpush1.bf16.msra.mxu0 %v747
  %773 = vmatprep.subr.bf16.mxu0 0
  %774 = vmatpush1.bf16.msra.mxu0 %v746
  %775 = vmatprep.subr.bf16.mxu0 0
  %776 = vmatpush1.bf16.msra.mxu0 %v745
  %777 = vmatprep.subr.bf16.mxu0 0
  %778 = vmatpush2.bf16.msra.mxu0 0
  %779 = vmatprep.subr.bf16.mxu0 0
  %780 = vmatpush2.bf16.msra.mxu0 0
  %781 = vmatprep.subr.bf16.mxu0 0
  %782 = vmatpush2.bf16.msra.mxu0 0
  %783 = vmatprep.subr.bf16.mxu0 0
  %784 = vmatpush2.bf16.msra.mxu0 0
  %785 = vmatprep.subr.bf16.mxu0 0
  %786 = vmatpush2.bf16.msra.mxu0 0
  %787 = vmatprep.subr.bf16.mxu0 0
  %788 = vmatpush2.bf16.msra.mxu0 0
  %789 = vmatprep.subr.bf16.mxu0 0
  %790 = vmatpush2.bf16.msra.mxu0 0
  %791 = vmatprep.subr.bf16.mxu0 0
  %792 = vmatpush2.bf16.msra.mxu0 0
  %793 = vmatprep.mubr.bf16.mxu0 0
  %794 = vmatmul.mubr.bf16.gmra.mxu0 %v705
  %v795 = vpop.f32.mrf.mxu0
  %v796 = vadd.f32 %v687, %v795
  %v797 = vpop.f32.mrf.mxu0
  %v798 = vpop.f32.mrf.mxu0
  %v799 = vadd.f32 %v687, %v798
  %v800 = vpop.f32.mrf.mxu0
  %801 = vmatprep.mubr.bf16.mxu0 0
  %802 = vmatmul.mubr.bf16.gmra.mxu0 %v706
  %v803 = vpop.f32.mrf.mxu0
  %v804 = vadd.f32 %v687, %v803
  %v805 = vpop.f32.mrf.mxu0
  %v806 = vpop.f32.mrf.mxu0
  %v807 = vadd.f32 %v687, %v806
  %v808 = vpop.f32.mrf.mxu0
  %809 = vmatprep.mubr.bf16.mxu0 0
  %810 = vmatmul.mubr.bf16.gmra.mxu0 %v707
  %v811 = vpop.f32.mrf.mxu0
  %v812 = vadd.f32 %v687, %v811
  %v813 = vpop.f32.mrf.mxu0
  %v814 = vpop.f32.mrf.mxu0
  %v815 = vadd.f32 %v687, %v814
  %v816 = vpop.f32.mrf.mxu0
  %817 = vmatprep.mubr.bf16.mxu0 0
  %818 = vmatmul.mubr.bf16.gmra.mxu0 %v708
  %v819 = vpop.f32.mrf.mxu0
  %v820 = vadd.f32 %v687, %v819
  %v821 = vpop.f32.mrf.mxu0
  %v822 = vpop.f32.mrf.mxu0
  %v823 = vadd.f32 %v687, %v822
  %v824 = vpop.f32.mrf.mxu0
  %825 = vdwg.mxu0
  %826 = vst [vmem:[%s7] sm:$0xff] %v796
  %827 = vst [vmem:[%s7 + $0x8] sm:$0xff] %v799
  %828 = vst [vmem:[%s7 + $0x10] sm:$0xff] %v804
  %829 = vst [vmem:[%s7 + $0x18] sm:$0xff] %v807
  %830 = vst [vmem:[%s7 + $0x20] sm:$0xff] %v812
  %831 = vst [vmem:[%s7 + $0x28] sm:$0xff] %v815
  %832 = vst [vmem:[%s7 + $0x30] sm:$0xff] %v820
  %833 = vst [vmem:[%s7 + $0x38] sm:$0xff] %v823
  %v834 = vcvt.s32.f32 %v55
  %vm835 = vcmp.eq.s32.totalorder %v55, 16
  %v836 = vsel %vm835, 1, 0
  %v837 = vcvt.s32.f32 %v836
  %v838 = vpack.c.bf16 %v837, %v837
  %v839 = vld [vmem:[%s1] sm:$0xf]
  %v840 = vld [vmem:[%s1 + $0x4] sm:$0xf]
  %v841 = vld [vmem:[%s1 + $0x8] sm:$0xf]
  %v842 = vld [vmem:[%s1 + $0xc] sm:$0xf]
  %v843 = vld [vmem:[%s1 + $0x10] sm:$0xf]
  %v844 = vld [vmem:[%s1 + $0x14] sm:$0xf]
  %v845 = vld [vmem:[%s1 + $0x18] sm:$0xf]
  %v846 = vld [vmem:[%s1 + $0x1c] sm:$0xf]
  %v847 = vld [vmem:[%s1 + $0x20] sm:$0xf]
  %v848 = vld [vmem:[%s1 + $0x24] sm:$0xf]
  %v849 = vld [vmem:[%s1 + $0x28] sm:$0xf]
  %v850 = vld [vmem:[%s1 + $0x2c] sm:$0xf]
  %v851 = vld [vmem:[%s1 + $0x30] sm:$0xf]
  %v852 = vld [vmem:[%s1 + $0x34] sm:$0xf]
  %v853 = vld [vmem:[%s1 + $0x38] sm:$0xf]
  %v854 = vld [vmem:[%s1 + $0x3c] sm:$0xf]
  %v856 = vlaneseq
  %v857 = vshrl.u32 %v856, 7
  %v858 = vsub.s32 0, %v857
  %v859 = vrot.slane %v44, %v858
  %v877 = vunpack.c.l.b16 %v839
  %v878 = vunpack.c.l.b16 %v840
  %v879 = vunpack.c.l.b16 %v841
  %v880 = vunpack.c.l.b16 %v842
  %v881 = vunpack.c.l.b16 %v843
  %v882 = vunpack.c.l.b16 %v844
  %v883 = vunpack.c.l.b16 %v845
  %v884 = vunpack.c.l.b16 %v846
  %v885 = vunpack.c.l.b16 %v847
  %v886 = vunpack.c.l.b16 %v848
  %v887 = vunpack.c.l.b16 %v849
  %v888 = vunpack.c.l.b16 %v850
  %v889 = vunpack.c.l.b16 %v851
  %v890 = vunpack.c.l.b16 %v852
  %v891 = vunpack.c.l.b16 %v853
  %v892 = vunpack.c.l.b16 %v854
  %v893 = vpack.c.b16 %v878, %v877
  %v894 = vpack.c.b16 %v880, %v879
  %v895 = vpack.c.b16 %v882, %v881
  %v896 = vpack.c.b16 %v884, %v883
  %v897 = vpack.c.b16 %v886, %v885
  %v898 = vpack.c.b16 %v888, %v887
  %v899 = vpack.c.b16 %v890, %v889
  %v900 = vpack.c.b16 %v892, %v891
  %909 = vmatprep.subr.bf16.mxu0 0
  %910 = vmatpush1.bf16.msra.mxu0 %v900
  %911 = vmatprep.subr.bf16.mxu0 0
  %912 = vmatpush1.bf16.msra.mxu0 %v899
  %913 = vmatprep.subr.bf16.mxu0 0
  %914 = vmatpush1.bf16.msra.mxu0 %v898
  %915 = vmatprep.subr.bf16.mxu0 0
  %916 = vmatpush1.bf16.msra.mxu0 %v897
  %917 = vmatprep.subr.bf16.mxu0 0
  %918 = vmatpush1.bf16.msra.mxu0 %v896
  %919 = vmatprep.subr.bf16.mxu0 0
  %920 = vmatpush1.bf16.msra.mxu0 %v895
  %921 = vmatprep.subr.bf16.mxu0 0
  %922 = vmatpush1.bf16.msra.mxu0 %v894
  %923 = vmatprep.subr.bf16.mxu0 0
  %924 = vmatpush1.bf16.msra.mxu0 %v893
  %925 = vmatprep.subr.bf16.mxu0 0
  %926 = vmatpush2.bf16.msra.mxu0 0
  %927 = vmatprep.subr.bf16.mxu0 0
  %928 = vmatpush2.bf16.msra.mxu0 0
  %929 = vmatprep.subr.bf16.mxu0 0
  %930 = vmatpush2.bf16.msra.mxu0 0
  %931 = vmatprep.subr.bf16.mxu0 0
  %932 = vmatpush2.bf16.msra.mxu0 0
  %933 = vmatprep.subr.bf16.mxu0 0
  %934 = vmatpush2.bf16.msra.mxu0 0
  %935 = vmatprep.subr.bf16.mxu0 0
  %936 = vmatpush2.bf16.msra.mxu0 0
  %937 = vmatprep.subr.bf16.mxu0 0
  %938 = vmatpush2.bf16.msra.mxu0 0
  %939 = vmatprep.subr.bf16.mxu0 0
  %940 = vmatpush2.bf16.msra.mxu0 0
  %941 = vmatprep.mubr.bf16.mxu0 0
  %942 = vmatmul.mubr.bf16.gmra.mxu0 %v838
  %v943 = vpop.f32.mrf.mxu0
  %v944 = vadd.f32 %v859, %v943
  %v945 = vpop.f32.mrf.mxu0
  %v946 = vpop.f32.mrf.mxu0
  %v947 = vpop.f32.mrf.mxu0
  %948 = vdwg.mxu0
  %949 = vmatprep.subr.bf16.mxu0 0
  %950 = vmatpush1.bf16.msra.mxu0 %v291
  %951 = vmatprep.subr.bf16.mxu0 0
  %952 = vmatpush1.bf16.msra.mxu0 %v290
  %953 = vmatprep.subr.bf16.mxu0 0
  %954 = vmatpush1.bf16.msra.mxu0 %v289
  %955 = vmatprep.subr.bf16.mxu0 0
  %956 = vmatpush1.bf16.msra.mxu0 %v288
  %957 = vmatprep.subr.bf16.mxu0 0
  %958 = vmatpush1.bf16.msra.mxu0 %v287
  %959 = vmatprep.subr.bf16.mxu0 0
  %960 = vmatpush1.bf16.msra.mxu0 %v286
  %961 = vmatprep.subr.bf16.mxu0 0
  %962 = vmatpush1.bf16.msra.mxu0 %v285
  %963 = vmatprep.subr.bf16.mxu0 0
  %964 = vmatpush1.bf16.msra.mxu0 %v284
  %965 = vmatprep.subr.bf16.mxu0 0
  %966 = vmatpush2.bf16.msra.mxu0 0
  %967 = vmatprep.subr.bf16.mxu0 0
  %968 = vmatpush2.bf16.msra.mxu0 0
  %969 = vmatprep.subr.bf16.mxu0 0
  %970 = vmatpush2.bf16.msra.mxu0 0
  %971 = vmatprep.subr.bf16.mxu0 0
  %972 = vmatpush2.bf16.msra.mxu0 0
  %973 = vmatprep.subr.bf16.mxu0 0
  %974 = vmatpush2.bf16.msra.mxu0 0
  %975 = vmatprep.subr.bf16.mxu0 0
  %976 = vmatpush2.bf16.msra.mxu0 0
  %977 = vmatprep.subr.bf16.mxu0 0
  %978 = vmatpush2.bf16.msra.mxu0 0
  %979 = vmatprep.subr.bf16.mxu0 0
  %980 = vmatpush2.bf16.msra.mxu0 0
  %981 = vmatprep.mubr.bf16.mxu0 0
  %982 = vmatmul.mubr.bf16.gmra.mxu0 %v657
  %v983 = vpop.f32.mrf.mxu0
  %v984 = vadd.f32 0.0, %v983
  %v985 = vpop.f32.mrf.mxu0
  %v986 = vpop.f32.mrf.mxu0
  %v987 = vpop.f32.mrf.mxu0
  %988 = vdwg.mxu0
  %v989 = vadd.f32 %v944, %v984
  %v990 = vtanh.pop %v989
  %v991 = vpack.c.bf16 %v990, %v990
  %v992 = vld [vmem:[%s5] sm:$0xf]
  %v993 = vld [vmem:[%s5 + $0x4] sm:$0xf]
  %v994 = vld [vmem:[%s5 + $0x8] sm:$0xf]
  %v995 = vld [vmem:[%s5 + $0xc] sm:$0xf]
  %v996 = vld [vmem:[%s5 + $0x10] sm:$0xf]
  %v997 = vld [vmem:[%s5 + $0x14] sm:$0xf]
  %v998 = vld [vmem:[%s5 + $0x18] sm:$0xf]
  %v999 = vld [vmem:[%s5 + $0x1c] sm:$0xf]
  %v1000 = vld [vmem:[%s5 + $0x20] sm:$0xf]
  %v1001 = vld [vmem:[%s5 + $0x24] sm:$0xf]
  %v1002 = vld [vmem:[%s5 + $0x28] sm:$0xf]
  %v1003 = vld [vmem:[%s5 + $0x2c] sm:$0xf]
  %v1004 = vld [vmem:[%s5 + $0x30] sm:$0xf]
  %v1005 = vld [vmem:[%s5 + $0x34] sm:$0xf]
  %v1006 = vld [vmem:[%s5 + $0x38] sm:$0xf]
  %v1007 = vld [vmem:[%s5 + $0x3c] sm:$0xf]
  %v1024 = vunpack.c.l.b16 %v992
  %v1025 = vunpack.c.l.b16 %v993
  %v1026 = vunpack.c.l.b16 %v994
  %v1027 = vunpack.c.l.b16 %v995
  %v1028 = vunpack.c.l.b16 %v996
  %v1029 = vunpack.c.l.b16 %v997
  %v1030 = vunpack.c.l.b16 %v998
  %v1031 = vunpack.c.l.b16 %v999
  %v1032 = vunpack.c.l.b16 %v1000
  %v1033 = vunpack.c.l.b16 %v1001
  %v1034 = vunpack.c.l.b16 %v1002
  %v1035 = vunpack.c.l.b16 %v1003
  %v1036 = vunpack.c.l.b16 %v1004
  %v1037 = vunpack.c.l.b16 %v1005
  %v1038 = vunpack.c.l.b16 %v1006
  %v1039 = vunpack.c.l.b16 %v1007
  %v1040 = vpack.c.b16 %v1025, %v1024
  %v1041 = vpack.c.b16 %v1027, %v1026
  %v1042 = vpack.c.b16 %v1029, %v1028
  %v1043 = vpack.c.b16 %v1031, %v1030
  %v1044 = vpack.c.b16 %v1033, %v1032
  %v1045 = vpack.c.b16 %v1035, %v1034
  %v1046 = vpack.c.b16 %v1037, %v1036
  %v1047 = vpack.c.b16 %v1039, %v1038
  %1056 = vmatprep.subr.bf16.mxu0 0
  %1057 = vmatpush1.bf16.msra.mxu0 %v1047
  %1058 = vmatprep.subr.bf16.mxu0 0
  %1059 = vmatpush1.bf16.msra.mxu0 %v1046
  %1060 = vmatprep.subr.bf16.mxu0 0
  %1061 = vmatpush1.bf16.msra.mxu0 %v1045
  %1062 = vmatprep.subr.bf16.mxu0 0
  %1063 = vmatpush1.bf16.msra.mxu0 %v1044
  %1064 = vmatprep.subr.bf16.mxu0 0
  %1065 = vmatpush1.bf16.msra.mxu0 %v1043
  %1066 = vmatprep.subr.bf16.mxu0 0
  %1067 = vmatpush1.bf16.msra.mxu0 %v1042
  %1068 = vmatprep.subr.bf16.mxu0 0
  %1069 = vmatpush1.bf16.msra.mxu0 %v1041
  %1070 = vmatprep.subr.bf16.mxu0 0
  %1071 = vmatpush1.bf16.msra.mxu0 %v1040
  %1072 = vmatprep.subr.bf16.mxu0 0
  %1073 = vmatpush2.bf16.msra.mxu0 0
  %1074 = vmatprep.subr.bf16.mxu0 0
  %1075 = vmatpush2.bf16.msra.mxu0 0
  %1076 = vmatprep.subr.bf16.mxu0 0
  %1077 = vmatpush2.bf16.msra.mxu0 0
  %1078 = vmatprep.subr.bf16.mxu0 0
  %1079 = vmatpush2.bf16.msra.mxu0 0
  %1080 = vmatprep.subr.bf16.mxu0 0
  %1081 = vmatpush2.bf16.msra.mxu0 0
  %1082 = vmatprep.subr.bf16.mxu0 0
  %1083 = vmatpush2.bf16.msra.mxu0 0
  %1084 = vmatprep.subr.bf16.mxu0 0
  %1085 = vmatpush2.bf16.msra.mxu0 0
  %1086 = vmatprep.subr.bf16.mxu0 0
  %1087 = vmatpush2.bf16.msra.mxu0 0
  %1088 = vmatprep.mubr.bf16.mxu0 0
  %1089 = vmatmul.mubr.bf16.gmra.mxu0 %v991
  %v1090 = vpop.f32.mrf.mxu0
  %v1091 = vadd.f32 %v687, %v1090
  %v1092 = vpop.f32.mrf.mxu0
  %v1093 = vpop.f32.mrf.mxu0
  %v1094 = vpop.f32.mrf.mxu0
  %1095 = vdwg.mxu0
  %1096 = vst [vmem:[%s7 + $0x40] sm:$0xff] %v1091
  %1097 = vmax.xlane.f32.xlu0 %v1091
  %v1098 = vpop.xlane.xlu0 %1097
  %vm1099 = vcmp.eq.f32.partialorder %v1091, %v1098
  %v1100 = vsel %vm1099, %v834, 128.0
  %1101 = vmin.xlane.f32.xlu0 %v1100
  %v1102 = vpop.xlane.xlu0 %1101
  %v1103 = vcvt.f32.s32.to.zero.pseudo %v1102
  %vm1104 = vcmp.eq.s32.totalorder %v1103, %v55
  %v1105 = vsel %vm1104, 1, 0
  %v1106 = vcvt.s32.f32 %v1105
  %v1107 = vpack.c.bf16 %v1106, %v1106
  %v1108 = vld [vmem:[%s1] sm:$0xf]
  %v1109 = vld [vmem:[%s1 + $0x4] sm:$0xf]
  %v1110 = vld [vmem:[%s1 + $0x8] sm:$0xf]
  %v1111 = vld [vmem:[%s1 + $0xc] sm:$0xf]
  %v1112 = vld [vmem:[%s1 + $0x10] sm:$0xf]
  %v1113 = vld [vmem:[%s1 + $0x14] sm:$0xf]
  %v1114 = vld [vmem:[%s1 + $0x18] sm:$0xf]
  %v1115 = vld [vmem:[%s1 + $0x1c] sm:$0xf]
  %v1116 = vld [vmem:[%s1 + $0x20] sm:$0xf]
  %v1117 = vld [vmem:[%s1 + $0x24] sm:$0xf]
  %v1118 = vld [vmem:[%s1 + $0x28] sm:$0xf]
  %v1119 = vld [vmem:[%s1 + $0x2c] sm:$0xf]
  %v1120 = vld [vmem:[%s1 + $0x30] sm:$0xf]
  %v1121 = vld [vmem:[%s1 + $0x34] sm:$0xf]
  %v1122 = vld [vmem:[%s1 + $0x38] sm:$0xf]
  %v1123 = vld [vmem:[%s1 + $0x3c] sm:$0xf]
  %v1140 = vunpack.c.l.b16 %v1108
  %v1141 = vunpack.c.l.b16 %v1109
  %v1142 = vunpack.c.l.b16 %v1110
  %v1143 = vunpack.c.l.b16 %v1111
  %v1144 = vunpack.c.l.b16 %v1112
  %v1145 = vunpack.c.l.b16 %v1113
  %v1146 = vunpack.c.l.b16 %v1114
  %v1147 = vunpack.c.l.b16 %v1115
  %v1148 = vunpack.c.l.b16 %v1116
  %v1149 = vunpack.c.l.b16 %v1117
  %v1150 = vunpack.c.l.b16 %v1118
  %v1151 = vunpack.c.l.b16 %v1119
  %v1152 = vunpack.c.l.b16 %v1120
  %v1153 = vunpack.c.l.b16 %v1121
  %v1154 = vunpack.c.l.b16 %v1122
  %v1155 = vunpack.c.l.b16 %v1123
  %v1156 = vpack.c.b16 %v1141, %v1140
  %v1157 = vpack.c.b16 %v1143, %v1142
  %v1158 = vpack.c.b16 %v1145, %v1144
  %v1159 = vpack.c.b16 %v1147, %v1146
  %v1160 = vpack.c.b16 %v1149, %v1148
  %v1161 = vpack.c.b16 %v1151, %v1150
  %v1162 = vpack.c.b16 %v1153, %v1152
  %v1163 = vpack.c.b16 %v1155, %v1154
  %1172 = vmatprep.subr.bf16.mxu0 0
  %1173 = vmatpush1.bf16.msra.mxu0 %v1163
  %1174 = vmatprep.subr.bf16.mxu0 0
  %1175 = vmatpush1.bf16.msra.mxu0 %v1162
  %1176 = vmatprep.subr.bf16.mxu0 0
  %1177 = vmatpush1.bf16.msra.mxu0 %v1161
  %1178 = vmatprep.subr.bf16.mxu0 0
  %1179 = vmatpush1.bf16.msra.mxu0 %v1160
  %1180 = vmatprep.subr.bf16.mxu0 0
  %1181 = vmatpush1.bf16.msra.mxu0 %v1159
  %1182 = vmatprep.subr.bf16.mxu0 0
  %1183 = vmatpush1.bf16.msra.mxu0 %v1158
  %1184 = vmatprep.subr.bf16.mxu0 0
  %1185 = vmatpush1.bf16.msra.mxu0 %v1157
  %1186 = vmatprep.subr.bf16.mxu0 0
  %1187 = vmatpush1.bf16.msra.mxu0 %v1156
  %1188 = vmatprep.subr.bf16.mxu0 0
  %1189 = vmatpush2.bf16.msra.mxu0 0
  %1190 = vmatprep.subr.bf16.mxu0 0
  %1191 = vmatpush2.bf16.msra.mxu0 0
  %1192 = vmatprep.subr.bf16.mxu0 0
  %1193 = vmatpush2.bf16.msra.mxu0 0
  %1194 = vmatprep.subr.bf16.mxu0 0
  %1195 = vmatpush2.bf16.msra.mxu0 0
  %1196 = vmatprep.subr.bf16.mxu0 0
  %1197 = vmatpush2.bf16.msra.mxu0 0
  %1198 = vmatprep.subr.bf16.mxu0 0
  %1199 = vmatpush2.bf16.msra.mxu0 0
  %1200 = vmatprep.subr.bf16.mxu0 0
  %1201 = vmatpush2.bf16.msra.mxu0 0
  %1202 = vmatprep.subr.bf16.mxu0 0
  %1203 = vmatpush2.bf16.msra.mxu0 0
  %1204 = vmatprep.mubr.bf16.mxu0 0
  %1205 = vmatmul.mubr.bf16.gmra.mxu0 %v1107
  %v1206 = vpop.f32.mrf.mxu0
  %v1207 = vadd.f32 %v859, %v1206
  %v1208 = vpop.f32.mrf.mxu0
  %v1209 = vpop.f32.mrf.mxu0
  %v1210 = vpop.f32.mrf.mxu0
  %1211 = vdwg.mxu0
  %1212 = vmatprep.subr.bf16.mxu0 0
  %1213 = vmatpush1.bf16.msra.mxu0 %v291
  %1214 = vmatprep.subr.bf16.mxu0 0
  %1215 = vmatpush1.bf16.msra.mxu0 %v290
  %1216 = vmatprep.subr.bf16.mxu0 0
  %1217 = vmatpush1.bf16.msra.mxu0 %v289
  %1218 = vmatprep.subr.bf16.mxu0 0
  %1219 = vmatpush1.bf16.msra.mxu0 %v288
  %1220 = vmatprep.subr.bf16.mxu0 0
  %1221 = vmatpush1.bf16.msra.mxu0 %v287
  %1222 = vmatprep.subr.bf16.mxu0 0
  %1223 = vmatpush1.bf16.msra.mxu0 %v286
  %1224 = vmatprep.subr.bf16.mxu0 0
  %1225 = vmatpush1.bf16.msra.mxu0 %v285
  %1226 = vmatprep.subr.bf16.mxu0 0
  %1227 = vmatpush1.bf16.msra.mxu0 %v284
  %1228 = vmatprep.subr.bf16.mxu0 0
  %1229 = vmatpush2.bf16.msra.mxu0 0
  %1230 = vmatprep.subr.bf16.mxu0 0
  %1231 = vmatpush2.bf16.msra.mxu0 0
  %1232 = vmatprep.subr.bf16.mxu0 0
  %1233 = vmatpush2.bf16.msra.mxu0 0
  %1234 = vmatprep.subr.bf16.mxu0 0
  %1235 = vmatpush2.bf16.msra.mxu0 0
  %1236 = vmatprep.subr.bf16.mxu0 0
  %1237 = vmatpush2.bf16.msra.mxu0 0
  %1238 = vmatprep.subr.bf16.mxu0 0
  %1239 = vmatpush2.bf16.msra.mxu0 0
  %1240 = vmatprep.subr.bf16.mxu0 0
  %1241 = vmatpush2.bf16.msra.mxu0 0
  %1242 = vmatprep.subr.bf16.mxu0 0
  %1243 = vmatpush2.bf16.msra.mxu0 0
  %1244 = vmatprep.mubr.bf16.mxu0 0
  %1245 = vmatmul.mubr.bf16.gmra.mxu0 %v991
  %v1246 = vpop.f32.mrf.mxu0
  %v1247 = vadd.f32 0.0, %v1246
  %v1248 = vpop.f32.mrf.mxu0
  %v1249 = vpop.f32.mrf.mxu0
  %v1250 = vpop.f32.mrf.mxu0
  %1251 = vdwg.mxu0
  %v1252 = vadd.f32 %v1207, %v1247
  %v1253 = vtanh.pop %v1252
  %v1254 = vpack.c.bf16 %v1253, %v1253
  %v1255 = vld [vmem:[%s5] sm:$0xf]
  %v1256 = vld [vmem:[%s5 + $0x4] sm:$0xf]
  %v1257 = vld [vmem:[%s5 + $0x8] sm:$0xf]
  %v1258 = vld [vmem:[%s5 + $0xc] sm:$0xf]
  %v1259 = vld [vmem:[%s5 + $0x10] sm:$0xf]
  %v1260 = vld [vmem:[%s5 + $0x14] sm:$0xf]
  %v1261 = vld [vmem:[%s5 + $0x18] sm:$0xf]
  %v1262 = vld [vmem:[%s5 + $0x1c] sm:$0xf]
  %v1263 = vld [vmem:[%s5 + $0x20] sm:$0xf]
  %v1264 = vld [vmem:[%s5 + $0x24] sm:$0xf]
  %v1265 = vld [vmem:[%s5 + $0x28] sm:$0xf]
  %v1266 = vld [vmem:[%s5 + $0x2c] sm:$0xf]
  %v1267 = vld [vmem:[%s5 + $0x30] sm:$0xf]
  %v1268 = vld [vmem:[%s5 + $0x34] sm:$0xf]
  %v1269 = vld [vmem:[%s5 + $0x38] sm:$0xf]
  %v1270 = vld [vmem:[%s5 + $0x3c] sm:$0xf]
  %v1287 = vunpack.c.l.b16 %v1255
  %v1288 = vunpack.c.l.b16 %v1256
  %v1289 = vunpack.c.l.b16 %v1257
  %v1290 = vunpack.c.l.b16 %v1258
  %v1291 = vunpack.c.l.b16 %v1259
  %v1292 = vunpack.c.l.b16 %v1260
  %v1293 = vunpack.c.l.b16 %v1261
  %v1294 = vunpack.c.l.b16 %v1262
  %v1295 = vunpack.c.l.b16 %v1263
  %v1296 = vunpack.c.l.b16 %v1264
  %v1297 = vunpack.c.l.b16 %v1265
  %v1298 = vunpack.c.l.b16 %v1266
  %v1299 = vunpack.c.l.b16 %v1267
  %v1300 = vunpack.c.l.b16 %v1268
  %v1301 = vunpack.c.l.b16 %v1269
  %v1302 = vunpack.c.l.b16 %v1270
  %v1303 = vpack.c.b16 %v1288, %v1287
  %v1304 = vpack.c.b16 %v1290, %v1289
  %v1305 = vpack.c.b16 %v1292, %v1291
  %v1306 = vpack.c.b16 %v1294, %v1293
  %v1307 = vpack.c.b16 %v1296, %v1295
  %v1308 = vpack.c.b16 %v1298, %v1297
  %v1309 = vpack.c.b16 %v1300, %v1299
  %v1310 = vpack.c.b16 %v1302, %v1301
  %1319 = vmatprep.subr.bf16.mxu0 0
  %1320 = vmatpush1.bf16.msra.mxu0 %v1310
  %1321 = vmatprep.subr.bf16.mxu0 0
  %1322 = vmatpush1.bf16.msra.mxu0 %v1309
  %1323 = vmatprep.subr.bf16.mxu0 0
  %1324 = vmatpush1.bf16.msra.mxu0 %v1308
  %1325 = vmatprep.subr.bf16.mxu0 0
  %1326 = vmatpush1.bf16.msra.mxu0 %v1307
  %1327 = vmatprep.subr.bf16.mxu0 0
  %1328 = vmatpush1.bf16.msra.mxu0 %v1306
  %1329 = vmatprep.subr.bf16.mxu0 0
  %1330 = vmatpush1.bf16.msra.mxu0 %v1305
  %1331 = vmatprep.subr.bf16.mxu0 0
  %1332 = vmatpush1.bf16.msra.mxu0 %v1304
  %1333 = vmatprep.subr.bf16.mxu0 0
  %1334 = vmatpush1.bf16.msra.mxu0 %v1303
  %1335 = vmatprep.subr.bf16.mxu0 0
  %1336 = vmatpush2.bf16.msra.mxu0 0
  %1337 = vmatprep.subr.bf16.mxu0 0
  %1338 = vmatpush2.bf16.msra.mxu0 0
  %1339 = vmatprep.subr.bf16.mxu0 0
  %1340 = vmatpush2.bf16.msra.mxu0 0
  %1341 = vmatprep.subr.bf16.mxu0 0
  %1342 = vmatpush2.bf16.msra.mxu0 0
  %1343 = vmatprep.subr.bf16.mxu0 0
  %1344 = vmatpush2.bf16.msra.mxu0 0
  %1345 = vmatprep.subr.bf16.mxu0 0
  %1346 = vmatpush2.bf16.msra.mxu0 0
  %1347 = vmatprep.subr.bf16.mxu0 0
  %1348 = vmatpush2.bf16.msra.mxu0 0
  %1349 = vmatprep.subr.bf16.mxu0 0
  %1350 = vmatpush2.bf16.msra.mxu0 0
  %1351 = vmatprep.mubr.bf16.mxu0 0
  %1352 = vmatmul.mubr.bf16.gmra.mxu0 %v1254
  %v1353 = vpop.f32.mrf.mxu0
  %v1354 = vadd.f32 %v687, %v1353
  %v1355 = vpop.f32.mrf.mxu0
  %v1356 = vpop.f32.mrf.mxu0
  %v1357 = vpop.f32.mrf.mxu0
  %1358 = vdwg.mxu0
  %1359 = vst [vmem:[%s7 + $0x48] sm:$0xff] %v1354
  %1360 = vmax.xlane.f32.xlu0 %v1354
  %v1361 = vpop.xlane.xlu0 %1360
  %vm1362 = vcmp.eq.f32.partialorder %v1354, %v1361
  %v1363 = vsel %vm1362, %v834, 128.0
  %1364 = vmin.xlane.f32.xlu0 %v1363
  %v1365 = vpop.xlane.xlu0 %1364
  %v1366 = vcvt.f32.s32.to.zero.pseudo %v1365
  %vm1367 = vcmp.eq.s32.totalorder %v1366, %v55
  %v1368 = vsel %vm1367, 1, 0
  %v1369 = vcvt.s32.f32 %v1368
  %v1370 = vpack.c.bf16 %v1369, %v1369
  %v1371 = vld [vmem:[%s1] sm:$0xf]
  %v1372 = vld [vmem:[%s1 + $0x4] sm:$0xf]
  %v1373 = vld [vmem:[%s1 + $0x8] sm:$0xf]
  %v1374 = vld [vmem:[%s1 + $0xc] sm:$0xf]
  %v1375 = vld [vmem:[%s1 + $0x10] sm:$0xf]
  %v1376 = vld [vmem:[%s1 + $0x14] sm:$0xf]
  %v1377 = vld [vmem:[%s1 + $0x18] sm:$0xf]
  %v1378 = vld [vmem:[%s1 + $0x1c] sm:$0xf]
  %v1379 = vld [vmem:[%s1 + $0x20] sm:$0xf]
  %v1380 = vld [vmem:[%s1 + $0x24] sm:$0xf]
  %v1381 = vld [vmem:[%s1 + $0x28] sm:$0xf]
  %v1382 = vld [vmem:[%s1 + $0x2c] sm:$0xf]
  %v1383 = vld [vmem:[%s1 + $0x30] sm:$0xf]
  %v1384 = vld [vmem:[%s1 + $0x34] sm:$0xf]
  %v1385 = vld [vmem:[%s1 + $0x38] sm:$0xf]
  %v1386 = vld [vmem:[%s1 + $0x3c] sm:$0xf]
  %v1403 = vunpack.c.l.b16 %v1371
  %v1404 = vunpack.c.l.b16 %v1372
  %v1405 = vunpack.c.l.b16 %v1373
  %v1406 = vunpack.c.l.b16 %v1374
  %v1407 = vunpack.c.l.b16 %v1375
  %v1408 = vunpack.c.l.b16 %v1376
  %v1409 = vunpack.c.l.b16 %v1377
  %v1410 = vunpack.c.l.b16 %v1378
  %v1411 = vunpack.c.l.b16 %v1379
  %v1412 = vunpack.c.l.b16 %v1380
  %v1413 = vunpack.c.l.b16 %v1381
  %v1414 = vunpack.c.l.b16 %v1382
  %v1415 = vunpack.c.l.b16 %v1383
  %v1416 = vunpack.c.l.b16 %v1384
  %v1417 = vunpack.c.l.b16 %v1385
  %v1418 = vunpack.c.l.b16 %v1386
  %v1419 = vpack.c.b16 %v1404, %v1403
  %v1420 = vpack.c.b16 %v1406, %v1405
  %v1421 = vpack.c.b16 %v1408, %v1407
  %v1422 = vpack.c.b16 %v1410, %v1409
  %v1423 = vpack.c.b16 %v1412, %v1411
  %v1424 = vpack.c.b16 %v1414, %v1413
  %v1425 = vpack.c.b16 %v1416, %v1415
  %v1426 = vpack.c.b16 %v1418, %v1417
  %1435 = vmatprep.subr.bf16.mxu0 0
  %1436 = vmatpush1.bf16.msra.mxu0 %v1426
  %1437 = vmatprep.subr.bf16.mxu0 0
  %1438 = vmatpush1.bf16.msra.mxu0 %v1425
  %1439 = vmatprep.subr.bf16.mxu0 0
  %1440 = vmatpush1.bf16.msra.mxu0 %v1424
  %1441 = vmatprep.subr.bf16.mxu0 0
  %1442 = vmatpush1.bf16.msra.mxu0 %v1423
  %1443 = vmatprep.subr.bf16.mxu0 0
  %1444 = vmatpush1.bf16.msra.mxu0 %v1422
  %1445 = vmatprep.subr.bf16.mxu0 0
  %1446 = vmatpush1.bf16.msra.mxu0 %v1421
  %1447 = vmatprep.subr.bf16.mxu0 0
  %1448 = vmatpush1.bf16.msra.mxu0 %v1420
  %1449 = vmatprep.subr.bf16.mxu0 0
  %1450 = vmatpush1.bf16.msra.mxu0 %v1419
  %1451 = vmatprep.subr.bf16.mxu0 0
  %1452 = vmatpush2.bf16.msra.mxu0 0
  %1453 = vmatprep.subr.bf16.mxu0 0
  %1454 = vmatpush2.bf16.msra.mxu0 0
  %1455 = vmatprep.subr.bf16.mxu0 0
  %1456 = vmatpush2.bf16.msra.mxu0 0
  %1457 = vmatprep.subr.bf16.mxu0 0
  %1458 = vmatpush2.bf16.msra.mxu0 0
  %1459 = vmatprep.subr.bf16.mxu0 0
  %1460 = vmatpush2.bf16.msra.mxu0 0
  %1461 = vmatprep.subr.bf16.mxu0 0
  %1462 = vmatpush2.bf16.msra.mxu0 0
  %1463 = vmatprep.subr.bf16.mxu0 0
  %1464 = vmatpush2.bf16.msra.mxu0 0
  %1465 = vmatprep.subr.bf16.mxu0 0
  %1466 = vmatpush2.bf16.msra.mxu0 0
  %1467 = vmatprep.mubr.bf16.mxu0 0
  %1468 = vmatmul.mubr.bf16.gmra.mxu0 %v1370
  %v1469 = vpop.f32.mrf.mxu0
  %v1470 = vadd.f32 %v859, %v1469
  %v1471 = vpop.f32.mrf.mxu0
  %v1472 = vpop.f32.mrf.mxu0
  %v1473 = vpop.f32.mrf.mxu0
  %1474 = vdwg.mxu0
  %1475 = vmatprep.subr.bf16.mxu0 0
  %1476 = vmatpush1.bf16.msra.mxu0 %v291
  %1477 = vmatprep.subr.bf16.mxu0 0
  %1478 = vmatpush1.bf16.msra.mxu0 %v290
  %1479 = vmatprep.subr.bf16.mxu0 0
  %1480 = vmatpush1.bf16.msra.mxu0 %v289
  %1481 = vmatprep.subr.bf16.mxu0 0
  %1482 = vmatpush1.bf16.msra.mxu0 %v288
  %1483 = vmatprep.subr.bf16.mxu0 0
  %1484 = vmatpush1.bf16.msra.mxu0 %v287
  %1485 = vmatprep.subr.bf16.mxu0 0
  %1486 = vmatpush1.bf16.msra.mxu0 %v286
  %1487 = vmatprep.subr.bf16.mxu0 0
  %1488 = vmatpush1.bf16.msra.mxu0 %v285
  %1489 = vmatprep.subr.bf16.mxu0 0
  %1490 = vmatpush1.bf16.msra.mxu0 %v284
  %1491 = vmatprep.subr.bf16.mxu0 0
  %1492 = vmatpush2.bf16.msra.mxu0 0
  %1493 = vmatprep.subr.bf16.mxu0 0
  %1494 = vmatpush2.bf16.msra.mxu0 0
  %1495 = vmatprep.subr.bf16.mxu0 0
  %1496 = vmatpush2.bf16.msra.mxu0 0
  %1497 = vmatprep.subr.bf16.mxu0 0
  %1498 = vmatpush2.bf16.msra.mxu0 0
  %1499 = vmatprep.subr.bf16.mxu0 0
  %1500 = vmatpush2.bf16.msra.mxu0 0
  %1501 = vmatprep.subr.bf16.mxu0 0
  %1502 = vmatpush2.bf16.msra.mxu0 0
  %1503 = vmatprep.subr.bf16.mxu0 0
  %1504 = vmatpush2.bf16.msra.mxu0 0
  %1505 = vmatprep.subr.bf16.mxu0 0
  %1506 = vmatpush2.bf16.msra.mxu0 0
  %1507 = vmatprep.mubr.bf16.mxu0 0
  %1508 = vmatmul.mubr.bf16.gmra.mxu0 %v1254
  %v1509 = vpop.f32.mrf.mxu0
  %v1510 = vadd.f32 0.0, %v1509
  %v1511 = vpop.f32.mrf.mxu0
  %v1512 = vpop.f32.mrf.mxu0
  %v1513 = vpop.f32.mrf.mxu0
  %1514 = vdwg.mxu0
  %v1515 = vadd.f32 %v1470, %v1510
  %v1516 = vtanh.pop %v1515
  %v1517 = vpack.c.bf16 %v1516, %v1516
  %v1518 = vld [vmem:[%s5] sm:$0xf]
  %v1519 = vld [vmem:[%s5 + $0x4] sm:$0xf]
  %v1520 = vld [vmem:[%s5 + $0x8] sm:$0xf]
  %v1521 = vld [vmem:[%s5 + $0xc] sm:$0xf]
  %v1522 = vld [vmem:[%s5 + $0x10] sm:$0xf]
  %v1523 = vld [vmem:[%s5 + $0x14] sm:$0xf]
  %v1524 = vld [vmem:[%s5 + $0x18] sm:$0xf]
  %v1525 = vld [vmem:[%s5 + $0x1c] sm:$0xf]
  %v1526 = vld [vmem:[%s5 + $0x20] sm:$0xf]
  %v1527 = vld [vmem:[%s5 + $0x24] sm:$0xf]
  %v1528 = vld [vmem:[%s5 + $0x28] sm:$0xf]
  %v1529 = vld [vmem:[%s5 + $0x2c] sm:$0xf]
  %v1530 = vld [vmem:[%s5 + $0x30] sm:$0xf]
  %v1531 = vld [vmem:[%s5 + $0x34] sm:$0xf]
  %v1532 = vld [vmem:[%s5 + $0x38] sm:$0xf]
  %v1533 = vld [vmem:[%s5 + $0x3c] sm:$0xf]
  %v1550 = vunpack.c.l.b16 %v1518
  %v1551 = vunpack.c.l.b16 %v1519
  %v1552 = vunpack.c.l.b16 %v1520
  %v1553 = vunpack.c.l.b16 %v1521
  %v1554 = vunpack.c.l.b16 %v1522
  %v1555 = vunpack.c.l.b16 %v1523
  %v1556 = vunpack.c.l.b16 %v1524
  %v1557 = vunpack.c.l.b16 %v1525
  %v1558 = vunpack.c.l.b16 %v1526
  %v1559 = vunpack.c.l.b16 %v1527
  %v1560 = vunpack.c.l.b16 %v1528
  %v1561 = vunpack.c.l.b16 %v1529
  %v1562 = vunpack.c.l.b16 %v1530
  %v1563 = vunpack.c.l.b16 %v1531
  %v1564 = vunpack.c.l.b16 %v1532
  %v1565 = vunpack.c.l.b16 %v1533
  %v1566 = vpack.c.b16 %v1551, %v1550
  %v1567 = vpack.c.b16 %v1553, %v1552
  %v1568 = vpack.c.b16 %v1555, %v1554
  %v1569 = vpack.c.b16 %v1557, %v1556
  %v1570 = vpack.c.b16 %v1559, %v1558
  %v1571 = vpack.c.b16 %v1561, %v1560
  %v1572 = vpack.c.b16 %v1563, %v1562
  %v1573 = vpack.c.b16 %v1565, %v1564
  %1582 = vmatprep.subr.bf16.mxu0 0
  %1583 = vmatpush1.bf16.msra.mxu0 %v1573
  %1584 = vmatprep.subr.bf16.mxu0 0
  %1585 = vmatpush1.bf16.msra.mxu0 %v1572
  %1586 = vmatprep.subr.bf16.mxu0 0
  %1587 = vmatpush1.bf16.msra.mxu0 %v1571
  %1588 = vmatprep.subr.bf16.mxu0 0
  %1589 = vmatpush1.bf16.msra.mxu0 %v1570
  %1590 = vmatprep.subr.bf16.mxu0 0
  %1591 = vmatpush1.bf16.msra.mxu0 %v1569
  %1592 = vmatprep.subr.bf16.mxu0 0
  %1593 = vmatpush1.bf16.msra.mxu0 %v1568
  %1594 = vmatprep.subr.bf16.mxu0 0
  %1595 = vmatpush1.bf16.msra.mxu0 %v1567
  %1596 = vmatprep.subr.bf16.mxu0 0
  %1597 = vmatpush1.bf16.msra.mxu0 %v1566
  %1598 = vmatprep.subr.bf16.mxu0 0
  %1599 = vmatpush2.bf16.msra.mxu0 0
  %1600 = vmatprep.subr.bf16.mxu0 0
  %1601 = vmatpush2.bf16.msra.mxu0 0
  %1602 = vmatprep.subr.bf16.mxu0 0
  %1603 = vmatpush2.bf16.msra.mxu0 0
  %1604 = vmatprep.subr.bf16.mxu0 0
  %1605 = vmatpush2.bf16.msra.mxu0 0
  %1606 = vmatprep.subr.bf16.mxu0 0
  %1607 = vmatpush2.bf16.msra.mxu0 0
  %1608 = vmatprep.subr.bf16.mxu0 0
  %1609 = vmatpush2.bf16.msra.mxu0 0
  %1610 = vmatprep.subr.bf16.mxu0 0
  %1611 = vmatpush2.bf16.msra.mxu0 0
  %1612 = vmatprep.subr.bf16.mxu0 0
  %1613 = vmatpush2.bf16.msra.mxu0 0
  %1614 = vmatprep.mubr.bf16.mxu0 0
  %1615 = vmatmul.mubr.bf16.gmra.mxu0 %v1517
  %v1616 = vpop.f32.mrf.mxu0
  %v1617 = vadd.f32 %v687, %v1616
  %v1618 = vpop.f32.mrf.mxu0
  %v1619 = vpop.f32.mrf.mxu0
  %v1620 = vpop.f32.mrf.mxu0
  %1621 = vdwg.mxu0
  %1622 = vst [vmem:[%s7 + $0x50] sm:$0xff] %v1617
  %1623 = vmax.xlane.f32.xlu0 %v1617
  %v1624 = vpop.xlane.xlu0 %1623
  %vm1625 = vcmp.eq.f32.partialorder %v1617, %v1624
  %v1626 = vsel %vm1625, %v834, 128.0
  %1627 = vmin.xlane.f32.xlu0 %v1626
  %v1628 = vpop.xlane.xlu0 %1627
  %v1629 = vcvt.f32.s32.to.zero.pseudo %v1628
  %vm1630 = vcmp.eq.s32.totalorder %v1629, %v55
  %v1631 = vsel %vm1630, 1, 0
  %v1632 = vcvt.s32.f32 %v1631
  %v1633 = vpack.c.bf16 %v1632, %v1632
  %v1634 = vld [vmem:[%s1] sm:$0xf]
  %v1635 = vld [vmem:[%s1 + $0x4] sm:$0xf]
  %v1636 = vld [vmem:[%s1 + $0x8] sm:$0xf]
  %v1637 = vld [vmem:[%s1 + $0xc] sm:$0xf]
  %v1638 = vld [vmem:[%s1 + $0x10] sm:$0xf]
  %v1639 = vld [vmem:[%s1 + $0x14] sm:$0xf]
  %v1640 = vld [vmem:[%s1 + $0x18] sm:$0xf]
  %v1641 = vld [vmem:[%s1 + $0x1c] sm:$0xf]
  %v1642 = vld [vmem:[%s1 + $0x20] sm:$0xf]
  %v1643 = vld [vmem:[%s1 + $0x24] sm:$0xf]
  %v1644 = vld [vmem:[%s1 + $0x28] sm:$0xf]
  %v1645 = vld [vmem:[%s1 + $0x2c] sm:$0xf]
  %v1646 = vld [vmem:[%s1 + $0x30] sm:$0xf]
  %v1647 = vld [vmem:[%s1 + $0x34] sm:$0xf]
  %v1648 = vld [vmem:[%s1 + $0x38] sm:$0xf]
  %v1649 = vld [vmem:[%s1 + $0x3c] sm:$0xf]
  %v1666 = vunpack.c.l.b16 %v1634
  %v1667 = vunpack.c.l.b16 %v1635
  %v1668 = vunpack.c.l.b16 %v1636
  %v1669 = vunpack.c.l.b16 %v1637
  %v1670 = vunpack.c.l.b16 %v1638
  %v1671 = vunpack.c.l.b16 %v1639
  %v1672 = vunpack.c.l.b16 %v1640
  %v1673 = vunpack.c.l.b16 %v1641
  %v1674 = vunpack.c.l.b16 %v1642
  %v1675 = vunpack.c.l.b16 %v1643
  %v1676 = vunpack.c.l.b16 %v1644
  %v1677 = vunpack.c.l.b16 %v1645
  %v1678 = vunpack.c.l.b16 %v1646
  %v1679 = vunpack.c.l.b16 %v1647
  %v1680 = vunpack.c.l.b16 %v1648
  %v1681 = vunpack.c.l.b16 %v1649
  %v1682 = vpack.c.b16 %v1667, %v1666
  %v1683 = vpack.c.b16 %v1669, %v1668
  %v1684 = vpack.c.b16 %v1671, %v1670
  %v1685 = vpack.c.b16 %v1673, %v1672
  %v1686 = vpack.c.b16 %v1675, %v1674
  %v1687 = vpack.c.b16 %v1677, %v1676
  %v1688 = vpack.c.b16 %v1679, %v1678
  %v1689 = vpack.c.b16 %v1681, %v1680
  %1698 = vmatprep.subr.bf16.mxu0 0
  %1699 = vmatpush1.bf16.msra.mxu0 %v1689
  %1700 = vmatprep.subr.bf16.mxu0 0
  %1701 = vmatpush1.bf16.msra.mxu0 %v1688
  %1702 = vmatprep.subr.bf16.mxu0 0
  %1703 = vmatpush1.bf16.msra.mxu0 %v1687
  %1704 = vmatprep.subr.bf16.mxu0 0
  %1705 = vmatpush1.bf16.msra.mxu0 %v1686
  %1706 = vmatprep.subr.bf16.mxu0 0
  %1707 = vmatpush1.bf16.msra.mxu0 %v1685
  %1708 = vmatprep.subr.bf16.mxu0 0
  %1709 = vmatpush1.bf16.msra.mxu0 %v1684
  %1710 = vmatprep.subr.bf16.mxu0 0
  %1711 = vmatpush1.bf16.msra.mxu0 %v1683
  %1712 = vmatprep.subr.bf16.mxu0 0
  %1713 = vmatpush1.bf16.msra.mxu0 %v1682
  %1714 = vmatprep.subr.bf16.mxu0 0
  %1715 = vmatpush2.bf16.msra.mxu0 0
  %1716 = vmatprep.subr.bf16.mxu0 0
  %1717 = vmatpush2.bf16.msra.mxu0 0
  %1718 = vmatprep.subr.bf16.mxu0 0
  %1719 = vmatpush2.bf16.msra.mxu0 0
  %1720 = vmatprep.subr.bf16.mxu0 0
  %1721 = vmatpush2.bf16.msra.mxu0 0
  %1722 = vmatprep.subr.bf16.mxu0 0
  %1723 = vmatpush2.bf16.msra.mxu0 0
  %1724 = vmatprep.subr.bf16.mxu0 0
  %1725 = vmatpush2.bf16.msra.mxu0 0
  %1726 = vmatprep.subr.bf16.mxu0 0
  %1727 = vmatpush2.bf16.msra.mxu0 0
  %1728 = vmatprep.subr.bf16.mxu0 0
  %1729 = vmatpush2.bf16.msra.mxu0 0
  %1730 = vmatprep.mubr.bf16.mxu0 0
  %1731 = vmatmul.mubr.bf16.gmra.mxu0 %v1633
  %v1732 = vpop.f32.mrf.mxu0
  %v1733 = vadd.f32 %v859, %v1732
  %v1734 = vpop.f32.mrf.mxu0
  %v1735 = vpop.f32.mrf.mxu0
  %v1736 = vpop.f32.mrf.mxu0
  %1737 = vdwg.mxu0
  %1738 = vmatprep.subr.bf16.mxu0 0
  %1739 = vmatpush1.bf16.msra.mxu0 %v291
  %1740 = vmatprep.subr.bf16.mxu0 0
  %1741 = vmatpush1.bf16.msra.mxu0 %v290
  %1742 = vmatprep.subr.bf16.mxu0 0
  %1743 = vmatpush1.bf16.msra.mxu0 %v289
  %1744 = vmatprep.subr.bf16.mxu0 0
  %1745 = vmatpush1.bf16.msra.mxu0 %v288
  %1746 = vmatprep.subr.bf16.mxu0 0
  %1747 = vmatpush1.bf16.msra.mxu0 %v287
  %1748 = vmatprep.subr.bf16.mxu0 0
  %1749 = vmatpush1.bf16.msra.mxu0 %v286
  %1750 = vmatprep.subr.bf16.mxu0 0
  %1751 = vmatpush1.bf16.msra.mxu0 %v285
  %1752 = vmatprep.subr.bf16.mxu0 0
  %1753 = vmatpush1.bf16.msra.mxu0 %v284
  %1754 = vmatprep.subr.bf16.mxu0 0
  %1755 = vmatpush2.bf16.msra.mxu0 0
  %1756 = vmatprep.subr.bf16.mxu0 0
  %1757 = vmatpush2.bf16.msra.mxu0 0
  %1758 = vmatprep.subr.bf16.mxu0 0
  %1759 = vmatpush2.bf16.msra.mxu0 0
  %1760 = vmatprep.subr.bf16.mxu0 0
  %1761 = vmatpush2.bf16.msra.mxu0 0
  %1762 = vmatprep.subr.bf16.mxu0 0
  %1763 = vmatpush2.bf16.msra.mxu0 0
  %1764 = vmatprep.subr.bf16.mxu0 0
  %1765 = vmatpush2.bf16.msra.mxu0 0
  %1766 = vmatprep.subr.bf16.mxu0 0
  %1767 = vmatpush2.bf16.msra.mxu0 0
  %1768 = vmatprep.subr.bf16.mxu0 0
  %1769 = vmatpush2.bf16.msra.mxu0 0
  %1770 = vmatprep.mubr.bf16.mxu0 0
  %1771 = vmatmul.mubr.bf16.gmra.mxu0 %v1517
  %v1772 = vpop.f32.mrf.mxu0
  %v1773 = vadd.f32 0.0, %v1772
  %v1774 = vpop.f32.mrf.mxu0
  %v1775 = vpop.f32.mrf.mxu0
  %v1776 = vpop.f32.mrf.mxu0
  %1777 = vdwg.mxu0
  %v1778 = vadd.f32 %v1733, %v1773
  %v1779 = vtanh.pop %v1778
  %v1780 = vpack.c.bf16 %v1779, %v1779
  %v1781 = vld [vmem:[%s5] sm:$0xf]
  %v1782 = vld [vmem:[%s5 + $0x4] sm:$0xf]
  %v1783 = vld [vmem:[%s5 + $0x8] sm:$0xf]
  %v1784 = vld [vmem:[%s5 + $0xc] sm:$0xf]
  %v1785 = vld [vmem:[%s5 + $0x10] sm:$0xf]
  %v1786 = vld [vmem:[%s5 + $0x14] sm:$0xf]
  %v1787 = vld [vmem:[%s5 + $0x18] sm:$0xf]
  %v1788 = vld [vmem:[%s5 + $0x1c] sm:$0xf]
  %v1789 = vld [vmem:[%s5 + $0x20] sm:$0xf]
  %v1790 = vld [vmem:[%s5 + $0x24] sm:$0xf]
  %v1791 = vld [vmem:[%s5 + $0x28] sm:$0xf]
  %v1792 = vld [vmem:[%s5 + $0x2c] sm:$0xf]
  %v1793 = vld [vmem:[%s5 + $0x30] sm:$0xf]
  %v1794 = vld [vmem:[%s5 + $0x34] sm:$0xf]
  %v1795 = vld [vmem:[%s5 + $0x38] sm:$0xf]
  %v1796 = vld [vmem:[%s5 + $0x3c] sm:$0xf]
  %v1813 = vunpack.c.l.b16 %v1781
  %v1814 = vunpack.c.l.b16 %v1782
  %v1815 = vunpack.c.l.b16 %v1783
  %v1816 = vunpack.c.l.b16 %v1784
  %v1817 = vunpack.c.l.b16 %v1785
  %v1818 = vunpack.c.l.b16 %v1786
  %v1819 = vunpack.c.l.b16 %v1787
  %v1820 = vunpack.c.l.b16 %v1788
  %v1821 = vunpack.c.l.b16 %v1789
  %v1822 = vunpack.c.l.b16 %v1790
  %v1823 = vunpack.c.l.b16 %v1791
  %v1824 = vunpack.c.l.b16 %v1792
  %v1825 = vunpack.c.l.b16 %v1793
  %v1826 = vunpack.c.l.b16 %v1794
  %v1827 = vunpack.c.l.b16 %v1795
  %v1828 = vunpack.c.l.b16 %v1796
  %v1829 = vpack.c.b16 %v1814, %v1813
  %v1830 = vpack.c.b16 %v1816, %v1815
  %v1831 = vpack.c.b16 %v1818, %v1817
  %v1832 = vpack.c.b16 %v1820, %v1819
  %v1833 = vpack.c.b16 %v1822, %v1821
  %v1834 = vpack.c.b16 %v1824, %v1823
  %v1835 = vpack.c.b16 %v1826, %v1825
  %v1836 = vpack.c.b16 %v1828, %v1827
  %1845 = vmatprep.subr.bf16.mxu0 0
  %1846 = vmatpush1.bf16.msra.mxu0 %v1836
  %1847 = vmatprep.subr.bf16.mxu0 0
  %1848 = vmatpush1.bf16.msra.mxu0 %v1835
  %1849 = vmatprep.subr.bf16.mxu0 0
  %1850 = vmatpush1.bf16.msra.mxu0 %v1834
  %1851 = vmatprep.subr.bf16.mxu0 0
  %1852 = vmatpush1.bf16.msra.mxu0 %v1833
  %1853 = vmatprep.subr.bf16.mxu0 0
  %1854 = vmatpush1.bf16.msra.mxu0 %v1832
  %1855 = vmatprep.subr.bf16.mxu0 0
  %1856 = vmatpush1.bf16.msra.mxu0 %v1831
  %1857 = vmatprep.subr.bf16.mxu0 0
  %1858 = vmatpush1.bf16.msra.mxu0 %v1830
  %1859 = vmatprep.subr.bf16.mxu0 0
  %1860 = vmatpush1.bf16.msra.mxu0 %v1829
  %1861 = vmatprep.subr.bf16.mxu0 0
  %1862 = vmatpush2.bf16.msra.mxu0 0
  %1863 = vmatprep.subr.bf16.mxu0 0
  %1864 = vmatpush2.bf16.msra.mxu0 0
  %1865 = vmatprep.subr.bf16.mxu0 0
  %1866 = vmatpush2.bf16.msra.mxu0 0
  %1867 = vmatprep.subr.bf16.mxu0 0
  %1868 = vmatpush2.bf16.msra.mxu0 0
  %1869 = vmatprep.subr.bf16.mxu0 0
  %1870 = vmatpush2.bf16.msra.mxu0 0
  %1871 = vmatprep.subr.bf16.mxu0 0
  %1872 = vmatpush2.bf16.msra.mxu0 0
  %1873 = vmatprep.subr.bf16.mxu0 0
  %1874 = vmatpush2.bf16.msra.mxu0 0
  %1875 = vmatprep.subr.bf16.mxu0 0
  %1876 = vmatpush2.bf16.msra.mxu0 0
  %1877 = vmatprep.mubr.bf16.mxu0 0
  %1878 = vmatmul.mubr.bf16.gmra.mxu0 %v1780
  %v1879 = vpop.f32.mrf.mxu0
  %v1880 = vadd.f32 %v687, %v1879
  %v1881 = vpop.f32.mrf.mxu0
  %v1882 = vpop.f32.mrf.mxu0
  %v1883 = vpop.f32.mrf.mxu0
  %1884 = vdwg.mxu0
  %1885 = vst [vmem:[%s7 + $0x58] sm:$0xff] %v1880
  %1886 = vmax.xlane.f32.xlu0 %v1880
  %v1887 = vpop.xlane.xlu0 %1886
  %vm1888 = vcmp.eq.f32.partialorder %v1880, %v1887
  %v1889 = vsel %vm1888, %v834, 128.0
  %1890 = vmin.xlane.f32.xlu0 %v1889
  %v1891 = vpop.xlane.xlu0 %1890
  %v1892 = vcvt.f32.s32.to.zero.pseudo %v1891
  %vm1893 = vcmp.eq.s32.totalorder %v1892, %v55
  %v1894 = vsel %vm1893, 1, 0
  %v1895 = vcvt.s32.f32 %v1894
  %v1896 = vpack.c.bf16 %v1895, %v1895
  %v1897 = vld [vmem:[%s1] sm:$0xf]
  %v1898 = vld [vmem:[%s1 + $0x4] sm:$0xf]
  %v1899 = vld [vmem:[%s1 + $0x8] sm:$0xf]
  %v1900 = vld [vmem:[%s1 + $0xc] sm:$0xf]
  %v1901 = vld [vmem:[%s1 + $0x10] sm:$0xf]
  %v1902 = vld [vmem:[%s1 + $0x14] sm:$0xf]
  %v1903 = vld [vmem:[%s1 + $0x18] sm:$0xf]
  %v1904 = vld [vmem:[%s1 + $0x1c] sm:$0xf]
  %v1905 = vld [vmem:[%s1 + $0x20] sm:$0xf]
  %v1906 = vld [vmem:[%s1 + $0x24] sm:$0xf]
  %v1907 = vld [vmem:[%s1 + $0x28] sm:$0xf]
  %v1908 = vld [vmem:[%s1 + $0x2c] sm:$0xf]
  %v1909 = vld [vmem:[%s1 + $0x30] sm:$0xf]
  %v1910 = vld [vmem:[%s1 + $0x34] sm:$0xf]
  %v1911 = vld [vmem:[%s1 + $0x38] sm:$0xf]
  %v1912 = vld [vmem:[%s1 + $0x3c] sm:$0xf]
  %v1929 = vunpack.c.l.b16 %v1897
  %v1930 = vunpack.c.l.b16 %v1898
  %v1931 = vunpack.c.l.b16 %v1899
  %v1932 = vunpack.c.l.b16 %v1900
  %v1933 = vunpack.c.l.b16 %v1901
  %v1934 = vunpack.c.l.b16 %v1902
  %v1935 = vunpack.c.l.b16 %v1903
  %v1936 = vunpack.c.l.b16 %v1904
  %v1937 = vunpack.c.l.b16 %v1905
  %v1938 = vunpack.c.l.b16 %v1906
  %v1939 = vunpack.c.l.b16 %v1907
  %v1940 = vunpack.c.l.b16 %v1908
  %v1941 = vunpack.c.l.b16 %v1909
  %v1942 = vunpack.c.l.b16 %v1910
  %v1943 = vunpack.c.l.b16 %v1911
  %v1944 = vunpack.c.l.b16 %v1912
  %v1945 = vpack.c.b16 %v1930, %v1929
  %v1946 = vpack.c.b16 %v1932, %v1931
  %v1947 = vpack.c.b16 %v1934, %v1933
  %v1948 = vpack.c.b16 %v1936, %v1935
  %v1949 = vpack.c.b16 %v1938, %v1937
  %v1950 = vpack.c.b16 %v1940, %v1939
  %v1951 = vpack.c.b16 %v1942, %v1941
  %v1952 = vpack.c.b16 %v1944, %v1943
  %1961 = vmatprep.subr.bf16.mxu0 0
  %1962 = vmatpush1.bf16.msra.mxu0 %v1952
  %1963 = vmatprep.subr.bf16.mxu0 0
  %1964 = vmatpush1.bf16.msra.mxu0 %v1951
  %1965 = vmatprep.subr.bf16.mxu0 0
  %1966 = vmatpush1.bf16.msra.mxu0 %v1950
  %1967 = vmatprep.subr.bf16.mxu0 0
  %1968 = vmatpush1.bf16.msra.mxu0 %v1949
  %1969 = vmatprep.subr.bf16.mxu0 0
  %1970 = vmatpush1.bf16.msra.mxu0 %v1948
  %1971 = vmatprep.subr.bf16.mxu0 0
  %1972 = vmatpush1.bf16.msra.mxu0 %v1947
  %1973 = vmatprep.subr.bf16.mxu0 0
  %1974 = vmatpush1.bf16.msra.mxu0 %v1946
  %1975 = vmatprep.subr.bf16.mxu0 0
  %1976 = vmatpush1.bf16.msra.mxu0 %v1945
  %1977 = vmatprep.subr.bf16.mxu0 0
  %1978 = vmatpush2.bf16.msra.mxu0 0
  %1979 = vmatprep.subr.bf16.mxu0 0
  %1980 = vmatpush2.bf16.msra.mxu0 0
  %1981 = vmatprep.subr.bf16.mxu0 0
  %1982 = vmatpush2.bf16.msra.mxu0 0
  %1983 = vmatprep.subr.bf16.mxu0 0
  %1984 = vmatpush2.bf16.msra.mxu0 0
  %1985 = vmatprep.subr.bf16.mxu0 0
  %1986 = vmatpush2.bf16.msra.mxu0 0
  %1987 = vmatprep.subr.bf16.mxu0 0
  %1988 = vmatpush2.bf16.msra.mxu0 0
  %1989 = vmatprep.subr.bf16.mxu0 0
  %1990 = vmatpush2.bf16.msra.mxu0 0
  %1991 = vmatprep.subr.bf16.mxu0 0
  %1992 = vmatpush2.bf16.msra.mxu0 0
  %1993 = vmatprep.mubr.bf16.mxu0 0
  %1994 = vmatmul.mubr.bf16.gmra.mxu0 %v1896
  %v1995 = vpop.f32.mrf.mxu0
  %v1996 = vadd.f32 %v859, %v1995
  %v1997 = vpop.f32.mrf.mxu0
  %v1998 = vpop.f32.mrf.mxu0
  %v1999 = vpop.f32.mrf.mxu0
  %2000 = vdwg.mxu0
  %2001 = vmatprep.subr.bf16.mxu0 0
  %2002 = vmatpush1.bf16.msra.mxu0 %v291
  %2003 = vmatprep.subr.bf16.mxu0 0
  %2004 = vmatpush1.bf16.msra.mxu0 %v290
  %2005 = vmatprep.subr.bf16.mxu0 0
  %2006 = vmatpush1.bf16.msra.mxu0 %v289
  %2007 = vmatprep.subr.bf16.mxu0 0
  %2008 = vmatpush1.bf16.msra.mxu0 %v288
  %2009 = vmatprep.subr.bf16.mxu0 0
  %2010 = vmatpush1.bf16.msra.mxu0 %v287
  %2011 = vmatprep.subr.bf16.mxu0 0
  %2012 = vmatpush1.bf16.msra.mxu0 %v286
  %2013 = vmatprep.subr.bf16.mxu0 0
  %2014 = vmatpush1.bf16.msra.mxu0 %v285
  %2015 = vmatprep.subr.bf16.mxu0 0
  %2016 = vmatpush1.bf16.msra.mxu0 %v284
  %2017 = vmatprep.subr.bf16.mxu0 0
  %2018 = vmatpush2.bf16.msra.mxu0 0
  %2019 = vmatprep.subr.bf16.mxu0 0
  %2020 = vmatpush2.bf16.msra.mxu0 0
  %2021 = vmatprep.subr.bf16.mxu0 0
  %2022 = vmatpush2.bf16.msra.mxu0 0
  %2023 = vmatprep.subr.bf16.mxu0 0
  %2024 = vmatpush2.bf16.msra.mxu0 0
  %2025 = vmatprep.subr.bf16.mxu0 0
  %2026 = vmatpush2.bf16.msra.mxu0 0
  %2027 = vmatprep.subr.bf16.mxu0 0
  %2028 = vmatpush2.bf16.msra.mxu0 0
  %2029 = vmatprep.subr.bf16.mxu0 0
  %2030 = vmatpush2.bf16.msra.mxu0 0
  %2031 = vmatprep.subr.bf16.mxu0 0
  %2032 = vmatpush2.bf16.msra.mxu0 0
  %2033 = vmatprep.mubr.bf16.mxu0 0
  %2034 = vmatmul.mubr.bf16.gmra.mxu0 %v1780
  %v2035 = vpop.f32.mrf.mxu0
  %v2036 = vadd.f32 0.0, %v2035
  %v2037 = vpop.f32.mrf.mxu0
  %v2038 = vpop.f32.mrf.mxu0
  %v2039 = vpop.f32.mrf.mxu0
  %2040 = vdwg.mxu0
  %v2041 = vadd.f32 %v1996, %v2036
  %v2042 = vtanh.pop %v2041
  %v2043 = vpack.c.bf16 %v2042, %v2042
  %v2044 = vld [vmem:[%s5] sm:$0xf]
  %v2045 = vld [vmem:[%s5 + $0x4] sm:$0xf]
  %v2046 = vld [vmem:[%s5 + $0x8] sm:$0xf]
  %v2047 = vld [vmem:[%s5 + $0xc] sm:$0xf]
  %v2048 = vld [vmem:[%s5 + $0x10] sm:$0xf]
  %v2049 = vld [vmem:[%s5 + $0x14] sm:$0xf]
  %v2050 = vld [vmem:[%s5 + $0x18] sm:$0xf]
  %v2051 = vld [vmem:[%s5 + $0x1c] sm:$0xf]
  %v2052 = vld [vmem:[%s5 + $0x20] sm:$0xf]
  %v2053 = vld [vmem:[%s5 + $0x24] sm:$0xf]
  %v2054 = vld [vmem:[%s5 + $0x28] sm:$0xf]
  %v2055 = vld [vmem:[%s5 + $0x2c] sm:$0xf]
  %v2056 = vld [vmem:[%s5 + $0x30] sm:$0xf]
  %v2057 = vld [vmem:[%s5 + $0x34] sm:$0xf]
  %v2058 = vld [vmem:[%s5 + $0x38] sm:$0xf]
  %v2059 = vld [vmem:[%s5 + $0x3c] sm:$0xf]
  %v2076 = vunpack.c.l.b16 %v2044
  %v2077 = vunpack.c.l.b16 %v2045
  %v2078 = vunpack.c.l.b16 %v2046
  %v2079 = vunpack.c.l.b16 %v2047
  %v2080 = vunpack.c.l.b16 %v2048
  %v2081 = vunpack.c.l.b16 %v2049
  %v2082 = vunpack.c.l.b16 %v2050
  %v2083 = vunpack.c.l.b16 %v2051
  %v2084 = vunpack.c.l.b16 %v2052
  %v2085 = vunpack.c.l.b16 %v2053
  %v2086 = vunpack.c.l.b16 %v2054
  %v2087 = vunpack.c.l.b16 %v2055
  %v2088 = vunpack.c.l.b16 %v2056
  %v2089 = vunpack.c.l.b16 %v2057
  %v2090 = vunpack.c.l.b16 %v2058
  %v2091 = vunpack.c.l.b16 %v2059
  %v2092 = vpack.c.b16 %v2077, %v2076
  %v2093 = vpack.c.b16 %v2079, %v2078
  %v2094 = vpack.c.b16 %v2081, %v2080
  %v2095 = vpack.c.b16 %v2083, %v2082
  %v2096 = vpack.c.b16 %v2085, %v2084
  %v2097 = vpack.c.b16 %v2087, %v2086
  %v2098 = vpack.c.b16 %v2089, %v2088
  %v2099 = vpack.c.b16 %v2091, %v2090
  %2108 = vmatprep.subr.bf16.mxu0 0
  %2109 = vmatpush1.bf16.msra.mxu0 %v2099
  %2110 = vmatprep.subr.bf16.mxu0 0
  %2111 = vmatpush1.bf16.msra.mxu0 %v2098
  %2112 = vmatprep.subr.bf16.mxu0 0
  %2113 = vmatpush1.bf16.msra.mxu0 %v2097
  %2114 = vmatprep.subr.bf16.mxu0 0
  %2115 = vmatpush1.bf16.msra.mxu0 %v2096
  %2116 = vmatprep.subr.bf16.mxu0 0
  %2117 = vmatpush1.bf16.msra.mxu0 %v2095
  %2118 = vmatprep.subr.bf16.mxu0 0
  %2119 = vmatpush1.bf16.msra.mxu0 %v2094
  %2120 = vmatprep.subr.bf16.mxu0 0
  %2121 = vmatpush1.bf16.msra.mxu0 %v2093
  %2122 = vmatprep.subr.bf16.mxu0 0
  %2123 = vmatpush1.bf16.msra.mxu0 %v2092
  %2124 = vmatprep.subr.bf16.mxu0 0
  %2125 = vmatpush2.bf16.msra.mxu0 0
  %2126 = vmatprep.subr.bf16.mxu0 0
  %2127 = vmatpush2.bf16.msra.mxu0 0
  %2128 = vmatprep.subr.bf16.mxu0 0
  %2129 = vmatpush2.bf16.msra.mxu0 0
  %2130 = vmatprep.subr.bf16.mxu0 0
  %2131 = vmatpush2.bf16.msra.mxu0 0
  %2132 = vmatprep.subr.bf16.mxu0 0
  %2133 = vmatpush2.bf16.msra.mxu0 0
  %2134 = vmatprep.subr.bf16.mxu0 0
  %2135 = vmatpush2.bf16.msra.mxu0 0
  %2136 = vmatprep.subr.bf16.mxu0 0
  %2137 = vmatpush2.bf16.msra.mxu0 0
  %2138 = vmatprep.subr.bf16.mxu0 0
  %2139 = vmatpush2.bf16.msra.mxu0 0
  %2140 = vmatprep.mubr.bf16.mxu0 0
  %2141 = vmatmul.mubr.bf16.gmra.mxu0 %v2043
  %v2142 = vpop.f32.mrf.mxu0
  %v2143 = vadd.f32 %v687, %v2142
  %v2144 = vpop.f32.mrf.mxu0
  %v2145 = vpop.f32.mrf.mxu0
  %v2146 = vpop.f32.mrf.mxu0
  %2147 = vdwg.mxu0
  %2148 = vst [vmem:[%s7 + $0x60] sm:$0xff] %v2143
  %2149 = vmax.xlane.f32.xlu0 %v2143
  %v2150 = vpop.xlane.xlu0 %2149
  %vm2151 = vcmp.eq.f32.partialorder %v2143, %v2150
  %v2152 = vsel %vm2151, %v834, 128.0
  %2153 = vmin.xlane.f32.xlu0 %v2152
  %v2154 = vpop.xlane.xlu0 %2153
  %v2155 = vcvt.f32.s32.to.zero.pseudo %v2154
  %vm2156 = vcmp.eq.s32.totalorder %v2155, %v55
  %v2157 = vsel %vm2156, 1, 0
  %v2158 = vcvt.s32.f32 %v2157
  %v2159 = vpack.c.bf16 %v2158, %v2158
  %v2160 = vld [vmem:[%s1] sm:$0xf]
  %v2161 = vld [vmem:[%s1 + $0x4] sm:$0xf]
  %v2162 = vld [vmem:[%s1 + $0x8] sm:$0xf]
  %v2163 = vld [vmem:[%s1 + $0xc] sm:$0xf]
  %v2164 = vld [vmem:[%s1 + $0x10] sm:$0xf]
  %v2165 = vld [vmem:[%s1 + $0x14] sm:$0xf]
  %v2166 = vld [vmem:[%s1 + $0x18] sm:$0xf]
  %v2167 = vld [vmem:[%s1 + $0x1c] sm:$0xf]
  %v2168 = vld [vmem:[%s1 + $0x20] sm:$0xf]
  %v2169 = vld [vmem:[%s1 + $0x24] sm:$0xf]
  %v2170 = vld [vmem:[%s1 + $0x28] sm:$0xf]
  %v2171 = vld [vmem:[%s1 + $0x2c] sm:$0xf]
  %v2172 = vld [vmem:[%s1 + $0x30] sm:$0xf]
  %v2173 = vld [vmem:[%s1 + $0x34] sm:$0xf]
  %v2174 = vld [vmem:[%s1 + $0x38] sm:$0xf]
  %v2175 = vld [vmem:[%s1 + $0x3c] sm:$0xf]
  %v2192 = vunpack.c.l.b16 %v2160
  %v2193 = vunpack.c.l.b16 %v2161
  %v2194 = vunpack.c.l.b16 %v2162
  %v2195 = vunpack.c.l.b16 %v2163
  %v2196 = vunpack.c.l.b16 %v2164
  %v2197 = vunpack.c.l.b16 %v2165
  %v2198 = vunpack.c.l.b16 %v2166
  %v2199 = vunpack.c.l.b16 %v2167
  %v2200 = vunpack.c.l.b16 %v2168
  %v2201 = vunpack.c.l.b16 %v2169
  %v2202 = vunpack.c.l.b16 %v2170
  %v2203 = vunpack.c.l.b16 %v2171
  %v2204 = vunpack.c.l.b16 %v2172
  %v2205 = vunpack.c.l.b16 %v2173
  %v2206 = vunpack.c.l.b16 %v2174
  %v2207 = vunpack.c.l.b16 %v2175
  %v2208 = vpack.c.b16 %v2193, %v2192
  %v2209 = vpack.c.b16 %v2195, %v2194
  %v2210 = vpack.c.b16 %v2197, %v2196
  %v2211 = vpack.c.b16 %v2199, %v2198
  %v2212 = vpack.c.b16 %v2201, %v2200
  %v2213 = vpack.c.b16 %v2203, %v2202
  %v2214 = vpack.c.b16 %v2205, %v2204
  %v2215 = vpack.c.b16 %v2207, %v2206
  %2224 = vmatprep.subr.bf16.mxu0 0
  %2225 = vmatpush1.bf16.msra.mxu0 %v2215
  %2226 = vmatprep.subr.bf16.mxu0 0
  %2227 = vmatpush1.bf16.msra.mxu0 %v2214
  %2228 = vmatprep.subr.bf16.mxu0 0
  %2229 = vmatpush1.bf16.msra.mxu0 %v2213
  %2230 = vmatprep.subr.bf16.mxu0 0
  %2231 = vmatpush1.bf16.msra.mxu0 %v2212
  %2232 = vmatprep.subr.bf16.mxu0 0
  %2233 = vmatpush1.bf16.msra.mxu0 %v2211
  %2234 = vmatprep.subr.bf16.mxu0 0
  %2235 = vmatpush1.bf16.msra.mxu0 %v2210
  %2236 = vmatprep.subr.bf16.mxu0 0
  %2237 = vmatpush1.bf16.msra.mxu0 %v2209
  %2238 = vmatprep.subr.bf16.mxu0 0
  %2239 = vmatpush1.bf16.msra.mxu0 %v2208
  %2240 = vmatprep.subr.bf16.mxu0 0
  %2241 = vmatpush2.bf16.msra.mxu0 0
  %2242 = vmatprep.subr.bf16.mxu0 0
  %2243 = vmatpush2.bf16.msra.mxu0 0
  %2244 = vmatprep.subr.bf16.mxu0 0
  %2245 = vmatpush2.bf16.msra.mxu0 0
  %2246 = vmatprep.subr.bf16.mxu0 0
  %2247 = vmatpush2.bf16.msra.mxu0 0
  %2248 = vmatprep.subr.bf16.mxu0 0
  %2249 = vmatpush2.bf16.msra.mxu0 0
  %2250 = vmatprep.subr.bf16.mxu0 0
  %2251 = vmatpush2.bf16.msra.mxu0 0
  %2252 = vmatprep.subr.bf16.mxu0 0
  %2253 = vmatpush2.bf16.msra.mxu0 0
  %2254 = vmatprep.subr.bf16.mxu0 0
  %2255 = vmatpush2.bf16.msra.mxu0 0
  %2256 = vmatprep.mubr.bf16.mxu0 0
  %2257 = vmatmul.mubr.bf16.gmra.mxu0 %v2159
  %v2258 = vpop.f32.mrf.mxu0
  %v2259 = vadd.f32 %v859, %v2258
  %v2260 = vpop.f32.mrf.mxu0
  %v2261 = vpop.f32.mrf.mxu0
  %v2262 = vpop.f32.mrf.mxu0
  %2263 = vdwg.mxu0
  %2264 = vmatprep.subr.bf16.mxu0 0
  %2265 = vmatpush1.bf16.msra.mxu0 %v291
  %2266 = vmatprep.subr.bf16.mxu0 0
  %2267 = vmatpush1.bf16.msra.mxu0 %v290
  %2268 = vmatprep.subr.bf16.mxu0 0
  %2269 = vmatpush1.bf16.msra.mxu0 %v289
  %2270 = vmatprep.subr.bf16.mxu0 0
  %2271 = vmatpush1.bf16.msra.mxu0 %v288
  %2272 = vmatprep.subr.bf16.mxu0 0
  %2273 = vmatpush1.bf16.msra.mxu0 %v287
  %2274 = vmatprep.subr.bf16.mxu0 0
  %2275 = vmatpush1.bf16.msra.mxu0 %v286
  %2276 = vmatprep.subr.bf16.mxu0 0
  %2277 = vmatpush1.bf16.msra.mxu0 %v285
  %2278 = vmatprep.subr.bf16.mxu0 0
  %2279 = vmatpush1.bf16.msra.mxu0 %v284
  %2280 = vmatprep.subr.bf16.mxu0 0
  %2281 = vmatpush2.bf16.msra.mxu0 0
  %2282 = vmatprep.subr.bf16.mxu0 0
  %2283 = vmatpush2.bf16.msra.mxu0 0
  %2284 = vmatprep.subr.bf16.mxu0 0
  %2285 = vmatpush2.bf16.msra.mxu0 0
  %2286 = vmatprep.subr.bf16.mxu0 0
  %2287 = vmatpush2.bf16.msra.mxu0 0
  %2288 = vmatprep.subr.bf16.mxu0 0
  %2289 = vmatpush2.bf16.msra.mxu0 0
  %2290 = vmatprep.subr.bf16.mxu0 0
  %2291 = vmatpush2.bf16.msra.mxu0 0
  %2292 = vmatprep.subr.bf16.mxu0 0
  %2293 = vmatpush2.bf16.msra.mxu0 0
  %2294 = vmatprep.subr.bf16.mxu0 0
  %2295 = vmatpush2.bf16.msra.mxu0 0
  %2296 = vmatprep.mubr.bf16.mxu0 0
  %2297 = vmatmul.mubr.bf16.gmra.mxu0 %v2043
  %v2298 = vpop.f32.mrf.mxu0
  %v2299 = vadd.f32 0.0, %v2298
  %v2300 = vpop.f32.mrf.mxu0
  %v2301 = vpop.f32.mrf.mxu0
  %v2302 = vpop.f32.mrf.mxu0
  %2303 = vdwg.mxu0
  %v2304 = vadd.f32 %v2259, %v2299
  %v2305 = vtanh.pop %v2304
  %v2306 = vpack.c.bf16 %v2305, %v2305
  %v2307 = vld [vmem:[%s5] sm:$0xf]
  %v2308 = vld [vmem:[%s5 + $0x4] sm:$0xf]
  %v2309 = vld [vmem:[%s5 + $0x8] sm:$0xf]
  %v2310 = vld [vmem:[%s5 + $0xc] sm:$0xf]
  %v2311 = vld [vmem:[%s5 + $0x10] sm:$0xf]
  %v2312 = vld [vmem:[%s5 + $0x14] sm:$0xf]
  %v2313 = vld [vmem:[%s5 + $0x18] sm:$0xf]
  %v2314 = vld [vmem:[%s5 + $0x1c] sm:$0xf]
  %v2315 = vld [vmem:[%s5 + $0x20] sm:$0xf]
  %v2316 = vld [vmem:[%s5 + $0x24] sm:$0xf]
  %v2317 = vld [vmem:[%s5 + $0x28] sm:$0xf]
  %v2318 = vld [vmem:[%s5 + $0x2c] sm:$0xf]
  %v2319 = vld [vmem:[%s5 + $0x30] sm:$0xf]
  %v2320 = vld [vmem:[%s5 + $0x34] sm:$0xf]
  %v2321 = vld [vmem:[%s5 + $0x38] sm:$0xf]
  %v2322 = vld [vmem:[%s5 + $0x3c] sm:$0xf]
  %v2339 = vunpack.c.l.b16 %v2307
  %v2340 = vunpack.c.l.b16 %v2308
  %v2341 = vunpack.c.l.b16 %v2309
  %v2342 = vunpack.c.l.b16 %v2310
  %v2343 = vunpack.c.l.b16 %v2311
  %v2344 = vunpack.c.l.b16 %v2312
  %v2345 = vunpack.c.l.b16 %v2313
  %v2346 = vunpack.c.l.b16 %v2314
  %v2347 = vunpack.c.l.b16 %v2315
  %v2348 = vunpack.c.l.b16 %v2316
  %v2349 = vunpack.c.l.b16 %v2317
  %v2350 = vunpack.c.l.b16 %v2318
  %v2351 = vunpack.c.l.b16 %v2319
  %v2352 = vunpack.c.l.b16 %v2320
  %v2353 = vunpack.c.l.b16 %v2321
  %v2354 = vunpack.c.l.b16 %v2322
  %v2355 = vpack.c.b16 %v2340, %v2339
  %v2356 = vpack.c.b16 %v2342, %v2341
  %v2357 = vpack.c.b16 %v2344, %v2343
  %v2358 = vpack.c.b16 %v2346, %v2345
  %v2359 = vpack.c.b16 %v2348, %v2347
  %v2360 = vpack.c.b16 %v2350, %v2349
  %v2361 = vpack.c.b16 %v2352, %v2351
  %v2362 = vpack.c.b16 %v2354, %v2353
  %2371 = vmatprep.subr.bf16.mxu0 0
  %2372 = vmatpush1.bf16.msra.mxu0 %v2362
  %2373 = vmatprep.subr.bf16.mxu0 0
  %2374 = vmatpush1.bf16.msra.mxu0 %v2361
  %2375 = vmatprep.subr.bf16.mxu0 0
  %2376 = vmatpush1.bf16.msra.mxu0 %v2360
  %2377 = vmatprep.subr.bf16.mxu0 0
  %2378 = vmatpush1.bf16.msra.mxu0 %v2359
  %2379 = vmatprep.subr.bf16.mxu0 0
  %2380 = vmatpush1.bf16.msra.mxu0 %v2358
  %2381 = vmatprep.subr.bf16.mxu0 0
  %2382 = vmatpush1.bf16.msra.mxu0 %v2357
  %2383 = vmatprep.subr.bf16.mxu0 0
  %2384 = vmatpush1.bf16.msra.mxu0 %v2356
  %2385 = vmatprep.subr.bf16.mxu0 0
  %2386 = vmatpush1.bf16.msra.mxu0 %v2355
  %2387 = vmatprep.subr.bf16.mxu0 0
  %2388 = vmatpush2.bf16.msra.mxu0 0
  %2389 = vmatprep.subr.bf16.mxu0 0
  %2390 = vmatpush2.bf16.msra.mxu0 0
  %2391 = vmatprep.subr.bf16.mxu0 0
  %2392 = vmatpush2.bf16.msra.mxu0 0
  %2393 = vmatprep.subr.bf16.mxu0 0
  %2394 = vmatpush2.bf16.msra.mxu0 0
  %2395 = vmatprep.subr.bf16.mxu0 0
  %2396 = vmatpush2.bf16.msra.mxu0 0
  %2397 = vmatprep.subr.bf16.mxu0 0
  %2398 = vmatpush2.bf16.msra.mxu0 0
  %2399 = vmatprep.subr.bf16.mxu0 0
  %2400 = vmatpush2.bf16.msra.mxu0 0
  %2401 = vmatprep.subr.bf16.mxu0 0
  %2402 = vmatpush2.bf16.msra.mxu0 0
  %2403 = vmatprep.mubr.bf16.mxu0 0
  %2404 = vmatmul.mubr.bf16.gmra.mxu0 %v2306
  %v2405 = vpop.f32.mrf.mxu0
  %v2406 = vadd.f32 %v687, %v2405
  %v2407 = vpop.f32.mrf.mxu0
  %v2408 = vpop.f32.mrf.mxu0
  %v2409 = vpop.f32.mrf.mxu0
  %2410 = vdwg.mxu0
  %2411 = vst [vmem:[%s7 + $0x68] sm:$0xff] %v2406
  %2412 = vmax.xlane.f32.xlu0 %v2406
  %v2413 = vpop.xlane.xlu0 %2412
  %vm2414 = vcmp.eq.f32.partialorder %v2406, %v2413
  %v2415 = vsel %vm2414, %v834, 128.0
  %2416 = vmin.xlane.f32.xlu0 %v2415
  %v2417 = vpop.xlane.xlu0 %2416
  %v2418 = vcvt.f32.s32.to.zero.pseudo %v2417
  %vm2419 = vcmp.eq.s32.totalorder %v2418, %v55
  %v2420 = vsel %vm2419, 1, 0
  %v2421 = vcvt.s32.f32 %v2420
  %v2422 = vpack.c.bf16 %v2421, %v2421
  %v2423 = vld [vmem:[%s1] sm:$0xf]
  %v2424 = vld [vmem:[%s1 + $0x4] sm:$0xf]
  %v2425 = vld [vmem:[%s1 + $0x8] sm:$0xf]
  %v2426 = vld [vmem:[%s1 + $0xc] sm:$0xf]
  %v2427 = vld [vmem:[%s1 + $0x10] sm:$0xf]
  %v2428 = vld [vmem:[%s1 + $0x14] sm:$0xf]
  %v2429 = vld [vmem:[%s1 + $0x18] sm:$0xf]
  %v2430 = vld [vmem:[%s1 + $0x1c] sm:$0xf]
  %v2431 = vld [vmem:[%s1 + $0x20] sm:$0xf]
  %v2432 = vld [vmem:[%s1 + $0x24] sm:$0xf]
  %v2433 = vld [vmem:[%s1 + $0x28] sm:$0xf]
  %v2434 = vld [vmem:[%s1 + $0x2c] sm:$0xf]
  %v2435 = vld [vmem:[%s1 + $0x30] sm:$0xf]
  %v2436 = vld [vmem:[%s1 + $0x34] sm:$0xf]
  %v2437 = vld [vmem:[%s1 + $0x38] sm:$0xf]
  %v2438 = vld [vmem:[%s1 + $0x3c] sm:$0xf]
  %v2455 = vunpack.c.l.b16 %v2423
  %v2456 = vunpack.c.l.b16 %v2424
  %v2457 = vunpack.c.l.b16 %v2425
  %v2458 = vunpack.c.l.b16 %v2426
  %v2459 = vunpack.c.l.b16 %v2427
  %v2460 = vunpack.c.l.b16 %v2428
  %v2461 = vunpack.c.l.b16 %v2429
  %v2462 = vunpack.c.l.b16 %v2430
  %v2463 = vunpack.c.l.b16 %v2431
  %v2464 = vunpack.c.l.b16 %v2432
  %v2465 = vunpack.c.l.b16 %v2433
  %v2466 = vunpack.c.l.b16 %v2434
  %v2467 = vunpack.c.l.b16 %v2435
  %v2468 = vunpack.c.l.b16 %v2436
  %v2469 = vunpack.c.l.b16 %v2437
  %v2470 = vunpack.c.l.b16 %v2438
  %v2471 = vpack.c.b16 %v2456, %v2455
  %v2472 = vpack.c.b16 %v2458, %v2457
  %v2473 = vpack.c.b16 %v2460, %v2459
  %v2474 = vpack.c.b16 %v2462, %v2461
  %v2475 = vpack.c.b16 %v2464, %v2463
  %v2476 = vpack.c.b16 %v2466, %v2465
  %v2477 = vpack.c.b16 %v2468, %v2467
  %v2478 = vpack.c.b16 %v2470, %v2469
  %2487 = vmatprep.subr.bf16.mxu0 0
  %2488 = vmatpush1.bf16.msra.mxu0 %v2478
  %2489 = vmatprep.subr.bf16.mxu0 0
  %2490 = vmatpush1.bf16.msra.mxu0 %v2477
  %2491 = vmatprep.subr.bf16.mxu0 0
  %2492 = vmatpush1.bf16.msra.mxu0 %v2476
  %2493 = vmatprep.subr.bf16.mxu0 0
  %2494 = vmatpush1.bf16.msra.mxu0 %v2475
  %2495 = vmatprep.subr.bf16.mxu0 0
  %2496 = vmatpush1.bf16.msra.mxu0 %v2474
  %2497 = vmatprep.subr.bf16.mxu0 0
  %2498 = vmatpush1.bf16.msra.mxu0 %v2473
  %2499 = vmatprep.subr.bf16.mxu0 0
  %2500 = vmatpush1.bf16.msra.mxu0 %v2472
  %2501 = vmatprep.subr.bf16.mxu0 0
  %2502 = vmatpush1.bf16.msra.mxu0 %v2471
  %2503 = vmatprep.subr.bf16.mxu0 0
  %2504 = vmatpush2.bf16.msra.mxu0 0
  %2505 = vmatprep.subr.bf16.mxu0 0
  %2506 = vmatpush2.bf16.msra.mxu0 0
  %2507 = vmatprep.subr.bf16.mxu0 0
  %2508 = vmatpush2.bf16.msra.mxu0 0
  %2509 = vmatprep.subr.bf16.mxu0 0
  %2510 = vmatpush2.bf16.msra.mxu0 0
  %2511 = vmatprep.subr.bf16.mxu0 0
  %2512 = vmatpush2.bf16.msra.mxu0 0
  %2513 = vmatprep.subr.bf16.mxu0 0
  %2514 = vmatpush2.bf16.msra.mxu0 0
  %2515 = vmatprep.subr.bf16.mxu0 0
  %2516 = vmatpush2.bf16.msra.mxu0 0
  %2517 = vmatprep.subr.bf16.mxu0 0
  %2518 = vmatpush2.bf16.msra.mxu0 0
  %2519 = vmatprep.mubr.bf16.mxu0 0
  %2520 = vmatmul.mubr.bf16.gmra.mxu0 %v2422
  %v2521 = vpop.f32.mrf.mxu0
  %v2522 = vadd.f32 %v859, %v2521
  %v2523 = vpop.f32.mrf.mxu0
  %v2524 = vpop.f32.mrf.mxu0
  %v2525 = vpop.f32.mrf.mxu0
  %2526 = vdwg.mxu0
  %2527 = vmatprep.subr.bf16.mxu0 0
  %2528 = vmatpush1.bf16.msra.mxu0 %v291
  %2529 = vmatprep.subr.bf16.mxu0 0
  %2530 = vmatpush1.bf16.msra.mxu0 %v290
  %2531 = vmatprep.subr.bf16.mxu0 0
  %2532 = vmatpush1.bf16.msra.mxu0 %v289
  %2533 = vmatprep.subr.bf16.mxu0 0
  %2534 = vmatpush1.bf16.msra.mxu0 %v288
  %2535 = vmatprep.subr.bf16.mxu0 0
  %2536 = vmatpush1.bf16.msra.mxu0 %v287
  %2537 = vmatprep.subr.bf16.mxu0 0
  %2538 = vmatpush1.bf16.msra.mxu0 %v286
  %2539 = vmatprep.subr.bf16.mxu0 0
  %2540 = vmatpush1.bf16.msra.mxu0 %v285
  %2541 = vmatprep.subr.bf16.mxu0 0
  %2542 = vmatpush1.bf16.msra.mxu0 %v284
  %2543 = vmatprep.subr.bf16.mxu0 0
  %2544 = vmatpush2.bf16.msra.mxu0 0
  %2545 = vmatprep.subr.bf16.mxu0 0
  %2546 = vmatpush2.bf16.msra.mxu0 0
  %2547 = vmatprep.subr.bf16.mxu0 0
  %2548 = vmatpush2.bf16.msra.mxu0 0
  %2549 = vmatprep.subr.bf16.mxu0 0
  %2550 = vmatpush2.bf16.msra.mxu0 0
  %2551 = vmatprep.subr.bf16.mxu0 0
  %2552 = vmatpush2.bf16.msra.mxu0 0
  %2553 = vmatprep.subr.bf16.mxu0 0
  %2554 = vmatpush2.bf16.msra.mxu0 0
  %2555 = vmatprep.subr.bf16.mxu0 0
  %2556 = vmatpush2.bf16.msra.mxu0 0
  %2557 = vmatprep.subr.bf16.mxu0 0
  %2558 = vmatpush2.bf16.msra.mxu0 0
  %2559 = vmatprep.mubr.bf16.mxu0 0
  %2560 = vmatmul.mubr.bf16.gmra.mxu0 %v2306
  %v2561 = vpop.f32.mrf.mxu0
  %v2562 = vadd.f32 0.0, %v2561
  %v2563 = vpop.f32.mrf.mxu0
  %v2564 = vpop.f32.mrf.mxu0
  %v2565 = vpop.f32.mrf.mxu0
  %2566 = vdwg.mxu0
  %v2567 = vadd.f32 %v2522, %v2562
  %v2568 = vtanh.pop %v2567
  %v2569 = vpack.c.bf16 %v2568, %v2568
  %v2570 = vld [vmem:[%s5] sm:$0xf]
  %v2571 = vld [vmem:[%s5 + $0x4] sm:$0xf]
  %v2572 = vld [vmem:[%s5 + $0x8] sm:$0xf]
  %v2573 = vld [vmem:[%s5 + $0xc] sm:$0xf]
  %v2574 = vld [vmem:[%s5 + $0x10] sm:$0xf]
  %v2575 = vld [vmem:[%s5 + $0x14] sm:$0xf]
  %v2576 = vld [vmem:[%s5 + $0x18] sm:$0xf]
  %v2577 = vld [vmem:[%s5 + $0x1c] sm:$0xf]
  %v2578 = vld [vmem:[%s5 + $0x20] sm:$0xf]
  %v2579 = vld [vmem:[%s5 + $0x24] sm:$0xf]
  %v2580 = vld [vmem:[%s5 + $0x28] sm:$0xf]
  %v2581 = vld [vmem:[%s5 + $0x2c] sm:$0xf]
  %v2582 = vld [vmem:[%s5 + $0x30] sm:$0xf]
  %v2583 = vld [vmem:[%s5 + $0x34] sm:$0xf]
  %v2584 = vld [vmem:[%s5 + $0x38] sm:$0xf]
  %v2585 = vld [vmem:[%s5 + $0x3c] sm:$0xf]
  %v2602 = vunpack.c.l.b16 %v2570
  %v2603 = vunpack.c.l.b16 %v2571
  %v2604 = vunpack.c.l.b16 %v2572
  %v2605 = vunpack.c.l.b16 %v2573
  %v2606 = vunpack.c.l.b16 %v2574
  %v2607 = vunpack.c.l.b16 %v2575
  %v2608 = vunpack.c.l.b16 %v2576
  %v2609 = vunpack.c.l.b16 %v2577
  %v2610 = vunpack.c.l.b16 %v2578
  %v2611 = vunpack.c.l.b16 %v2579
  %v2612 = vunpack.c.l.b16 %v2580
  %v2613 = vunpack.c.l.b16 %v2581
  %v2614 = vunpack.c.l.b16 %v2582
  %v2615 = vunpack.c.l.b16 %v2583
  %v2616 = vunpack.c.l.b16 %v2584
  %v2617 = vunpack.c.l.b16 %v2585
  %v2618 = vpack.c.b16 %v2603, %v2602
  %v2619 = vpack.c.b16 %v2605, %v2604
  %v2620 = vpack.c.b16 %v2607, %v2606
  %v2621 = vpack.c.b16 %v2609, %v2608
  %v2622 = vpack.c.b16 %v2611, %v2610
  %v2623 = vpack.c.b16 %v2613, %v2612
  %v2624 = vpack.c.b16 %v2615, %v2614
  %v2625 = vpack.c.b16 %v2617, %v2616
  %2634 = vmatprep.subr.bf16.mxu0 0
  %2635 = vmatpush1.bf16.msra.mxu0 %v2625
  %2636 = vmatprep.subr.bf16.mxu0 0
  %2637 = vmatpush1.bf16.msra.mxu0 %v2624
  %2638 = vmatprep.subr.bf16.mxu0 0
  %2639 = vmatpush1.bf16.msra.mxu0 %v2623
  %2640 = vmatprep.subr.bf16.mxu0 0
  %2641 = vmatpush1.bf16.msra.mxu0 %v2622
  %2642 = vmatprep.subr.bf16.mxu0 0
  %2643 = vmatpush1.bf16.msra.mxu0 %v2621
  %2644 = vmatprep.subr.bf16.mxu0 0
  %2645 = vmatpush1.bf16.msra.mxu0 %v2620
  %2646 = vmatprep.subr.bf16.mxu0 0
  %2647 = vmatpush1.bf16.msra.mxu0 %v2619
  %2648 = vmatprep.subr.bf16.mxu0 0
  %2649 = vmatpush1.bf16.msra.mxu0 %v2618
  %2650 = vmatprep.subr.bf16.mxu0 0
  %2651 = vmatpush2.bf16.msra.mxu0 0
  %2652 = vmatprep.subr.bf16.mxu0 0
  %2653 = vmatpush2.bf16.msra.mxu0 0
  %2654 = vmatprep.subr.bf16.mxu0 0
  %2655 = vmatpush2.bf16.msra.mxu0 0
  %2656 = vmatprep.subr.bf16.mxu0 0
  %2657 = vmatpush2.bf16.msra.mxu0 0
  %2658 = vmatprep.subr.bf16.mxu0 0
  %2659 = vmatpush2.bf16.msra.mxu0 0
  %2660 = vmatprep.subr.bf16.mxu0 0
  %2661 = vmatpush2.bf16.msra.mxu0 0
  %2662 = vmatprep.subr.bf16.mxu0 0
  %2663 = vmatpush2.bf16.msra.mxu0 0
  %2664 = vmatprep.subr.bf16.mxu0 0
  %2665 = vmatpush2.bf16.msra.mxu0 0
  %2666 = vmatprep.mubr.bf16.mxu0 0
  %2667 = vmatmul.mubr.bf16.gmra.mxu0 %v2569
  %v2668 = vpop.f32.mrf.mxu0
  %v2669 = vadd.f32 %v687, %v2668
  %v2670 = vpop.f32.mrf.mxu0
  %v2671 = vpop.f32.mrf.mxu0
  %v2672 = vpop.f32.mrf.mxu0
  %2673 = vdwg.mxu0
  %2674 = vst [vmem:[%s7 + $0x70] sm:$0xff] %v2669
  %2675 = vmax.xlane.f32.xlu0 %v2669
  %v2676 = vpop.xlane.xlu0 %2675
  %vm2677 = vcmp.eq.f32.partialorder %v2669, %v2676
  %v2678 = vsel %vm2677, %v834, 128.0
  %2679 = vmin.xlane.f32.xlu0 %v2678
  %v2680 = vpop.xlane.xlu0 %2679
  %v2681 = vcvt.f32.s32.to.zero.pseudo %v2680
  %vm2682 = vcmp.eq.s32.totalorder %v2681, %v55
  %v2683 = vsel %vm2682, 1, 0
  %v2684 = vcvt.s32.f32 %v2683
  %v2685 = vpack.c.bf16 %v2684, %v2684
  %v2686 = vld [vmem:[%s1] sm:$0xf]
  %v2687 = vld [vmem:[%s1 + $0x4] sm:$0xf]
  %v2688 = vld [vmem:[%s1 + $0x8] sm:$0xf]
  %v2689 = vld [vmem:[%s1 + $0xc] sm:$0xf]
  %v2690 = vld [vmem:[%s1 + $0x10] sm:$0xf]
  %v2691 = vld [vmem:[%s1 + $0x14] sm:$0xf]
  %v2692 = vld [vmem:[%s1 + $0x18] sm:$0xf]
  %v2693 = vld [vmem:[%s1 + $0x1c] sm:$0xf]
  %v2694 = vld [vmem:[%s1 + $0x20] sm:$0xf]
  %v2695 = vld [vmem:[%s1 + $0x24] sm:$0xf]
  %v2696 = vld [vmem:[%s1 + $0x28] sm:$0xf]
  %v2697 = vld [vmem:[%s1 + $0x2c] sm:$0xf]
  %v2698 = vld [vmem:[%s1 + $0x30] sm:$0xf]
  %v2699 = vld [vmem:[%s1 + $0x34] sm:$0xf]
  %v2700 = vld [vmem:[%s1 + $0x38] sm:$0xf]
  %v2701 = vld [vmem:[%s1 + $0x3c] sm:$0xf]
  %v2718 = vunpack.c.l.b16 %v2686
  %v2719 = vunpack.c.l.b16 %v2687
  %v2720 = vunpack.c.l.b16 %v2688
  %v2721 = vunpack.c.l.b16 %v2689
  %v2722 = vunpack.c.l.b16 %v2690
  %v2723 = vunpack.c.l.b16 %v2691
  %v2724 = vunpack.c.l.b16 %v2692
  %v2725 = vunpack.c.l.b16 %v2693
  %v2726 = vunpack.c.l.b16 %v2694
  %v2727 = vunpack.c.l.b16 %v2695
  %v2728 = vunpack.c.l.b16 %v2696
  %v2729 = vunpack.c.l.b16 %v2697
  %v2730 = vunpack.c.l.b16 %v2698
  %v2731 = vunpack.c.l.b16 %v2699
  %v2732 = vunpack.c.l.b16 %v2700
  %v2733 = vunpack.c.l.b16 %v2701
  %v2734 = vpack.c.b16 %v2719, %v2718
  %v2735 = vpack.c.b16 %v2721, %v2720
  %v2736 = vpack.c.b16 %v2723, %v2722
  %v2737 = vpack.c.b16 %v2725, %v2724
  %v2738 = vpack.c.b16 %v2727, %v2726
  %v2739 = vpack.c.b16 %v2729, %v2728
  %v2740 = vpack.c.b16 %v2731, %v2730
  %v2741 = vpack.c.b16 %v2733, %v2732
  %2750 = vmatprep.subr.bf16.mxu0 0
  %2751 = vmatpush1.bf16.msra.mxu0 %v2741
  %2752 = vmatprep.subr.bf16.mxu0 0
  %2753 = vmatpush1.bf16.msra.mxu0 %v2740
  %2754 = vmatprep.subr.bf16.mxu0 0
  %2755 = vmatpush1.bf16.msra.mxu0 %v2739
  %2756 = vmatprep.subr.bf16.mxu0 0
  %2757 = vmatpush1.bf16.msra.mxu0 %v2738
  %2758 = vmatprep.subr.bf16.mxu0 0
  %2759 = vmatpush1.bf16.msra.mxu0 %v2737
  %2760 = vmatprep.subr.bf16.mxu0 0
  %2761 = vmatpush1.bf16.msra.mxu0 %v2736
  %2762 = vmatprep.subr.bf16.mxu0 0
  %2763 = vmatpush1.bf16.msra.mxu0 %v2735
  %2764 = vmatprep.subr.bf16.mxu0 0
  %2765 = vmatpush1.bf16.msra.mxu0 %v2734
  %2766 = vmatprep.subr.bf16.mxu0 0
  %2767 = vmatpush2.bf16.msra.mxu0 0
  %2768 = vmatprep.subr.bf16.mxu0 0
  %2769 = vmatpush2.bf16.msra.mxu0 0
  %2770 = vmatprep.subr.bf16.mxu0 0
  %2771 = vmatpush2.bf16.msra.mxu0 0
  %2772 = vmatprep.subr.bf16.mxu0 0
  %2773 = vmatpush2.bf16.msra.mxu0 0
  %2774 = vmatprep.subr.bf16.mxu0 0
  %2775 = vmatpush2.bf16.msra.mxu0 0
  %2776 = vmatprep.subr.bf16.mxu0 0
  %2777 = vmatpush2.bf16.msra.mxu0 0
  %2778 = vmatprep.subr.bf16.mxu0 0
  %2779 = vmatpush2.bf16.msra.mxu0 0
  %2780 = vmatprep.subr.bf16.mxu0 0
  %2781 = vmatpush2.bf16.msra.mxu0 0
  %2782 = vmatprep.mubr.bf16.mxu0 0
  %2783 = vmatmul.mubr.bf16.gmra.mxu0 %v2685
  %v2784 = vpop.f32.mrf.mxu0
  %v2785 = vadd.f32 %v859, %v2784
  %v2786 = vpop.f32.mrf.mxu0
  %v2787 = vpop.f32.mrf.mxu0
  %v2788 = vpop.f32.mrf.mxu0
  %2789 = vdwg.mxu0
  %2790 = vmatprep.subr.bf16.mxu0 0
  %2791 = vmatpush1.bf16.msra.mxu0 %v291
  %2792 = vmatprep.subr.bf16.mxu0 0
  %2793 = vmatpush1.bf16.msra.mxu0 %v290
  %2794 = vmatprep.subr.bf16.mxu0 0
  %2795 = vmatpush1.bf16.msra.mxu0 %v289
  %2796 = vmatprep.subr.bf16.mxu0 0
  %2797 = vmatpush1.bf16.msra.mxu0 %v288
  %2798 = vmatprep.subr.bf16.mxu0 0
  %2799 = vmatpush1.bf16.msra.mxu0 %v287
  %2800 = vmatprep.subr.bf16.mxu0 0
  %2801 = vmatpush1.bf16.msra.mxu0 %v286
  %2802 = vmatprep.subr.bf16.mxu0 0
  %2803 = vmatpush1.bf16.msra.mxu0 %v285
  %2804 = vmatprep.subr.bf16.mxu0 0
  %2805 = vmatpush1.bf16.msra.mxu0 %v284
  %2806 = vmatprep.subr.bf16.mxu0 0
  %2807 = vmatpush2.bf16.msra.mxu0 0
  %2808 = vmatprep.subr.bf16.mxu0 0
  %2809 = vmatpush2.bf16.msra.mxu0 0
  %2810 = vmatprep.subr.bf16.mxu0 0
  %2811 = vmatpush2.bf16.msra.mxu0 0
  %2812 = vmatprep.subr.bf16.mxu0 0
  %2813 = vmatpush2.bf16.msra.mxu0 0
  %2814 = vmatprep.subr.bf16.mxu0 0
  %2815 = vmatpush2.bf16.msra.mxu0 0
  %2816 = vmatprep.subr.bf16.mxu0 0
  %2817 = vmatpush2.bf16.msra.mxu0 0
  %2818 = vmatprep.subr.bf16.mxu0 0
  %2819 = vmatpush2.bf16.msra.mxu0 0
  %2820 = vmatprep.subr.bf16.mxu0 0
  %2821 = vmatpush2.bf16.msra.mxu0 0
  %2822 = vmatprep.mubr.bf16.mxu0 0
  %2823 = vmatmul.mubr.bf16.gmra.mxu0 %v2569
  %v2824 = vpop.f32.mrf.mxu0
  %v2825 = vadd.f32 0.0, %v2824
  %v2826 = vpop.f32.mrf.mxu0
  %v2827 = vpop.f32.mrf.mxu0
  %v2828 = vpop.f32.mrf.mxu0
  %2829 = vdwg.mxu0
  %v2830 = vadd.f32 %v2785, %v2825
  %v2831 = vtanh.pop %v2830
  %v2832 = vpack.c.bf16 %v2831, %v2831
  %v2833 = vld [vmem:[%s5] sm:$0xf]
  %v2834 = vld [vmem:[%s5 + $0x4] sm:$0xf]
  %v2835 = vld [vmem:[%s5 + $0x8] sm:$0xf]
  %v2836 = vld [vmem:[%s5 + $0xc] sm:$0xf]
  %v2837 = vld [vmem:[%s5 + $0x10] sm:$0xf]
  %v2838 = vld [vmem:[%s5 + $0x14] sm:$0xf]
  %v2839 = vld [vmem:[%s5 + $0x18] sm:$0xf]
  %v2840 = vld [vmem:[%s5 + $0x1c] sm:$0xf]
  %v2841 = vld [vmem:[%s5 + $0x20] sm:$0xf]
  %v2842 = vld [vmem:[%s5 + $0x24] sm:$0xf]
  %v2843 = vld [vmem:[%s5 + $0x28] sm:$0xf]
  %v2844 = vld [vmem:[%s5 + $0x2c] sm:$0xf]
  %v2845 = vld [vmem:[%s5 + $0x30] sm:$0xf]
  %v2846 = vld [vmem:[%s5 + $0x34] sm:$0xf]
  %v2847 = vld [vmem:[%s5 + $0x38] sm:$0xf]
  %v2848 = vld [vmem:[%s5 + $0x3c] sm:$0xf]
  %v2865 = vunpack.c.l.b16 %v2833
  %v2866 = vunpack.c.l.b16 %v2834
  %v2867 = vunpack.c.l.b16 %v2835
  %v2868 = vunpack.c.l.b16 %v2836
  %v2869 = vunpack.c.l.b16 %v2837
  %v2870 = vunpack.c.l.b16 %v2838
  %v2871 = vunpack.c.l.b16 %v2839
  %v2872 = vunpack.c.l.b16 %v2840
  %v2873 = vunpack.c.l.b16 %v2841
  %v2874 = vunpack.c.l.b16 %v2842
  %v2875 = vunpack.c.l.b16 %v2843
  %v2876 = vunpack.c.l.b16 %v2844
  %v2877 = vunpack.c.l.b16 %v2845
  %v2878 = vunpack.c.l.b16 %v2846
  %v2879 = vunpack.c.l.b16 %v2847
  %v2880 = vunpack.c.l.b16 %v2848
  %v2881 = vpack.c.b16 %v2866, %v2865
  %v2882 = vpack.c.b16 %v2868, %v2867
  %v2883 = vpack.c.b16 %v2870, %v2869
  %v2884 = vpack.c.b16 %v2872, %v2871
  %v2885 = vpack.c.b16 %v2874, %v2873
  %v2886 = vpack.c.b16 %v2876, %v2875
  %v2887 = vpack.c.b16 %v2878, %v2877
  %v2888 = vpack.c.b16 %v2880, %v2879
  %2897 = vmatprep.subr.bf16.mxu0 0
  %2898 = vmatpush1.bf16.msra.mxu0 %v2888
  %2899 = vmatprep.subr.bf16.mxu0 0
  %2900 = vmatpush1.bf16.msra.mxu0 %v2887
  %2901 = vmatprep.subr.bf16.mxu0 0
  %2902 = vmatpush1.bf16.msra.mxu0 %v2886
  %2903 = vmatprep.subr.bf16.mxu0 0
  %2904 = vmatpush1.bf16.msra.mxu0 %v2885
  %2905 = vmatprep.subr.bf16.mxu0 0
  %2906 = vmatpush1.bf16.msra.mxu0 %v2884
  %2907 = vmatprep.subr.bf16.mxu0 0
  %2908 = vmatpush1.bf16.msra.mxu0 %v2883
  %2909 = vmatprep.subr.bf16.mxu0 0
  %2910 = vmatpush1.bf16.msra.mxu0 %v2882
  %2911 = vmatprep.subr.bf16.mxu0 0
  %2912 = vmatpush1.bf16.msra.mxu0 %v2881
  %2913 = vmatprep.subr.bf16.mxu0 0
  %2914 = vmatpush2.bf16.msra.mxu0 0
  %2915 = vmatprep.subr.bf16.mxu0 0
  %2916 = vmatpush2.bf16.msra.mxu0 0
  %2917 = vmatprep.subr.bf16.mxu0 0
  %2918 = vmatpush2.bf16.msra.mxu0 0
  %2919 = vmatprep.subr.bf16.mxu0 0
  %2920 = vmatpush2.bf16.msra.mxu0 0
  %2921 = vmatprep.subr.bf16.mxu0 0
  %2922 = vmatpush2.bf16.msra.mxu0 0
  %2923 = vmatprep.subr.bf16.mxu0 0
  %2924 = vmatpush2.bf16.msra.mxu0 0
  %2925 = vmatprep.subr.bf16.mxu0 0
  %2926 = vmatpush2.bf16.msra.mxu0 0
  %2927 = vmatprep.subr.bf16.mxu0 0
  %2928 = vmatpush2.bf16.msra.mxu0 0
  %2929 = vmatprep.mubr.bf16.mxu0 0
  %2930 = vmatmul.mubr.bf16.gmra.mxu0 %v2832
  %v2931 = vpop.f32.mrf.mxu0
  %v2932 = vadd.f32 %v687, %v2931
  %v2933 = vpop.f32.mrf.mxu0
  %v2934 = vpop.f32.mrf.mxu0
  %v2935 = vpop.f32.mrf.mxu0
  %2936 = vdwg.mxu0
  %2937 = vst [vmem:[%s7 + $0x78] sm:$0xff] %v2932
  // Predicated region
  $region30: #{rnn_ar_forward.1} parent=0 // pred_check
    _
  $region31: #{rnn_ar_forward.1} parent=0 // pred_check_branch
    %2939 = sbr.rel (0) target = $region33
  $region32: #{rnn_ar_forward.1} parent=0 // pred_region
    _
  $region33: #{rnn_ar_forward.1} parent=0 // pred_fallthru
    _
  // Predicated region
  $region34: #{rnn_ar_forward.1} parent=0 // pred_check
    _
  $region35: #{rnn_ar_forward.1} parent=0 // pred_check_branch
    %2941 = sbr.rel (0) target = $region37
  $region36: #{rnn_ar_forward.1} parent=0 // pred_region
    _
  $region37: #{rnn_ar_forward.1} parent=0 // pred_fallthru
    _

</llo_original>
